<compile_context>
chip_gen: v5e
topology: v5e:2x2
jax: 0.10.0
libtpu: 0.0.40
codegen_flags: <defaults>
</compile_context>

<pallas_src>
import functools
import math

import jax
import jax.numpy as jnp
from jax.experimental import pallas as pl
from jax.experimental.pallas import tpu as pltpu

D_HEAD = 64          # d_q = d_k = d_v hard-coded in the PyTorch module
D_FFN = 2048         # hard-coded in FeedForwardNet
LN_EPS = 1e-5        # torch.nn.LayerNorm default
MASK_VAL = -10000000.0


def _layernorm(x, g, b):
    mu = jnp.mean(x, axis=-1, keepdims=True)
    var = jnp.mean((x - mu) ** 2, axis=-1, keepdims=True)
    return (x - mu) * jax.lax.rsqrt(var + LN_EPS) * g + b


def _round_up(n, m):
    return (n + m - 1) // m * m


def _clamp_vmem(est_bytes):
    # Floor 16 MiB; cap 64 MiB (v7x physical VMEM per TC; v5e/v6e have 128 MiB
    # so this cap is safe everywhere, if slightly conservative there).
    return int(min(64 << 20, max(int(est_bytes), 16 << 20)))


# --------------------------------------------------------------------------
# Decoder layer kernel (fused attention + FFN) — one grid step per batch block
# --------------------------------------------------------------------------
def decoder_layer_kernel(x_ref, mask_ref, wqkv_ref, wo_ref,
                         g1_ref, b1_ref, w1_ref, w2_ref, g2_ref, b2_ref,
                         o_ref, *, num_heads):
    bblk, S, D = x_ref.shape
    H = num_heads
    HD = H * D_HEAD
    rows = bblk * S

    x = x_ref[...].astype(jnp.float32).reshape(rows, D)          # (rows, D) f32
    x_bf = x.astype(jnp.bfloat16)

    # --- Fused QKV projection: one MXU pass with N = 3*H*64 ----------------
    qkv = jnp.dot(x_bf, wqkv_ref[...], preferred_element_type=jnp.float32)
    q = qkv[:, :HD] * (1.0 / math.sqrt(D_HEAD))                  # pre-scale q once
    k = qkv[:, HD:2 * HD]
    v = qkv[:, 2 * HD:]

    def to_heads(t):  # (rows, H*64) f32 -> (bblk*H, S, 64) bf16
        t = t.reshape(bblk, S, H, D_HEAD).astype(jnp.bfloat16)
        return jnp.transpose(t, (0, 2, 1, 3)).reshape(bblk * H, S, D_HEAD)

    qh, kh, vh = to_heads(q), to_heads(k), to_heads(v)

    # --- Causal attention, batched over (batch, head) -----------------------
    s = jnp.einsum('bqd,bkd->bqk', qh, kh,
                   preferred_element_type=jnp.float32)           # (bblk*H, S, S)
    # masked_fill semantics (mask precomputed in the wrapper; 1.0 = masked).
    s = jnp.where(mask_ref[...][None, :, :] != 0.0, MASK_VAL, s)
    s = s - jnp.max(s, axis=-1, keepdims=True)
    p = jnp.exp(s)
    p = p * pl.reciprocal(jnp.sum(p, axis=-1, keepdims=True), approx=True)
    # TODO(synk): at large S switch to a flash q/kv-tiled online softmax here.

    ctx = jnp.einsum('bqk,bkd->bqd', p.astype(jnp.bfloat16), vh,
                     preferred_element_type=jnp.float32)         # (bblk*H, S, 64)

    # --- Output projection: one matmul with K = H*64 (no per-head loop) -----
    ctx2d = jnp.transpose(ctx.reshape(bblk, H, S, D_HEAD),
                          (0, 2, 1, 3)).reshape(rows, HD).astype(jnp.bfloat16)
    attn = jnp.dot(ctx2d, wo_ref[...], preferred_element_type=jnp.float32) + x
    attn = _layernorm(attn, g1_ref[0], b1_ref[0])

    # --- FFN: bf16 MXU inputs, f32 accumulation, ReLU/LN in f32 -------------
    h1 = jnp.maximum(
        jnp.dot(attn.astype(jnp.bfloat16), w1_ref[...],
                preferred_element_type=jnp.float32), 0.0)
    ff = jnp.dot(h1.astype(jnp.bfloat16), w2_ref[...],
                 preferred_element_type=jnp.float32) + attn
    out = _layernorm(ff, g2_ref[0], b2_ref[0])
    o_ref[...] = out.reshape(bblk, S, D).astype(o_ref.dtype)


def _pick_batch_block(B, S, num_heads):
    # Feed the MXU >=256 rows per matmul (v6e/v7x pass width) while keeping the
    # f32 score/prob tensors bounded (~8 MiB) in VMEM.
    bb = min(B, max(1, -(-256 // S)))
    while bb > 1 and 2 * bb * num_heads * S * S * 4 > (8 << 20):
        bb -= 1
    while B % bb:
        bb -= 1
    return bb


def decoder_layer(x, mask, layer_params, num_heads, block_b):
    B, S, D = x.shape
    weights = layer_params  # (wqkv, wo, g1, b1, w1, w2, g2, b2)

    def w_spec(a):
        zeros = (0,) * a.ndim
        return pl.BlockSpec(a.shape, lambda b, z=zeros: z)

    rows = block_b * S
    HD = num_heads * D_HEAD
    weight_bytes = sum(a.size * a.dtype.itemsize for a in weights)
    interm = (rows * D * 4                               # x f32
              + rows * 3 * HD * 4                        # qkv f32
              + 3 * rows * HD * 2                        # q/k/v head-major bf16
              + 2 * block_b * num_heads * S * S * 4      # scores + probs f32
              + rows * HD * 4 + rows * HD * 2            # ctx f32 + bf16
              + 2 * rows * D * 4                         # attn / ff f32
              + rows * D_FFN * 4 + rows * D_FFN * 2)     # FFN hidden f32 + bf16
    vmem = _clamp_vmem(2 * (2 * rows * D * 2)            # in/out activation blocks (x2 buf)
                       + 2 * weight_bytes                # weight blocks (default double-buffered)
                       + 2 * S * S * 4                   # mask block
                       + interm + (2 << 20))

    return pl.pallas_call(
        functools.partial(decoder_layer_kernel, num_heads=num_heads),
        out_shape=jax.ShapeDtypeStruct((B, S, D), jnp.bfloat16),
        grid=(B // block_b,),
        in_specs=[pl.BlockSpec((block_b, S, D), lambda b: (b, 0, 0)),
                  pl.BlockSpec((S, S), lambda b: (0, 0))]
                 + [w_spec(a) for a in weights],
        out_specs=pl.BlockSpec((block_b, S, D), lambda b: (b, 0, 0)),
        compiler_params=pltpu.CompilerParams(
            dimension_semantics=("parallel",),
            vmem_limit_bytes=vmem),
    )(x, mask, *weights)


# --------------------------------------------------------------------------
# Final vocab projection — flattened (B*S, D) x, vocab-tiled, weight reused
# --------------------------------------------------------------------------
def final_linear_kernel(x_ref, w_ref, b_ref, o_ref):
    o_ref[...] = (jnp.dot(x_ref[...], w_ref[...],
                          preferred_element_type=jnp.float32) + b_ref[...])


def _pick_vocab_tile(v_padded):
    # Cap at 2048 so double-buffered (D, tv) bf16 + (tm, tv) f32 output fits
    # comfortably inside v7x's 64 MiB VMEM even at large d_model.
    for t in (2048, 1024, 512, 256, 128):
        if v_padded % t == 0:
            return t
    return 128


def final_linear(x, w, b):
    B, S, D = x.shape
    V = w.shape[1]
    M = B * S

    # Flatten batch/seq so the matmul M dimension is B*S (not 8) and each
    # (D, tv) weight tile is DMA'd once, not once per batch element.
    x2 = x.reshape(M, D).astype(jnp.bfloat16)

    Vp = _round_up(V, 128)
    tv = _pick_vocab_tile(Vp)
    if M <= 1024:
        Mp = _round_up(M, 8)
        tm = Mp
    else:
        Mp = _round_up(M, 256)
        tm = 256

    if Mp != M:
        x2 = jnp.pad(x2, ((0, Mp - M), (0, 0)))
    if Vp != V:
        w = jnp.pad(w, ((0, 0), (0, Vp - V)))
        b = jnp.pad(b, ((0, 0), (0, Vp - V)))

    vmem = _clamp_vmem(2 * (tm * D * 2 + D * tv * 2 + tv * 4 + tm * tv * 4)
                       + tm * tv * 4 + (2 << 20))

    out = pl.pallas_call(
        final_linear_kernel,
        out_shape=jax.ShapeDtypeStruct((Mp, Vp), jnp.float32),
        # M innermost so the (D, tv) weight tile stays resident across M steps.
        grid=(Vp // tv, Mp // tm),
        in_specs=[
            pl.BlockSpec((tm, D), lambda vi, mi: (mi, 0)),
            pl.BlockSpec((D, tv), lambda vi, mi: (0, vi)),
            pl.BlockSpec((1, tv), lambda vi, mi: (0, vi)),
        ],
        out_specs=pl.BlockSpec((tm, tv), lambda vi, mi: (mi, vi)),
        compiler_params=pltpu.CompilerParams(
            dimension_semantics=("parallel", "arbitrary"),
            vmem_limit_bytes=vmem),
    )(x2, w, b)
    return out[:M, :V].reshape(B, S, V)


# --------------------------------------------------------------------------
# Embedding / positional encoding (plain JAX glue) and parameter init
# --------------------------------------------------------------------------
def positional_encoding(B, S, D):
    # Matches Embedding_layer.PositionEncoding exactly (D assumed even).
    pos = jnp.arange(S, dtype=jnp.float32).reshape(-1, 1)
    exponent = jnp.arange(0, D, 2, dtype=jnp.float32).reshape(1, -1) / D
    X = pos / jnp.power(10000.0, exponent)                   # (S, D//2)
    pe = jnp.zeros((S, D), jnp.float32)
    pe = pe.at[:, 0::2].set(jnp.sin(X))
    pe = pe.at[:, 1::2].set(jnp.cos(X))
    return jnp.broadcast_to(pe[None], (B, S, D))


def init_params(key, vocab_size, d_model, num_heads, num_layers):
    keys = jax.random.split(key, 3 + num_layers)
    HD = num_heads * D_HEAD
    params = {"embedding": jax.random.normal(keys[0], (vocab_size, d_model),
                                             jnp.float32)}
    scale = 0.02
    layers = []
    for li in range(num_layers):
        lk = jax.random.split(keys[3 + li], 4)
        # W_Q / W_K / W_V fused offline into one (D, 3*H*64) weight.
        wqkv = (scale * jax.random.normal(
            lk[0], (d_model, 3 * HD), jnp.float32)).astype(jnp.bfloat16)
        wo = (scale * jax.random.normal(
            lk[1], (HD, d_model), jnp.float32)).astype(jnp.bfloat16)
        g1 = jnp.ones((1, d_model), jnp.float32)
        b1 = jnp.zeros((1, d_model), jnp.float32)
        w1 = (scale * jax.random.normal(
            lk[2], (d_model, D_FFN), jnp.float32)).astype(jnp.bfloat16)
        w2 = (scale * jax.random.normal(
            lk[3], (D_FFN, d_model), jnp.float32)).astype(jnp.bfloat16)
        g2 = jnp.ones((1, d_model), jnp.float32)
        b2 = jnp.zeros((1, d_model), jnp.float32)
        layers.append((wqkv, wo, g1, b1, w1, w2, g2, b2))
    params["layers"] = layers
    params["w_out"] = (scale * jax.random.normal(
        keys[1], (d_model, vocab_size), jnp.float32)).astype(jnp.bfloat16)
    params["b_out"] = 0.01 * jax.random.normal(keys[2], (1, vocab_size),
                                               jnp.float32)
    return params


def poem_model_forward(token_ids, params, num_heads):
    B, S = token_ids.shape
    D = params["embedding"].shape[1]
    # Embedding gather + positional encoding (glue, plain JAX); bf16 activations
    # between layers.
    x = jnp.take(params["embedding"], token_ids, axis=0)      # (B, S, D)
    x = (x + positional_encoding(B, S, D)).astype(jnp.bfloat16)

    # Causal mask built once (1.0 = masked) and reused by every layer/grid step.
    row = jax.lax.broadcasted_iota(jnp.int32, (S, S), 0)
    col = jax.lax.broadcasted_iota(jnp.int32, (S, S), 1)
    mask = (col > row).astype(jnp.float32)

    block_b = _pick_batch_block(B, S, num_heads)
    for layer_params in params["layers"]:
        x = decoder_layer(x, mask, layer_params, num_heads, block_b)
    return final_linear(x, params["w_out"], params["b_out"])


if __name__ == "__main__":
    # Lane-dense toy config: D = 128, num_heads*64 = 128, V = 128, S = 8.
    vocab_size = 128
    d_model = 128
    num_heads = 2
    num_layers = 2
    batch_size = 2
    seq_len = 8

    key = jax.random.PRNGKey(0)
    pkey, dkey = jax.random.split(key)
    params = init_params(pkey, vocab_size, d_model, num_heads, num_layers)
    token_ids = jax.random.randint(dkey, (batch_size, seq_len), 0, vocab_size,
                                   dtype=jnp.int32)

    logits = poem_model_forward(token_ids, params, num_heads)
    jax.block_until_ready(logits)
    assert logits.shape == (batch_size, seq_len, vocab_size)
    assert logits.dtype == jnp.float32
    print("KERNEL_OK")
</pallas_src>

<mosaic_0001>
module attributes {stable_mosaic.version = 11 : i64} {
  func.func @decoder_layer_kernel(%arg0: i32, %arg1: memref<2x8x128xbf16, #tpu.memory_space<vmem>>, %arg2: memref<8x8xf32, #tpu.memory_space<vmem>>, %arg3: memref<128x384xbf16, #tpu.memory_space<vmem>>, %arg4: memref<128x128xbf16, #tpu.memory_space<vmem>>, %arg5: memref<1x128xf32, #tpu.memory_space<vmem>>, %arg6: memref<1x128xf32, #tpu.memory_space<vmem>>, %arg7: memref<128x2048xbf16, #tpu.memory_space<vmem>>, %arg8: memref<2048x128xbf16, #tpu.memory_space<vmem>>, %arg9: memref<1x128xf32, #tpu.memory_space<vmem>>, %arg10: memref<1x128xf32, #tpu.memory_space<vmem>>, %arg11: memref<2x8x128xbf16, #tpu.memory_space<vmem>>) attributes {dimension_semantics = [#tpu.dimension_semantics<parallel>], iteration_bounds = array<i64: 1>, scalar_prefetch = 0 : i64, scratch_operands = 0 : i64, tpu.core_type = #tpu.core_type<tc>, window_params = [{transform_indices = @transform_0, window_bounds = array<i64: 2, 8, 128>}, {pipeline_mode = #tpu.pipeline_mode<synchronous>, transform_indices = @transform_1, window_bounds = array<i64: 8, 8>}, {pipeline_mode = #tpu.pipeline_mode<synchronous>, transform_indices = @transform_2, window_bounds = array<i64: 128, 384>}, {pipeline_mode = #tpu.pipeline_mode<synchronous>, transform_indices = @transform_3, window_bounds = array<i64: 128, 128>}, {pipeline_mode = #tpu.pipeline_mode<synchronous>, transform_indices = @transform_4, window_bounds = array<i64: 1, 128>}, {pipeline_mode = #tpu.pipeline_mode<synchronous>, transform_indices = @transform_5, window_bounds = array<i64: 1, 128>}, {pipeline_mode = #tpu.pipeline_mode<synchronous>, transform_indices = @transform_6, window_bounds = array<i64: 128, 2048>}, {pipeline_mode = #tpu.pipeline_mode<synchronous>, transform_indices = @transform_7, window_bounds = array<i64: 2048, 128>}, {pipeline_mode = #tpu.pipeline_mode<synchronous>, transform_indices = @transform_8, window_bounds = array<i64: 1, 128>}, {pipeline_mode = #tpu.pipeline_mode<synchronous>, transform_indices = @transform_9, window_bounds = array<i64: 1, 128>}, {transform_indices = @transform_10, window_bounds = array<i64: 2, 8, 128>}]} {
    %c0 = arith.constant 0 : index
    %c0_0 = arith.constant 0 : index
    %c0_1 = arith.constant 0 : index
    %0 = vector.load %arg1[%c0, %c0_0, %c0_1] : memref<2x8x128xbf16, #tpu.memory_space<vmem>>, vector<2x8x128xbf16>
    %1 = arith.extf %0 : vector<2x8x128xbf16> to vector<2x8x128xf32>
    %2 = vector.shape_cast %1 : vector<2x8x128xf32> to vector<16x128xf32>
    %3 = arith.truncf %2 : vector<16x128xf32> to vector<16x128xbf16>
    %c0_2 = arith.constant 0 : index
    %c0_3 = arith.constant 0 : index
    %4 = vector.load %arg3[%c0_2, %c0_3] : memref<128x384xbf16, #tpu.memory_space<vmem>>, vector<128x384xbf16>
    %cst = arith.constant dense<0.000000e+00> : vector<16x384xf32>
    %5 = tpu.matmul %3, %4, %cst {dimension_numbers = #tpu.dot_dimension_numbers<[1], [0], [0], [1], [0, 0, 1, 1], [], []>} : vector<16x128xbf16>, vector<128x384xbf16>, vector<16x384xf32> -> vector<16x384xf32>
    %6 = vector.extract_strided_slice %5 {offsets = [0, 0], sizes = [16, 128], strides = [1, 1]} : vector<16x384xf32> to vector<16x128xf32>
    %cst_4 = arith.constant 1.250000e-01 : f32
    %7 = vector.broadcast %cst_4 : f32 to vector<16x128xf32>
    %8 = arith.mulf %6, %7 : vector<16x128xf32>
    %9 = vector.extract_strided_slice %5 {offsets = [0, 128], sizes = [16, 128], strides = [1, 1]} : vector<16x384xf32> to vector<16x128xf32>
    %10 = vector.extract_strided_slice %5 {offsets = [0, 256], sizes = [16, 128], strides = [1, 1]} : vector<16x384xf32> to vector<16x128xf32>
    %11 = vector.shape_cast %8 : vector<16x128xf32> to vector<2x8x2x64xf32>
    %12 = arith.truncf %11 : vector<2x8x2x64xf32> to vector<2x8x2x64xbf16>
    %13 = tpu.transpose %12, [0, 2, 1, 3] : vector<2x8x2x64xbf16> -> vector<2x2x8x64xbf16>
    %14 = vector.shape_cast %13 : vector<2x2x8x64xbf16> to vector<4x8x64xbf16>
    %15 = vector.shape_cast %9 : vector<16x128xf32> to vector<2x8x2x64xf32>
    %16 = arith.truncf %15 : vector<2x8x2x64xf32> to vector<2x8x2x64xbf16>
    %17 = tpu.transpose %16, [0, 2, 1, 3] : vector<2x8x2x64xbf16> -> vector<2x2x8x64xbf16>
    %18 = vector.shape_cast %17 : vector<2x2x8x64xbf16> to vector<4x8x64xbf16>
    %19 = vector.shape_cast %10 : vector<16x128xf32> to vector<2x8x2x64xf32>
    %20 = arith.truncf %19 : vector<2x8x2x64xf32> to vector<2x8x2x64xbf16>
    %21 = tpu.transpose %20, [0, 2, 1, 3] : vector<2x8x2x64xbf16> -> vector<2x2x8x64xbf16>
    %22 = vector.shape_cast %21 : vector<2x2x8x64xbf16> to vector<4x8x64xbf16>
    "tpu.trace_start"() <{level = 10 : i32, message = "bqd,bkd->bqk"}> : () -> ()
    %cst_5 = arith.constant dense<0.000000e+00> : vector<4x8x8xf32>
    %23 = tpu.matmul %14, %18, %cst_5 {dimension_numbers = #tpu.dot_dimension_numbers<[2], [2], [1], [1], [0, 0, 0, 1, 1, 1], [0], [0]>} : vector<4x8x64xbf16>, vector<4x8x64xbf16>, vector<4x8x8xf32> -> vector<4x8x8xf32>
    "tpu.trace_stop"() : () -> ()
    %c0_6 = arith.constant 0 : index
    %c0_7 = arith.constant 0 : index
    %24 = vector.load %arg2[%c0_6, %c0_7] : memref<8x8xf32, #tpu.memory_space<vmem>>, vector<8x8xf32>
    %25 = vector.shape_cast %24 : vector<8x8xf32> to vector<1x8x8xf32>
    %cst_8 = arith.constant 0.000000e+00 : f32
    %26 = vector.broadcast %cst_8 : f32 to vector<1x8x8xf32>
    %27 = arith.cmpf one, %25, %26 : vector<1x8x8xf32>
    %cst_9 = arith.constant -1.000000e+07 : f32
    %28 = vector.shape_cast %27 : vector<1x8x8xi1> to vector<1x8x8xi1>
    %29 = vector.broadcast %28 : vector<1x8x8xi1> to vector<4x8x8xi1>
    %30 = vector.broadcast %cst_9 : f32 to vector<4x8x8xf32>
    %31 = arith.select %29, %30, %23 : vector<4x8x8xi1>, vector<4x8x8xf32>
    %cst_10 = arith.constant dense<0xFF800000> : vector<4x8xf32>
    %32 = vector.multi_reduction <maximumf>, %31, %cst_10 [2] : vector<4x8x8xf32> to vector<4x8xf32>
    %33 = vector.shape_cast %32 : vector<4x8xf32> to vector<4x8x1xf32>
    %34 = vector.broadcast %33 : vector<4x8x1xf32> to vector<4x8x8xf32>
    %35 = arith.subf %31, %34 : vector<4x8x8xf32>
    %36 = math.exp %35 : vector<4x8x8xf32>
    %cst_11 = arith.constant dense<0.000000e+00> : vector<4x8xf32>
    %37 = vector.multi_reduction <add>, %36, %cst_11 [2] : vector<4x8x8xf32> to vector<4x8xf32>
    %38 = vector.shape_cast %37 : vector<4x8xf32> to vector<4x8x1xf32>
    %39 = tpu.reciprocal %38 {approx = true} : vector<4x8x1xf32> -> vector<4x8x1xf32>
    %40 = vector.broadcast %39 : vector<4x8x1xf32> to vector<4x8x8xf32>
    %41 = arith.mulf %36, %40 : vector<4x8x8xf32>
    %42 = arith.truncf %41 : vector<4x8x8xf32> to vector<4x8x8xbf16>
    "tpu.trace_start"() <{level = 10 : i32, message = "bqk,bkd->bqd"}> : () -> ()
    %cst_12 = arith.constant dense<0.000000e+00> : vector<4x8x64xf32>
    %43 = tpu.matmul %42, %22, %cst_12 {dimension_numbers = #tpu.dot_dimension_numbers<[2], [1], [1], [2], [0, 0, 0, 1, 1, 2], [0], [0]>} : vector<4x8x8xbf16>, vector<4x8x64xbf16>, vector<4x8x64xf32> -> vector<4x8x64xf32>
    "tpu.trace_stop"() : () -> ()
    %44 = vector.shape_cast %43 : vector<4x8x64xf32> to vector<2x2x8x64xf32>
    %45 = tpu.transpose %44, [0, 2, 1, 3] : vector<2x2x8x64xf32> -> vector<2x8x2x64xf32>
    %46 = vector.shape_cast %45 : vector<2x8x2x64xf32> to vector<16x128xf32>
    %47 = arith.truncf %46 : vector<16x128xf32> to vector<16x128xbf16>
    %c0_13 = arith.constant 0 : index
    %c0_14 = arith.constant 0 : index
    %48 = vector.load %arg4[%c0_13, %c0_14] : memref<128x128xbf16, #tpu.memory_space<vmem>>, vector<128x128xbf16>
    %cst_15 = arith.constant dense<0.000000e+00> : vector<16x128xf32>
    %49 = tpu.matmul %47, %48, %cst_15 {dimension_numbers = #tpu.dot_dimension_numbers<[1], [0], [0], [1], [0, 0, 1, 1], [], []>} : vector<16x128xbf16>, vector<128x128xbf16>, vector<16x128xf32> -> vector<16x128xf32>
    %50 = arith.addf %49, %2 : vector<16x128xf32>
    %c0_16 = arith.constant 0 : index
    %c0_17 = arith.constant 0 : index
    %51 = vector.load %arg5[%c0_16, %c0_17] : memref<1x128xf32, #tpu.memory_space<vmem>>, vector<1x128xf32>
    %52 = vector.shape_cast %51 : vector<1x128xf32> to vector<128xf32>
    %c0_18 = arith.constant 0 : index
    %c0_19 = arith.constant 0 : index
    %53 = vector.load %arg6[%c0_18, %c0_19] : memref<1x128xf32, #tpu.memory_space<vmem>>, vector<1x128xf32>
    %54 = vector.shape_cast %53 : vector<1x128xf32> to vector<128xf32>
    %cst_20 = arith.constant dense<0.000000e+00> : vector<16xf32>
    %55 = vector.multi_reduction <add>, %50, %cst_20 [1] : vector<16x128xf32> to vector<16xf32>
    %56 = vector.shape_cast %55 : vector<16xf32> to vector<16x1xf32>
    %cst_21 = arith.constant 1.280000e+02 : f32
    %57 = vector.broadcast %cst_21 : f32 to vector<16x1xf32>
    %58 = arith.divf %56, %57 : vector<16x1xf32>
    %59 = vector.broadcast %58 : vector<16x1xf32> to vector<16x128xf32>
    %60 = arith.subf %50, %59 : vector<16x128xf32>
    %61 = arith.mulf %60, %60 : vector<16x128xf32>
    %cst_22 = arith.constant dense<0.000000e+00> : vector<16xf32>
    %62 = vector.multi_reduction <add>, %61, %cst_22 [1] : vector<16x128xf32> to vector<16xf32>
    %63 = vector.shape_cast %62 : vector<16xf32> to vector<16x1xf32>
    %cst_23 = arith.constant 1.280000e+02 : f32
    %64 = vector.broadcast %cst_23 : f32 to vector<16x1xf32>
    %65 = arith.divf %63, %64 : vector<16x1xf32>
    %66 = vector.broadcast %58 : vector<16x1xf32> to vector<16x128xf32>
    %67 = arith.subf %50, %66 : vector<16x128xf32>
    %cst_24 = arith.constant 9.99999974E-6 : f32
    %68 = vector.broadcast %cst_24 : f32 to vector<16x1xf32>
    %69 = arith.addf %65, %68 : vector<16x1xf32>
    %70 = math.rsqrt %69 : vector<16x1xf32>
    %71 = vector.broadcast %70 : vector<16x1xf32> to vector<16x128xf32>
    %72 = arith.mulf %67, %71 : vector<16x128xf32>
    %73 = vector.shape_cast %52 : vector<128xf32> to vector<1x128xf32>
    %74 = vector.broadcast %73 : vector<1x128xf32> to vector<16x128xf32>
    %75 = arith.mulf %72, %74 : vector<16x128xf32>
    %76 = vector.shape_cast %54 : vector<128xf32> to vector<1x128xf32>
    %77 = vector.broadcast %76 : vector<1x128xf32> to vector<16x128xf32>
    %78 = arith.addf %75, %77 : vector<16x128xf32>
    %79 = arith.truncf %78 : vector<16x128xf32> to vector<16x128xbf16>
    %c0_25 = arith.constant 0 : index
    %c0_26 = arith.constant 0 : index
    %80 = vector.load %arg7[%c0_25, %c0_26] : memref<128x2048xbf16, #tpu.memory_space<vmem>>, vector<128x2048xbf16>
    %cst_27 = arith.constant dense<0.000000e+00> : vector<16x2048xf32>
    %81 = tpu.matmul %79, %80, %cst_27 {dimension_numbers = #tpu.dot_dimension_numbers<[1], [0], [0], [1], [0, 0, 1, 1], [], []>} : vector<16x128xbf16>, vector<128x2048xbf16>, vector<16x2048xf32> -> vector<16x2048xf32>
    %cst_28 = arith.constant 0.000000e+00 : f32
    %82 = vector.broadcast %cst_28 : f32 to vector<16x2048xf32>
    %83 = arith.maximumf %81, %82 : vector<16x2048xf32>
    %84 = arith.truncf %83 : vector<16x2048xf32> to vector<16x2048xbf16>
    %c0_29 = arith.constant 0 : index
    %c0_30 = arith.constant 0 : index
    %85 = vector.load %arg8[%c0_29, %c0_30] : memref<2048x128xbf16, #tpu.memory_space<vmem>>, vector<2048x128xbf16>
    %cst_31 = arith.constant dense<0.000000e+00> : vector<16x128xf32>
    %86 = tpu.matmul %84, %85, %cst_31 {dimension_numbers = #tpu.dot_dimension_numbers<[1], [0], [0], [1], [0, 0, 1, 1], [], []>} : vector<16x2048xbf16>, vector<2048x128xbf16>, vector<16x128xf32> -> vector<16x128xf32>
    %87 = arith.addf %86, %78 : vector<16x128xf32>
    %c0_32 = arith.constant 0 : index
    %c0_33 = arith.constant 0 : index
    %88 = vector.load %arg9[%c0_32, %c0_33] : memref<1x128xf32, #tpu.memory_space<vmem>>, vector<1x128xf32>
    %89 = vector.shape_cast %88 : vector<1x128xf32> to vector<128xf32>
    %c0_34 = arith.constant 0 : index
    %c0_35 = arith.constant 0 : index
    %90 = vector.load %arg10[%c0_34, %c0_35] : memref<1x128xf32, #tpu.memory_space<vmem>>, vector<1x128xf32>
    %91 = vector.shape_cast %90 : vector<1x128xf32> to vector<128xf32>
    %cst_36 = arith.constant dense<0.000000e+00> : vector<16xf32>
    %92 = vector.multi_reduction <add>, %87, %cst_36 [1] : vector<16x128xf32> to vector<16xf32>
    %93 = vector.shape_cast %92 : vector<16xf32> to vector<16x1xf32>
    %cst_37 = arith.constant 1.280000e+02 : f32
    %94 = vector.broadcast %cst_37 : f32 to vector<16x1xf32>
    %95 = arith.divf %93, %94 : vector<16x1xf32>
    %96 = vector.broadcast %95 : vector<16x1xf32> to vector<16x128xf32>
    %97 = arith.subf %87, %96 : vector<16x128xf32>
    %98 = arith.mulf %97, %97 : vector<16x128xf32>
    %cst_38 = arith.constant dense<0.000000e+00> : vector<16xf32>
    %99 = vector.multi_reduction <add>, %98, %cst_38 [1] : vector<16x128xf32> to vector<16xf32>
    %100 = vector.shape_cast %99 : vector<16xf32> to vector<16x1xf32>
    %cst_39 = arith.constant 1.280000e+02 : f32
    %101 = vector.broadcast %cst_39 : f32 to vector<16x1xf32>
    %102 = arith.divf %100, %101 : vector<16x1xf32>
    %103 = vector.broadcast %95 : vector<16x1xf32> to vector<16x128xf32>
    %104 = arith.subf %87, %103 : vector<16x128xf32>
    %cst_40 = arith.constant 9.99999974E-6 : f32
    %105 = vector.broadcast %cst_40 : f32 to vector<16x1xf32>
    %106 = arith.addf %102, %105 : vector<16x1xf32>
    %107 = math.rsqrt %106 : vector<16x1xf32>
    %108 = vector.broadcast %107 : vector<16x1xf32> to vector<16x128xf32>
    %109 = arith.mulf %104, %108 : vector<16x128xf32>
    %110 = vector.shape_cast %89 : vector<128xf32> to vector<1x128xf32>
    %111 = vector.broadcast %110 : vector<1x128xf32> to vector<16x128xf32>
    %112 = arith.mulf %109, %111 : vector<16x128xf32>
    %113 = vector.shape_cast %91 : vector<128xf32> to vector<1x128xf32>
    %114 = vector.broadcast %113 : vector<1x128xf32> to vector<16x128xf32>
    %115 = arith.addf %112, %114 : vector<16x128xf32>
    %116 = vector.shape_cast %115 : vector<16x128xf32> to vector<2x8x128xf32>
    %117 = arith.truncf %116 : vector<2x8x128xf32> to vector<2x8x128xbf16>
    %c0_41 = arith.constant 0 : index
    %c0_42 = arith.constant 0 : index
    %c0_43 = arith.constant 0 : index
    %118 = vector.load %arg11[%c0_41, %c0_42, %c0_43] : memref<2x8x128xbf16, #tpu.memory_space<vmem>>, vector<2x8x128xbf16>
    tpu.vector_store %arg11[%c0_41, %c0_42, %c0_43], %117 {strides = array<i32>} : memref<2x8x128xbf16, #tpu.memory_space<vmem>>, vector<2x8x128xbf16>,
    return
  }
  func.func @transform_0(%arg0: i32) -> (i32, i32, i32) {
    %c0_i32 = arith.constant 0 : i32
    %c0_i32_0 = arith.constant 0 : i32
    %c0_i32_1 = arith.constant 0 : i32
    return %arg0, %c0_i32, %c0_i32_0 : i32, i32, i32
  }
  func.func @transform_1(%arg0: i32) -> (i32, i32) {
    %c0_i32 = arith.constant 0 : i32
    %c0_i32_0 = arith.constant 0 : i32
    %c0_i32_1 = arith.constant 0 : i32
    return %c0_i32, %c0_i32_0 : i32, i32
  }
  func.func @transform_2(%arg0: i32) -> (i32, i32) {
    %c0_i32 = arith.constant 0 : i32
    %c0_i32_0 = arith.constant 0 : i32
    %c0_i32_1 = arith.constant 0 : i32
    return %c0_i32, %c0_i32_0 : i32, i32
  }
  func.func @transform_3(%arg0: i32) -> (i32, i32) {
    %c0_i32 = arith.constant 0 : i32
    %c0_i32_0 = arith.constant 0 : i32
    %c0_i32_1 = arith.constant 0 : i32
    return %c0_i32, %c0_i32_0 : i32, i32
  }
  func.func @transform_4(%arg0: i32) -> (i32, i32) {
    %c0_i32 = arith.constant 0 : i32
    %c0_i32_0 = arith.constant 0 : i32
    %c0_i32_1 = arith.constant 0 : i32
    return %c0_i32, %c0_i32_0 : i32, i32
  }
  func.func @transform_5(%arg0: i32) -> (i32, i32) {
    %c0_i32 = arith.constant 0 : i32
    %c0_i32_0 = arith.constant 0 : i32
    %c0_i32_1 = arith.constant 0 : i32
    return %c0_i32, %c0_i32_0 : i32, i32
  }
  func.func @transform_6(%arg0: i32) -> (i32, i32) {
    %c0_i32 = arith.constant 0 : i32
    %c0_i32_0 = arith.constant 0 : i32
    %c0_i32_1 = arith.constant 0 : i32
    return %c0_i32, %c0_i32_0 : i32, i32
  }
  func.func @transform_7(%arg0: i32) -> (i32, i32) {
    %c0_i32 = arith.constant 0 : i32
    %c0_i32_0 = arith.constant 0 : i32
    %c0_i32_1 = arith.constant 0 : i32
    return %c0_i32, %c0_i32_0 : i32, i32
  }
  func.func @transform_8(%arg0: i32) -> (i32, i32) {
    %c0_i32 = arith.constant 0 : i32
    %c0_i32_0 = arith.constant 0 : i32
    %c0_i32_1 = arith.constant 0 : i32
    return %c0_i32, %c0_i32_0 : i32, i32
  }
  func.func @transform_9(%arg0: i32) -> (i32, i32) {
    %c0_i32 = arith.constant 0 : i32
    %c0_i32_0 = arith.constant 0 : i32
    %c0_i32_1 = arith.constant 0 : i32
    return %c0_i32, %c0_i32_0 : i32, i32
  }
  func.func @transform_10(%arg0: i32) -> (i32, i32, i32) {
    %c0_i32 = arith.constant 0 : i32
    %c0_i32_0 = arith.constant 0 : i32
    %c0_i32_1 = arith.constant 0 : i32
    return %arg0, %c0_i32, %c0_i32_0 : i32, i32, i32
  }
}

</mosaic_0001>

<llo_original>
// kernel: tpu_custom_call.1
$region0: #{tpu_custom_call.1}
  #allocation0 [shape = 'u32[]', space=smem, size = 0x4, offset = 0x4, fixed_abs, tag = 'smem constant byte address 0x4 - core index']
  #allocation1 [shape = 'u32[72,128]{1,0:T(1,128)}', space=vmem, size = 0x9000, scoped, tag = 'internal scratch']
  %s0 = inlined_call_operand.hbm [shape: bf16[2,8,128], index: 0, kind: input, shape index: {}]
  %s1 = inlined_call_operand.hbm [shape: f32[8,8], index: 1, kind: input, shape index: {}]
  %s2 = inlined_call_operand.hbm [shape: bf16[128,384], index: 2, kind: input, shape index: {}]
  %s3 = inlined_call_operand.hbm [shape: bf16[128,128], index: 3, kind: input, shape index: {}]
  %s4 = inlined_call_operand.vmem [shape: f32[1,128], index: 4, kind: input, shape index: {}]
  %s5 = inlined_call_operand.vmem [shape: f32[1,128], index: 5, kind: input, shape index: {}]
  %s6 = inlined_call_operand.hbm [shape: bf16[128,2048], index: 6, kind: input, shape index: {}]
  %s7 = inlined_call_operand.hbm [shape: bf16[2048,128], index: 7, kind: input, shape index: {}]
  %s8 = inlined_call_operand.vmem [shape: f32[1,128], index: 8, kind: input, shape index: {}]
  %s9 = inlined_call_operand.vmem [shape: f32[1,128], index: 9, kind: input, shape index: {}]
  %s10 = inlined_call_operand.hbm [shape: bf16[2,8,128], index: 10, kind: output, shape index: {}]
  %s11 = sld [smem:[#allocation0]]
  $region74: #{tpu_custom_call.1} parent=0
    _
  %s13 = ssub.s32 1, %s11
  %s14 = scalar_select 0, %s13, %s11
  $region1: #{tpu_custom_call.1} parent=0
    #allocation2 [shape = 'u8[4096]{0}', space=vmem, size = 0x1000, scoped, tag = 'input window, operand 0, single buffered']
    #allocation3 [shape = 's32[1]{0}', space=sflag, size = 0x4, scoped, tag = 'scoped memory for tpu_custom_call.1']
    #allocation4 [shape = 's32[1]{0}', space=sflag, size = 0x4, scoped, tag = 'scoped memory for tpu_custom_call.1']
    #allocation5 [shape = 'u8[4096]{0}', space=vmem, size = 0x1000, scoped, tag = 'input window, operand 1, single buffered']
    #allocation6 [shape = 's32[1]{0}', space=sflag, size = 0x4, scoped, tag = 'scoped memory for tpu_custom_call.1']
    #allocation7 [shape = 'u8[98304]{0}', space=vmem, size = 0x18000, scoped, tag = 'input window, operand 2, single buffered']
    #allocation8 [shape = 'u8[32768]{0}', space=vmem, size = 0x8000, scoped, tag = 'input window, operand 3, single buffered']
    #allocation9 [shape = 's32[1]{0}', space=sflag, size = 0x4, scoped, tag = 'scoped memory for tpu_custom_call.1']
    #allocation10 [shape = 'u8[524288]{0}', space=vmem, size = 0x80000, scoped, tag = 'input window, operand 6, single buffered']
    #allocation11 [shape = 'u8[524288]{0}', space=vmem, size = 0x80000, scoped, tag = 'input window, operand 7, single buffered']
    #allocation12 [shape = 's32[1]{0}', space=sflag, size = 0x4, scoped, tag = 'scoped memory for tpu_custom_call.1']
    #allocation13 [shape = 'u8[4096]{0}', space=vmem, size = 0x1000, scoped, tag = 'output window, operand 0, single buffered']
    %15 = vsyncpa [#allocation3], 0
    %16 = vsyncpa [#allocation6], 0
    %17 = vsyncpa [#allocation9], 0
    %18 = vsyncpa [#allocation12], 0
    %19 = vsyncpa [#allocation4], 0
    // Predicated region
    $region2: #{tpu_custom_call.1} parent=1 // pred_check
      _
    $region3: #{tpu_custom_call.1} parent=1 // pred_check_branch
      %21 = sbr.rel (0) target = $region5
    $region4: #{tpu_custom_call.1} parent=1 // pred_region
      %23 = vsyncadd [#allocation3], 0
      %s24 = sshll.u32 %s0, 4
      %s25 = int_to_ptr.hbm [resolvable:$true] %s24
      %s26 = sshll.u32 [#allocation2], 4
      %s27 = int_to_ptr.vmem [resolvable:$true] %s26
      %32 = dma.hbm_to_vmem [thread:$0]  %s25, 128, %s27, [#allocation3], 64, 64, 4
    $region5: #{tpu_custom_call.1} parent=1 // pred_fallthru
      _
    // Predicated region
    $region6: #{tpu_custom_call.1} parent=1 // pred_check
      _
    $region7: #{tpu_custom_call.1} parent=1 // pred_check_branch
      %34 = sbr.rel (0) target = $region9
    $region8: #{tpu_custom_call.1} parent=1 // pred_region
      %36 = vsyncadd [#allocation6], 0
      %s38 = sshll.u32 %s1, 4
      %s39 = int_to_ptr.hbm [resolvable:$true] %s38
      %s40 = sshll.u32 [#allocation5], 4
      %s41 = int_to_ptr.vmem [resolvable:$true] %s40
      %43 = dma.hbm_to_vmem [thread:$0]  %s39, 128, %s41, [#allocation6]
    $region9: #{tpu_custom_call.1} parent=1 // pred_fallthru
      _
    // Predicated region
    $region10: #{tpu_custom_call.1} parent=1 // pred_check
      _
    $region11: #{tpu_custom_call.1} parent=1 // pred_check_branch
      %45 = sbr.rel (0) target = $region13
    $region12: #{tpu_custom_call.1} parent=1 // pred_region
      %47 = vsyncadd [#allocation6], 0
      %s48 = sshll.u32 %s2, 4
      %s49 = int_to_ptr.hbm [resolvable:$true] %s48
      %s50 = sshll.u32 [#allocation7], 4
      %s51 = int_to_ptr.vmem [resolvable:$true] %s50
      %56 = dma.hbm_to_vmem [thread:$0]  %s49, 3072, %s51, [#allocation6], 192, 192, 12
    $region13: #{tpu_custom_call.1} parent=1 // pred_fallthru
      _
    // Predicated region
    $region14: #{tpu_custom_call.1} parent=1 // pred_check
      _
    $region15: #{tpu_custom_call.1} parent=1 // pred_check_branch
      %58 = sbr.rel (0) target = $region17
    $region16: #{tpu_custom_call.1} parent=1 // pred_region
      %60 = vsyncadd [#allocation9], 0
      %s61 = sshll.u32 %s3, 4
      %s62 = int_to_ptr.hbm [resolvable:$true] %s61
      %s63 = sshll.u32 [#allocation8], 4
      %s64 = int_to_ptr.vmem [resolvable:$true] %s63
      %69 = dma.hbm_to_vmem [thread:$0]  %s62, 1024, %s64, [#allocation9], 64, 64, 4
    $region17: #{tpu_custom_call.1} parent=1 // pred_fallthru
      _
    // Predicated region
    $region18: #{tpu_custom_call.1} parent=1 // pred_check
      _
    $region19: #{tpu_custom_call.1} parent=1 // pred_check_branch
      %71 = sbr.rel (0) target = $region21
    $region20: #{tpu_custom_call.1} parent=1 // pred_region
      _
    $region21: #{tpu_custom_call.1} parent=1 // pred_fallthru
      _
    // Predicated region
    $region22: #{tpu_custom_call.1} parent=1 // pred_check
      _
    $region23: #{tpu_custom_call.1} parent=1 // pred_check_branch
      %73 = sbr.rel (0) target = $region25
    $region24: #{tpu_custom_call.1} parent=1 // pred_region
      _
    $region25: #{tpu_custom_call.1} parent=1 // pred_fallthru
      _
    // Predicated region
    $region26: #{tpu_custom_call.1} parent=1 // pred_check
      _
    $region27: #{tpu_custom_call.1} parent=1 // pred_check_branch
      %75 = sbr.rel (0) target = $region29
    $region28: #{tpu_custom_call.1} parent=1 // pred_region
      %77 = vsyncadd [#allocation9], 0
      %s78 = sshll.u32 %s6, 4
      %s79 = int_to_ptr.hbm [resolvable:$true] %s78
      %s80 = sshll.u32 [#allocation10], 4
      %s81 = int_to_ptr.vmem [resolvable:$true] %s80
      %86 = dma.hbm_to_vmem [thread:$0]  %s79, 16384, %s81, [#allocation9], 1024, 1024, 64
    $region29: #{tpu_custom_call.1} parent=1 // pred_fallthru
      _
    // Predicated region
    $region30: #{tpu_custom_call.1} parent=1 // pred_check
      _
    $region31: #{tpu_custom_call.1} parent=1 // pred_check_branch
      %88 = sbr.rel (0) target = $region33
    $region32: #{tpu_custom_call.1} parent=1 // pred_region
      %90 = vsyncadd [#allocation12], 0
      %s91 = sshll.u32 %s7, 4
      %s92 = int_to_ptr.hbm [resolvable:$true] %s91
      %s93 = sshll.u32 [#allocation11], 4
      %s94 = int_to_ptr.vmem [resolvable:$true] %s93
      %99 = dma.hbm_to_vmem [thread:$0]  %s92, 16384, %s94, [#allocation12], 64, 64, 4
    $region33: #{tpu_custom_call.1} parent=1 // pred_fallthru
      _
    // Predicated region
    $region34: #{tpu_custom_call.1} parent=1 // pred_check
      _
    $region35: #{tpu_custom_call.1} parent=1 // pred_check_branch
      %101 = sbr.rel (0) target = $region37
    $region36: #{tpu_custom_call.1} parent=1 // pred_region
      _
    $region37: #{tpu_custom_call.1} parent=1 // pred_fallthru
      _
    // Predicated region
    $region38: #{tpu_custom_call.1} parent=1 // pred_check
      _
    $region39: #{tpu_custom_call.1} parent=1 // pred_check_branch
      %103 = sbr.rel (0) target = $region41
    $region40: #{tpu_custom_call.1} parent=1 // pred_region
      _
    $region41: #{tpu_custom_call.1} parent=1 // pred_fallthru
      _
    // Predicated region
    $region42: #{tpu_custom_call.1} parent=1 // pred_check
      _
    $region43: #{tpu_custom_call.1} parent=1 // pred_check_branch
      %105 = sbr.rel (0) target = $region45
    $region44: #{tpu_custom_call.1} parent=1 // pred_region
      %107 = dma.done [#allocation3], 128
    $region45: #{tpu_custom_call.1} parent=1 // pred_fallthru
      _
    // Predicated region
    $region46: #{tpu_custom_call.1} parent=1 // pred_check
      _
    $region47: #{tpu_custom_call.1} parent=1 // pred_check_branch
      %109 = sbr.rel (0) target = $region49
    $region48: #{tpu_custom_call.1} parent=1 // pred_region
      %111 = dma.done [#allocation6], 128
    $region49: #{tpu_custom_call.1} parent=1 // pred_fallthru
      _
    // Predicated region
    $region50: #{tpu_custom_call.1} parent=1 // pred_check
      _
    $region51: #{tpu_custom_call.1} parent=1 // pred_check_branch
      %113 = sbr.rel (0) target = $region53
    $region52: #{tpu_custom_call.1} parent=1 // pred_region
      %115 = dma.done [#allocation6], 3072
    $region53: #{tpu_custom_call.1} parent=1 // pred_fallthru
      _
    // Predicated region
    $region54: #{tpu_custom_call.1} parent=1 // pred_check
      _
    $region55: #{tpu_custom_call.1} parent=1 // pred_check_branch
      %117 = sbr.rel (0) target = $region57
    $region56: #{tpu_custom_call.1} parent=1 // pred_region
      %119 = dma.done [#allocation9], 1024
    $region57: #{tpu_custom_call.1} parent=1 // pred_fallthru
      _
    // Predicated region
    $region58: #{tpu_custom_call.1} parent=1 // pred_check
      _
    $region59: #{tpu_custom_call.1} parent=1 // pred_check_branch
      %121 = sbr.rel (0) target = $region61
    $region60: #{tpu_custom_call.1} parent=1 // pred_region
      %123 = dma.done [#allocation9], 16384
    $region61: #{tpu_custom_call.1} parent=1 // pred_fallthru
      _
    // Predicated region
    $region62: #{tpu_custom_call.1} parent=1 // pred_check
      _
    $region63: #{tpu_custom_call.1} parent=1 // pred_check_branch
      %125 = sbr.rel (0) target = $region65
    $region64: #{tpu_custom_call.1} parent=1 // pred_region
      %127 = dma.done [#allocation12], 16384
    $region65: #{tpu_custom_call.1} parent=1 // pred_fallthru
      _
    %v129 = vld [vmem:[#allocation2] sm:$0xf]
    %v130 = vld [vmem:[#allocation2 + $0x4] sm:$0xf]
    %v131 = vunpack.c.l.bf16 %v129
    %v132 = vunpack.c.l.bf16 %v130
    %v133 = vpack.c.bf16 %v132, %v131
    %v134 = vld [vmem:[#allocation7] sm:$0xff]
    %v135 = vld [vmem:[#allocation7 + $0x8] sm:$0xf]
    %v136 = vld [vmem:[#allocation7 + $0xc] sm:$0xff]
    %v137 = vld [vmem:[#allocation7 + $0x14] sm:$0xf]
    %v138 = vld [vmem:[#allocation7 + $0x18] sm:$0xff]
    %v139 = vld [vmem:[#allocation7 + $0x20] sm:$0xf]
    %v140 = vld [vmem:[#allocation7 + $0x24] sm:$0xff]
    %v141 = vld [vmem:[#allocation7 + $0x2c] sm:$0xf]
    %v142 = vld [vmem:[#allocation7 + $0x30] sm:$0xff]
    %v143 = vld [vmem:[#allocation7 + $0x38] sm:$0xf]
    %v144 = vld [vmem:[#allocation7 + $0x3c] sm:$0xff]
    %v145 = vld [vmem:[#allocation7 + $0x44] sm:$0xf]
    %v146 = vld [vmem:[#allocation7 + $0x48] sm:$0xff]
    %v147 = vld [vmem:[#allocation7 + $0x50] sm:$0xf]
    %v148 = vld [vmem:[#allocation7 + $0x54] sm:$0xff]
    %v149 = vld [vmem:[#allocation7 + $0x5c] sm:$0xf]
    %v150 = vld [vmem:[#allocation7 + $0x60] sm:$0xff]
    %v151 = vld [vmem:[#allocation7 + $0x68] sm:$0xf]
    %v152 = vld [vmem:[#allocation7 + $0x6c] sm:$0xff]
    %v153 = vld [vmem:[#allocation7 + $0x74] sm:$0xf]
    %v154 = vld [vmem:[#allocation7 + $0x78] sm:$0xff]
    %v155 = vld [vmem:[#allocation7 + $0x80] sm:$0xf]
    %v156 = vld [vmem:[#allocation7 + $0x84] sm:$0xff]
    %v157 = vld [vmem:[#allocation7 + $0x8c] sm:$0xf]
    %v158 = vld [vmem:[#allocation7 + $0x90] sm:$0xff]
    %v159 = vld [vmem:[#allocation7 + $0x98] sm:$0xf]
    %v160 = vld [vmem:[#allocation7 + $0x9c] sm:$0xff]
    %v161 = vld [vmem:[#allocation7 + $0xa4] sm:$0xf]
    %v162 = vld [vmem:[#allocation7 + $0xa8] sm:$0xff]
    %v163 = vld [vmem:[#allocation7 + $0xb0] sm:$0xf]
    %v164 = vld [vmem:[#allocation7 + $0xb4] sm:$0xff]
    %v165 = vld [vmem:[#allocation7 + $0xbc] sm:$0xf]
    %v198 = vunpack.c.l.b16 %v134
    %v199 = vunpack.c.h.b16 %v134
    %v200 = vunpack.c.l.b16 %v135
    %v201 = vunpack.c.l.b16 %v136
    %v202 = vunpack.c.h.b16 %v136
    %v203 = vunpack.c.l.b16 %v137
    %v204 = vunpack.c.l.b16 %v138
    %v205 = vunpack.c.h.b16 %v138
    %v206 = vunpack.c.l.b16 %v139
    %v207 = vunpack.c.l.b16 %v140
    %v208 = vunpack.c.h.b16 %v140
    %v209 = vunpack.c.l.b16 %v141
    %v210 = vunpack.c.l.b16 %v142
    %v211 = vunpack.c.h.b16 %v142
    %v212 = vunpack.c.l.b16 %v143
    %v213 = vunpack.c.l.b16 %v144
    %v214 = vunpack.c.h.b16 %v144
    %v215 = vunpack.c.l.b16 %v145
    %v216 = vunpack.c.l.b16 %v146
    %v217 = vunpack.c.h.b16 %v146
    %v218 = vunpack.c.l.b16 %v147
    %v219 = vunpack.c.l.b16 %v148
    %v220 = vunpack.c.h.b16 %v148
    %v221 = vunpack.c.l.b16 %v149
    %v222 = vunpack.c.l.b16 %v150
    %v223 = vunpack.c.h.b16 %v150
    %v224 = vunpack.c.l.b16 %v151
    %v225 = vunpack.c.l.b16 %v152
    %v226 = vunpack.c.h.b16 %v152
    %v227 = vunpack.c.l.b16 %v153
    %v228 = vunpack.c.l.b16 %v154
    %v229 = vunpack.c.h.b16 %v154
    %v230 = vunpack.c.l.b16 %v155
    %v231 = vunpack.c.l.b16 %v156
    %v232 = vunpack.c.h.b16 %v156
    %v233 = vunpack.c.l.b16 %v157
    %v234 = vunpack.c.l.b16 %v158
    %v235 = vunpack.c.h.b16 %v158
    %v236 = vunpack.c.l.b16 %v159
    %v237 = vunpack.c.l.b16 %v160
    %v238 = vunpack.c.h.b16 %v160
    %v239 = vunpack.c.l.b16 %v161
    %v240 = vunpack.c.l.b16 %v162
    %v241 = vunpack.c.h.b16 %v162
    %v242 = vunpack.c.l.b16 %v163
    %v243 = vunpack.c.l.b16 %v164
    %v244 = vunpack.c.h.b16 %v164
    %v245 = vunpack.c.l.b16 %v165
    %v246 = vpack.c.b16 %v201, %v198
    %v247 = vpack.c.b16 %v202, %v199
    %v248 = vpack.c.b16 %v203, %v200
    %v249 = vpack.c.b16 %v207, %v204
    %v250 = vpack.c.b16 %v208, %v205
    %v251 = vpack.c.b16 %v209, %v206
    %v252 = vpack.c.b16 %v213, %v210
    %v253 = vpack.c.b16 %v214, %v211
    %v254 = vpack.c.b16 %v215, %v212
    %v255 = vpack.c.b16 %v219, %v216
    %v256 = vpack.c.b16 %v220, %v217
    %v257 = vpack.c.b16 %v221, %v218
    %v258 = vpack.c.b16 %v225, %v222
    %v259 = vpack.c.b16 %v226, %v223
    %v260 = vpack.c.b16 %v227, %v224
    %v261 = vpack.c.b16 %v231, %v228
    %v262 = vpack.c.b16 %v232, %v229
    %v263 = vpack.c.b16 %v233, %v230
    %v264 = vpack.c.b16 %v237, %v234
    %v265 = vpack.c.b16 %v238, %v235
    %v266 = vpack.c.b16 %v239, %v236
    %v267 = vpack.c.b16 %v243, %v240
    %v268 = vpack.c.b16 %v244, %v241
    %v269 = vpack.c.b16 %v245, %v242
    %294 = vmatpush.bf16.msra.mxu0 %v267
    %295 = vmatpush.bf16.msra.mxu0 %v264
    %296 = vmatpush.bf16.msra.mxu0 %v261
    %297 = vmatpush.bf16.msra.mxu0 %v258
    %298 = vmatpush.bf16.msra.mxu0 %v255
    %299 = vmatpush.bf16.msra.mxu0 %v252
    %300 = vmatpush.bf16.msra.mxu0 %v249
    %301 = vmatpush.bf16.msra.mxu0 %v246
    %302 = vmatmul.bf16.gmra.mxu0 %v133
    %v303 = vpop.f32.mrf.mxu0
    %v304 = vadd.f32 0.0, %v303
    %v305 = vpop.f32.mrf.mxu0
    %v306 = vadd.f32 0.0, %v305
    %307 = vdwg.mxu0
    %308 = vmatpush.bf16.msra.mxu0 %v268
    %309 = vmatpush.bf16.msra.mxu0 %v265
    %310 = vmatpush.bf16.msra.mxu0 %v262
    %311 = vmatpush.bf16.msra.mxu0 %v259
    %312 = vmatpush.bf16.msra.mxu0 %v256
    %313 = vmatpush.bf16.msra.mxu0 %v253
    %314 = vmatpush.bf16.msra.mxu0 %v250
    %315 = vmatpush.bf16.msra.mxu0 %v247
    %316 = vmatmul.bf16.gmra.mxu0 %v133
    %v317 = vpop.f32.mrf.mxu0
    %v318 = vadd.f32 0.0, %v317
    %v319 = vpop.f32.mrf.mxu0
    %v320 = vadd.f32 0.0, %v319
    %321 = vdwg.mxu0
    %322 = vmatpush.bf16.msra.mxu0 %v269
    %323 = vmatpush.bf16.msra.mxu0 %v266
    %324 = vmatpush.bf16.msra.mxu0 %v263
    %325 = vmatpush.bf16.msra.mxu0 %v260
    %326 = vmatpush.bf16.msra.mxu0 %v257
    %327 = vmatpush.bf16.msra.mxu0 %v254
    %328 = vmatpush.bf16.msra.mxu0 %v251
    %329 = vmatpush.bf16.msra.mxu0 %v248
    %330 = vmatmul.bf16.gmra.mxu0 %v133
    %v331 = vpop.f32.mrf.mxu0
    %v332 = vadd.f32 0.0, %v331
    %v333 = vpop.f32.mrf.mxu0
    %v334 = vadd.f32 0.0, %v333
    %335 = vdwg.mxu0
    %v336 = vmul.f32 %v304, 0.125
    %v337 = vmul.f32 %v306, 0.125
    %340 = vrot.lane.b32.xlu0 %v336, 64
    %v341 = vpop.permute.xlu0 %340
    %342 = vrot.lane.b32.xlu0 %v337, 64
    %v343 = vpop.permute.xlu0 %342
    %v346 = vrot.slane %v336, 4
    %vm347 = vcmask 1047556
    %v348 = vsel %vm347, 0.0, %v346
    %v350 = vunpack.c.l.s4 1983009808
    %v351 = vunpack.c.0.s8 %v350
    %v352 = vperm.slane %v336, %v351
    %v354 = vunpack.c.l.s4 1983009808
    %v355 = vunpack.c.0.s8 %v354
    %v356 = vperm.slane %v348, %v355
    %v357 = vrot.slane %v341, 4
    %v358 = vsel %vm347, 0.0, %v357
    %v360 = vunpack.c.l.s4 1983009808
    %v361 = vunpack.c.0.s8 %v360
    %v362 = vperm.slane %v341, %v361
    %v364 = vunpack.c.l.s4 1983009808
    %v365 = vunpack.c.0.s8 %v364
    %v366 = vperm.slane %v358, %v365
    %v367 = vrot.slane %v362, 4
    %v368 = vsel %vm347, %v367, %v352
    %v369 = vrot.slane %v352, 4
    %v370 = vsel %vm347, %v362, %v369
    %v372 = vunpack.c.l.s4 1934713408
    %v373 = vunpack.c.0.s8 %v372
    %v374 = vperm.slane %v368, %v373
    %v376 = vunpack.c.l.s4 1934713408
    %v377 = vunpack.c.0.s8 %v376
    %v378 = vperm.slane %v370, %v377
    %v379 = vrot.slane %v366, 4
    %v380 = vsel %vm347, %v379, %v356
    %v381 = vrot.slane %v356, 4
    %v382 = vsel %vm347, %v366, %v381
    %v384 = vunpack.c.l.s4 1934713408
    %v385 = vunpack.c.0.s8 %v384
    %v386 = vperm.slane %v380, %v385
    %v388 = vunpack.c.l.s4 1934713408
    %v389 = vunpack.c.0.s8 %v388
    %v390 = vperm.slane %v382, %v389
    %v391 = vrot.slane %v374, 4
    %v392 = vsel %vm347, 0.0, %v391
    %v393 = vrot.slane %v378, 4
    %v394 = vsel %vm347, 0.0, %v393
    %v395 = vrot.slane %v386, 4
    %v396 = vsel %vm347, 0.0, %v395
    %v397 = vrot.slane %v390, 4
    %v398 = vsel %vm347, 0.0, %v397
    %v399 = vrot.slane %v337, 4
    %v400 = vsel %vm347, 0.0, %v399
    %v402 = vunpack.c.l.s4 1983009808
    %v403 = vunpack.c.0.s8 %v402
    %v404 = vperm.slane %v337, %v403
    %v406 = vunpack.c.l.s4 1983009808
    %v407 = vunpack.c.0.s8 %v406
    %v408 = vperm.slane %v400, %v407
    %v409 = vrot.slane %v343, 4
    %v410 = vsel %vm347, 0.0, %v409
    %v412 = vunpack.c.l.s4 1983009808
    %v413 = vunpack.c.0.s8 %v412
    %v414 = vperm.slane %v343, %v413
    %v416 = vunpack.c.l.s4 1983009808
    %v417 = vunpack.c.0.s8 %v416
    %v418 = vperm.slane %v410, %v417
    %v419 = vrot.slane %v414, 4
    %v420 = vsel %vm347, %v419, %v404
    %v421 = vrot.slane %v404, 4
    %v422 = vsel %vm347, %v414, %v421
    %v424 = vunpack.c.l.s4 1934713408
    %v425 = vunpack.c.0.s8 %v424
    %v426 = vperm.slane %v420, %v425
    %v428 = vunpack.c.l.s4 1934713408
    %v429 = vunpack.c.0.s8 %v428
    %v430 = vperm.slane %v422, %v429
    %v431 = vrot.slane %v418, 4
    %v432 = vsel %vm347, %v431, %v408
    %v433 = vrot.slane %v408, 4
    %v434 = vsel %vm347, %v418, %v433
    %v436 = vunpack.c.l.s4 1934713408
    %v437 = vunpack.c.0.s8 %v436
    %v438 = vperm.slane %v432, %v437
    %v440 = vunpack.c.l.s4 1934713408
    %v441 = vunpack.c.0.s8 %v440
    %v442 = vperm.slane %v434, %v441
    %v443 = vrot.slane %v426, 4
    %v444 = vsel %vm347, 0.0, %v443
    %v445 = vrot.slane %v430, 4
    %v446 = vsel %vm347, 0.0, %v445
    %v447 = vrot.slane %v438, 4
    %v448 = vsel %vm347, 0.0, %v447
    %v449 = vrot.slane %v442, 4
    %v450 = vsel %vm347, 0.0, %v449
    %v451 = vpack.c.bf16 %v374, %v374
    %v452 = vpack.c.bf16 %v392, %v392
    %v453 = vpack.c.bf16 %v378, %v378
    %v454 = vpack.c.bf16 %v394, %v394
    %v455 = vpack.c.bf16 %v386, %v386
    %v456 = vpack.c.bf16 %v396, %v396
    %v457 = vpack.c.bf16 %v390, %v390
    %v458 = vpack.c.bf16 %v398, %v398
    %v459 = vpack.c.bf16 %v426, %v426
    %v460 = vpack.c.bf16 %v444, %v444
    %v461 = vpack.c.bf16 %v430, %v430
    %v462 = vpack.c.bf16 %v446, %v446
    %v463 = vpack.c.bf16 %v438, %v438
    %v464 = vpack.c.bf16 %v448, %v448
    %v465 = vpack.c.bf16 %v442, %v442
    %v466 = vpack.c.bf16 %v450, %v450
    %v467 = vrot.slane %v455, 4
    %vm468 = vcmask 1047556
    %v469 = vsel %vm468, %v467, %v451
    %v471 = vunpack.c.l.s4 1983009808
    %v472 = vunpack.c.0.s8 %v471
    %v473 = vperm.slane %v469, %v472
    %v474 = vrot.slane %v457, 4
    %v475 = vsel %vm468, %v474, %v453
    %v477 = vunpack.c.l.s4 1983009808
    %v478 = vunpack.c.0.s8 %v477
    %v479 = vperm.slane %v475, %v478
    %v480 = vrot.slane %v479, 4
    %v481 = vsel %vm468, %v480, %v473
    %v483 = vunpack.c.l.s4 1934713408
    %v484 = vunpack.c.0.s8 %v483
    %v485 = vperm.slane %v481, %v484
    %v486 = vrot.slane %v456, 4
    %v487 = vsel %vm468, %v486, %v452
    %v489 = vunpack.c.l.s4 1983009808
    %v490 = vunpack.c.0.s8 %v489
    %v491 = vperm.slane %v487, %v490
    %v492 = vrot.slane %v458, 4
    %v493 = vsel %vm468, %v492, %v454
    %v495 = vunpack.c.l.s4 1983009808
    %v496 = vunpack.c.0.s8 %v495
    %v497 = vperm.slane %v493, %v496
    %v498 = vrot.slane %v497, 4
    %v499 = vsel %vm468, %v498, %v491
    %v501 = vunpack.c.l.s4 1934713408
    %v502 = vunpack.c.0.s8 %v501
    %v503 = vperm.slane %v499, %v502
    %v504 = vrot.slane %v463, 4
    %v505 = vsel %vm468, %v504, %v459
    %v507 = vunpack.c.l.s4 1983009808
    %v508 = vunpack.c.0.s8 %v507
    %v509 = vperm.slane %v505, %v508
    %v510 = vrot.slane %v465, 4
    %v511 = vsel %vm468, %v510, %v461
    %v513 = vunpack.c.l.s4 1983009808
    %v514 = vunpack.c.0.s8 %v513
    %v515 = vperm.slane %v511, %v514
    %v516 = vrot.slane %v515, 4
    %v517 = vsel %vm468, %v516, %v509
    %v519 = vunpack.c.l.s4 1934713408
    %v520 = vunpack.c.0.s8 %v519
    %v521 = vperm.slane %v517, %v520
    %v522 = vrot.slane %v464, 4
    %v523 = vsel %vm468, %v522, %v460
    %v525 = vunpack.c.l.s4 1983009808
    %v526 = vunpack.c.0.s8 %v525
    %v527 = vperm.slane %v523, %v526
    %v528 = vrot.slane %v466, 4
    %v529 = vsel %vm468, %v528, %v462
    %v531 = vunpack.c.l.s4 1983009808
    %v532 = vunpack.c.0.s8 %v531
    %v533 = vperm.slane %v529, %v532
    %v534 = vrot.slane %v533, 4
    %v535 = vsel %vm468, %v534, %v527
    %v537 = vunpack.c.l.s4 1934713408
    %v538 = vunpack.c.0.s8 %v537
    %v539 = vperm.slane %v535, %v538
    %v542 = vpack.i.b16 %v503, %v485
    %v543 = vshrl.u32 %v485, 16
    %v544 = vshrl.u32 %v503, 16
    %v545 = vpack.i.b16 %v544, %v543
    %v548 = vpack.i.b16 %v539, %v521
    %v549 = vshrl.u32 %v521, 16
    %v550 = vshrl.u32 %v539, 16
    %v551 = vpack.i.b16 %v550, %v549
    %554 = vrot.lane.b32.xlu0 %v318, 64
    %v555 = vpop.permute.xlu0 %554
    %556 = vrot.lane.b32.xlu0 %v320, 64
    %v557 = vpop.permute.xlu0 %556
    %v560 = vrot.slane %v318, 4
    %v561 = vsel %vm347, 0.0, %v560
    %v563 = vunpack.c.l.s4 1983009808
    %v564 = vunpack.c.0.s8 %v563
    %v565 = vperm.slane %v318, %v564
    %v567 = vunpack.c.l.s4 1983009808
    %v568 = vunpack.c.0.s8 %v567
    %v569 = vperm.slane %v561, %v568
    %v570 = vrot.slane %v555, 4
    %v571 = vsel %vm347, 0.0, %v570
    %v573 = vunpack.c.l.s4 1983009808
    %v574 = vunpack.c.0.s8 %v573
    %v575 = vperm.slane %v555, %v574
    %v577 = vunpack.c.l.s4 1983009808
    %v578 = vunpack.c.0.s8 %v577
    %v579 = vperm.slane %v571, %v578
    %v580 = vrot.slane %v575, 4
    %v581 = vsel %vm347, %v580, %v565
    %v582 = vrot.slane %v565, 4
    %v583 = vsel %vm347, %v575, %v582
    %v585 = vunpack.c.l.s4 1934713408
    %v586 = vunpack.c.0.s8 %v585
    %v587 = vperm.slane %v581, %v586
    %v589 = vunpack.c.l.s4 1934713408
    %v590 = vunpack.c.0.s8 %v589
    %v591 = vperm.slane %v583, %v590
    %v592 = vrot.slane %v579, 4
    %v593 = vsel %vm347, %v592, %v569
    %v594 = vrot.slane %v569, 4
    %v595 = vsel %vm347, %v579, %v594
    %v597 = vunpack.c.l.s4 1934713408
    %v598 = vunpack.c.0.s8 %v597
    %v599 = vperm.slane %v593, %v598
    %v601 = vunpack.c.l.s4 1934713408
    %v602 = vunpack.c.0.s8 %v601
    %v603 = vperm.slane %v595, %v602
    %v604 = vrot.slane %v587, 4
    %v605 = vsel %vm347, 0.0, %v604
    %v606 = vrot.slane %v591, 4
    %v607 = vsel %vm347, 0.0, %v606
    %v608 = vrot.slane %v599, 4
    %v609 = vsel %vm347, 0.0, %v608
    %v610 = vrot.slane %v603, 4
    %v611 = vsel %vm347, 0.0, %v610
    %v612 = vrot.slane %v320, 4
    %v613 = vsel %vm347, 0.0, %v612
    %v615 = vunpack.c.l.s4 1983009808
    %v616 = vunpack.c.0.s8 %v615
    %v617 = vperm.slane %v320, %v616
    %v619 = vunpack.c.l.s4 1983009808
    %v620 = vunpack.c.0.s8 %v619
    %v621 = vperm.slane %v613, %v620
    %v622 = vrot.slane %v557, 4
    %v623 = vsel %vm347, 0.0, %v622
    %v625 = vunpack.c.l.s4 1983009808
    %v626 = vunpack.c.0.s8 %v625
    %v627 = vperm.slane %v557, %v626
    %v629 = vunpack.c.l.s4 1983009808
    %v630 = vunpack.c.0.s8 %v629
    %v631 = vperm.slane %v623, %v630
    %v632 = vrot.slane %v627, 4
    %v633 = vsel %vm347, %v632, %v617
    %v634 = vrot.slane %v617, 4
    %v635 = vsel %vm347, %v627, %v634
    %v637 = vunpack.c.l.s4 1934713408
    %v638 = vunpack.c.0.s8 %v637
    %v639 = vperm.slane %v633, %v638
    %v641 = vunpack.c.l.s4 1934713408
    %v642 = vunpack.c.0.s8 %v641
    %v643 = vperm.slane %v635, %v642
    %v644 = vrot.slane %v631, 4
    %v645 = vsel %vm347, %v644, %v621
    %v646 = vrot.slane %v621, 4
    %v647 = vsel %vm347, %v631, %v646
    %v649 = vunpack.c.l.s4 1934713408
    %v650 = vunpack.c.0.s8 %v649
    %v651 = vperm.slane %v645, %v650
    %v653 = vunpack.c.l.s4 1934713408
    %v654 = vunpack.c.0.s8 %v653
    %v655 = vperm.slane %v647, %v654
    %v656 = vrot.slane %v639, 4
    %v657 = vsel %vm347, 0.0, %v656
    %v658 = vrot.slane %v643, 4
    %v659 = vsel %vm347, 0.0, %v658
    %v660 = vrot.slane %v651, 4
    %v661 = vsel %vm347, 0.0, %v660
    %v662 = vrot.slane %v655, 4
    %v663 = vsel %vm347, 0.0, %v662
    %v664 = vpack.c.bf16 %v587, %v587
    %v665 = vpack.c.bf16 %v605, %v605
    %v666 = vpack.c.bf16 %v591, %v591
    %v667 = vpack.c.bf16 %v607, %v607
    %v668 = vpack.c.bf16 %v599, %v599
    %v669 = vpack.c.bf16 %v609, %v609
    %v670 = vpack.c.bf16 %v603, %v603
    %v671 = vpack.c.bf16 %v611, %v611
    %v672 = vpack.c.bf16 %v639, %v639
    %v673 = vpack.c.bf16 %v657, %v657
    %v674 = vpack.c.bf16 %v643, %v643
    %v675 = vpack.c.bf16 %v659, %v659
    %v676 = vpack.c.bf16 %v651, %v651
    %v677 = vpack.c.bf16 %v661, %v661
    %v678 = vpack.c.bf16 %v655, %v655
    %v679 = vpack.c.bf16 %v663, %v663
    %v680 = vrot.slane %v668, 4
    %v681 = vsel %vm468, %v680, %v664
    %v683 = vunpack.c.l.s4 1983009808
    %v684 = vunpack.c.0.s8 %v683
    %v685 = vperm.slane %v681, %v684
    %v686 = vrot.slane %v670, 4
    %v687 = vsel %vm468, %v686, %v666
    %v689 = vunpack.c.l.s4 1983009808
    %v690 = vunpack.c.0.s8 %v689
    %v691 = vperm.slane %v687, %v690
    %v692 = vrot.slane %v691, 4
    %v693 = vsel %vm468, %v692, %v685
    %v695 = vunpack.c.l.s4 1934713408
    %v696 = vunpack.c.0.s8 %v695
    %v697 = vperm.slane %v693, %v696
    %v698 = vrot.slane %v669, 4
    %v699 = vsel %vm468, %v698, %v665
    %v701 = vunpack.c.l.s4 1983009808
    %v702 = vunpack.c.0.s8 %v701
    %v703 = vperm.slane %v699, %v702
    %v704 = vrot.slane %v671, 4
    %v705 = vsel %vm468, %v704, %v667
    %v707 = vunpack.c.l.s4 1983009808
    %v708 = vunpack.c.0.s8 %v707
    %v709 = vperm.slane %v705, %v708
    %v710 = vrot.slane %v709, 4
    %v711 = vsel %vm468, %v710, %v703
    %v713 = vunpack.c.l.s4 1934713408
    %v714 = vunpack.c.0.s8 %v713
    %v715 = vperm.slane %v711, %v714
    %v716 = vrot.slane %v676, 4
    %v717 = vsel %vm468, %v716, %v672
    %v719 = vunpack.c.l.s4 1983009808
    %v720 = vunpack.c.0.s8 %v719
    %v721 = vperm.slane %v717, %v720
    %v722 = vrot.slane %v678, 4
    %v723 = vsel %vm468, %v722, %v674
    %v725 = vunpack.c.l.s4 1983009808
    %v726 = vunpack.c.0.s8 %v725
    %v727 = vperm.slane %v723, %v726
    %v728 = vrot.slane %v727, 4
    %v729 = vsel %vm468, %v728, %v721
    %v731 = vunpack.c.l.s4 1934713408
    %v732 = vunpack.c.0.s8 %v731
    %v733 = vperm.slane %v729, %v732
    %v734 = vrot.slane %v677, 4
    %v735 = vsel %vm468, %v734, %v673
    %v737 = vunpack.c.l.s4 1983009808
    %v738 = vunpack.c.0.s8 %v737
    %v739 = vperm.slane %v735, %v738
    %v740 = vrot.slane %v679, 4
    %v741 = vsel %vm468, %v740, %v675
    %v743 = vunpack.c.l.s4 1983009808
    %v744 = vunpack.c.0.s8 %v743
    %v745 = vperm.slane %v741, %v744
    %v746 = vrot.slane %v745, 4
    %v747 = vsel %vm468, %v746, %v739
    %v749 = vunpack.c.l.s4 1934713408
    %v750 = vunpack.c.0.s8 %v749
    %v751 = vperm.slane %v747, %v750
    %v754 = vpack.i.b16 %v715, %v697
    %v755 = vshrl.u32 %v697, 16
    %v756 = vshrl.u32 %v715, 16
    %v757 = vpack.i.b16 %v756, %v755
    %v760 = vpack.i.b16 %v751, %v733
    %v761 = vshrl.u32 %v733, 16
    %v762 = vshrl.u32 %v751, 16
    %v763 = vpack.i.b16 %v762, %v761
    %766 = vrot.lane.b32.xlu0 %v332, 64
    %v767 = vpop.permute.xlu0 %766
    %768 = vrot.lane.b32.xlu0 %v334, 64
    %v769 = vpop.permute.xlu0 %768
    %v772 = vrot.slane %v332, 4
    %v773 = vsel %vm347, 0.0, %v772
    %v775 = vunpack.c.l.s4 1983009808
    %v776 = vunpack.c.0.s8 %v775
    %v777 = vperm.slane %v332, %v776
    %v779 = vunpack.c.l.s4 1983009808
    %v780 = vunpack.c.0.s8 %v779
    %v781 = vperm.slane %v773, %v780
    %v782 = vrot.slane %v767, 4
    %v783 = vsel %vm347, 0.0, %v782
    %v785 = vunpack.c.l.s4 1983009808
    %v786 = vunpack.c.0.s8 %v785
    %v787 = vperm.slane %v767, %v786
    %v789 = vunpack.c.l.s4 1983009808
    %v790 = vunpack.c.0.s8 %v789
    %v791 = vperm.slane %v783, %v790
    %v792 = vrot.slane %v787, 4
    %v793 = vsel %vm347, %v792, %v777
    %v794 = vrot.slane %v777, 4
    %v795 = vsel %vm347, %v787, %v794
    %v797 = vunpack.c.l.s4 1934713408
    %v798 = vunpack.c.0.s8 %v797
    %v799 = vperm.slane %v793, %v798
    %v801 = vunpack.c.l.s4 1934713408
    %v802 = vunpack.c.0.s8 %v801
    %v803 = vperm.slane %v795, %v802
    %v804 = vrot.slane %v791, 4
    %v805 = vsel %vm347, %v804, %v781
    %v806 = vrot.slane %v781, 4
    %v807 = vsel %vm347, %v791, %v806
    %v809 = vunpack.c.l.s4 1934713408
    %v810 = vunpack.c.0.s8 %v809
    %v811 = vperm.slane %v805, %v810
    %v813 = vunpack.c.l.s4 1934713408
    %v814 = vunpack.c.0.s8 %v813
    %v815 = vperm.slane %v807, %v814
    %v816 = vrot.slane %v799, 4
    %v817 = vsel %vm347, 0.0, %v816
    %v818 = vrot.slane %v803, 4
    %v819 = vsel %vm347, 0.0, %v818
    %v820 = vrot.slane %v811, 4
    %v821 = vsel %vm347, 0.0, %v820
    %v822 = vrot.slane %v815, 4
    %v823 = vsel %vm347, 0.0, %v822
    %v824 = vrot.slane %v334, 4
    %v825 = vsel %vm347, 0.0, %v824
    %v827 = vunpack.c.l.s4 1983009808
    %v828 = vunpack.c.0.s8 %v827
    %v829 = vperm.slane %v334, %v828
    %v831 = vunpack.c.l.s4 1983009808
    %v832 = vunpack.c.0.s8 %v831
    %v833 = vperm.slane %v825, %v832
    %v834 = vrot.slane %v769, 4
    %v835 = vsel %vm347, 0.0, %v834
    %v837 = vunpack.c.l.s4 1983009808
    %v838 = vunpack.c.0.s8 %v837
    %v839 = vperm.slane %v769, %v838
    %v841 = vunpack.c.l.s4 1983009808
    %v842 = vunpack.c.0.s8 %v841
    %v843 = vperm.slane %v835, %v842
    %v844 = vrot.slane %v839, 4
    %v845 = vsel %vm347, %v844, %v829
    %v846 = vrot.slane %v829, 4
    %v847 = vsel %vm347, %v839, %v846
    %v849 = vunpack.c.l.s4 1934713408
    %v850 = vunpack.c.0.s8 %v849
    %v851 = vperm.slane %v845, %v850
    %v853 = vunpack.c.l.s4 1934713408
    %v854 = vunpack.c.0.s8 %v853
    %v855 = vperm.slane %v847, %v854
    %v856 = vrot.slane %v843, 4
    %v857 = vsel %vm347, %v856, %v833
    %v858 = vrot.slane %v833, 4
    %v859 = vsel %vm347, %v843, %v858
    %v861 = vunpack.c.l.s4 1934713408
    %v862 = vunpack.c.0.s8 %v861
    %v863 = vperm.slane %v857, %v862
    %v865 = vunpack.c.l.s4 1934713408
    %v866 = vunpack.c.0.s8 %v865
    %v867 = vperm.slane %v859, %v866
    %v868 = vrot.slane %v851, 4
    %v869 = vsel %vm347, 0.0, %v868
    %v870 = vrot.slane %v855, 4
    %v871 = vsel %vm347, 0.0, %v870
    %v872 = vrot.slane %v863, 4
    %v873 = vsel %vm347, 0.0, %v872
    %v874 = vrot.slane %v867, 4
    %v875 = vsel %vm347, 0.0, %v874
    %v876 = vpack.c.bf16 %v799, %v799
    %v877 = vpack.c.bf16 %v817, %v817
    %v878 = vpack.c.bf16 %v803, %v803
    %v879 = vpack.c.bf16 %v819, %v819
    %v880 = vpack.c.bf16 %v811, %v811
    %v881 = vpack.c.bf16 %v821, %v821
    %v882 = vpack.c.bf16 %v815, %v815
    %v883 = vpack.c.bf16 %v823, %v823
    %v884 = vpack.c.bf16 %v851, %v851
    %v885 = vpack.c.bf16 %v869, %v869
    %v886 = vpack.c.bf16 %v855, %v855
    %v887 = vpack.c.bf16 %v871, %v871
    %v888 = vpack.c.bf16 %v863, %v863
    %v889 = vpack.c.bf16 %v873, %v873
    %v890 = vpack.c.bf16 %v867, %v867
    %v891 = vpack.c.bf16 %v875, %v875
    %v892 = vrot.slane %v880, 4
    %v893 = vsel %vm468, %v892, %v876
    %v895 = vunpack.c.l.s4 1983009808
    %v896 = vunpack.c.0.s8 %v895
    %v897 = vperm.slane %v893, %v896
    %v898 = vrot.slane %v882, 4
    %v899 = vsel %vm468, %v898, %v878
    %v901 = vunpack.c.l.s4 1983009808
    %v902 = vunpack.c.0.s8 %v901
    %v903 = vperm.slane %v899, %v902
    %v904 = vrot.slane %v903, 4
    %v905 = vsel %vm468, %v904, %v897
    %v907 = vunpack.c.l.s4 1934713408
    %v908 = vunpack.c.0.s8 %v907
    %v909 = vperm.slane %v905, %v908
    %v910 = vrot.slane %v881, 4
    %v911 = vsel %vm468, %v910, %v877
    %v913 = vunpack.c.l.s4 1983009808
    %v914 = vunpack.c.0.s8 %v913
    %v915 = vperm.slane %v911, %v914
    %v916 = vrot.slane %v883, 4
    %v917 = vsel %vm468, %v916, %v879
    %v919 = vunpack.c.l.s4 1983009808
    %v920 = vunpack.c.0.s8 %v919
    %v921 = vperm.slane %v917, %v920
    %v922 = vrot.slane %v921, 4
    %v923 = vsel %vm468, %v922, %v915
    %v925 = vunpack.c.l.s4 1934713408
    %v926 = vunpack.c.0.s8 %v925
    %v927 = vperm.slane %v923, %v926
    %v928 = vrot.slane %v888, 4
    %v929 = vsel %vm468, %v928, %v884
    %v931 = vunpack.c.l.s4 1983009808
    %v932 = vunpack.c.0.s8 %v931
    %v933 = vperm.slane %v929, %v932
    %v934 = vrot.slane %v890, 4
    %v935 = vsel %vm468, %v934, %v886
    %v937 = vunpack.c.l.s4 1983009808
    %v938 = vunpack.c.0.s8 %v937
    %v939 = vperm.slane %v935, %v938
    %v940 = vrot.slane %v939, 4
    %v941 = vsel %vm468, %v940, %v933
    %v943 = vunpack.c.l.s4 1934713408
    %v944 = vunpack.c.0.s8 %v943
    %v945 = vperm.slane %v941, %v944
    %v946 = vrot.slane %v889, 4
    %v947 = vsel %vm468, %v946, %v885
    %v949 = vunpack.c.l.s4 1983009808
    %v950 = vunpack.c.0.s8 %v949
    %v951 = vperm.slane %v947, %v950
    %v952 = vrot.slane %v891, 4
    %v953 = vsel %vm468, %v952, %v887
    %v955 = vunpack.c.l.s4 1983009808
    %v956 = vunpack.c.0.s8 %v955
    %v957 = vperm.slane %v953, %v956
    %v958 = vrot.slane %v957, 4
    %v959 = vsel %vm468, %v958, %v951
    %v961 = vunpack.c.l.s4 1934713408
    %v962 = vunpack.c.0.s8 %v961
    %v963 = vperm.slane %v959, %v962
    %v966 = vpack.i.b16 %v927, %v909
    %v967 = vshrl.u32 %v909, 16
    %v968 = vshrl.u32 %v927, 16
    %v969 = vpack.i.b16 %v968, %v967
    %v972 = vpack.i.b16 %v963, %v945
    %v973 = vshrl.u32 %v945, 16
    %v974 = vshrl.u32 %v963, 16
    %v975 = vpack.i.b16 %v974, %v973
    %vm976 = vcmask 523264
    %v978 = vsel %vm976, %v542, 0
    %v981 = vsel %vm976, %v754, 0
    %983 = vmatpush.bf16.xpose.msra.mxu0 0
    %984 = vmatpush.bf16.xpose.msra.mxu0 0
    %985 = vmatpush.bf16.xpose.msra.mxu0 0
    %986 = vmatpush.bf16.xpose.msra.mxu0 0
    %987 = vmatpush.bf16.xpose.msra.mxu0 0
    %988 = vmatpush.bf16.xpose.msra.mxu0 0
    %989 = vmatpush.bf16.xpose.msra.mxu0 0
    %990 = vmatpush.bf16.xpose.msra.mxu0 %v981
    %991 = vmatmul.bf16.gmra.mxu0 %v978
    %v992 = vpop.f32.mrf.mxu0
    %v993 = vadd.f32 0.0, %v992
    %v994 = vpop.f32.mrf.mxu0
    %995 = vdwg.mxu0
    %v997 = vsel %vm976, %v545, 0
    %v1000 = vsel %vm976, %v757, 0
    %1002 = vmatpush.bf16.xpose.msra.mxu0 0
    %1003 = vmatpush.bf16.xpose.msra.mxu0 0
    %1004 = vmatpush.bf16.xpose.msra.mxu0 0
    %1005 = vmatpush.bf16.xpose.msra.mxu0 0
    %1006 = vmatpush.bf16.xpose.msra.mxu0 0
    %1007 = vmatpush.bf16.xpose.msra.mxu0 0
    %1008 = vmatpush.bf16.xpose.msra.mxu0 0
    %1009 = vmatpush.bf16.xpose.msra.mxu0 %v1000
    %1010 = vmatmul.bf16.gmra.mxu0 %v997
    %v1011 = vpop.f32.mrf.mxu0
    %v1012 = vadd.f32 0.0, %v1011
    %v1013 = vpop.f32.mrf.mxu0
    %1014 = vdwg.mxu0
    %v1016 = vsel %vm976, %v548, 0
    %v1019 = vsel %vm976, %v760, 0
    %1021 = vmatpush.bf16.xpose.msra.mxu0 0
    %1022 = vmatpush.bf16.xpose.msra.mxu0 0
    %1023 = vmatpush.bf16.xpose.msra.mxu0 0
    %1024 = vmatpush.bf16.xpose.msra.mxu0 0
    %1025 = vmatpush.bf16.xpose.msra.mxu0 0
    %1026 = vmatpush.bf16.xpose.msra.mxu0 0
    %1027 = vmatpush.bf16.xpose.msra.mxu0 0
    %1028 = vmatpush.bf16.xpose.msra.mxu0 %v1019
    %1029 = vmatmul.bf16.gmra.mxu0 %v1016
    %v1030 = vpop.f32.mrf.mxu0
    %v1031 = vadd.f32 0.0, %v1030
    %v1032 = vpop.f32.mrf.mxu0
    %1033 = vdwg.mxu0
    %v1035 = vsel %vm976, %v551, 0
    %v1038 = vsel %vm976, %v763, 0
    %1040 = vmatpush.bf16.xpose.msra.mxu0 0
    %1041 = vmatpush.bf16.xpose.msra.mxu0 0
    %1042 = vmatpush.bf16.xpose.msra.mxu0 0
    %1043 = vmatpush.bf16.xpose.msra.mxu0 0
    %1044 = vmatpush.bf16.xpose.msra.mxu0 0
    %1045 = vmatpush.bf16.xpose.msra.mxu0 0
    %1046 = vmatpush.bf16.xpose.msra.mxu0 0
    %1047 = vmatpush.bf16.xpose.msra.mxu0 %v1038
    %1048 = vmatmul.bf16.gmra.mxu0 %v1035
    %v1049 = vpop.f32.mrf.mxu0
    %v1050 = vadd.f32 0.0, %v1049
    %v1051 = vpop.f32.mrf.mxu0
    %1052 = vdwg.mxu0
    %v1053 = vld [vmem:[#allocation5] sm:$0xff]
    %vm1054 = vcmp.ne.f32.partialorder %v1053, 0.0
    %v1055 = vsel %vm1054, 1, 0
    %vm1056 = vcmp.eq.s32.totalorder %v1055, 1
    %v1057 = vsel %vm1056, -10000000.0, %v993
    %v1058 = vsel %vm1056, -10000000.0, %v1012
    %v1059 = vsel %vm1056, -10000000.0, %v1031
    %v1060 = vsel %vm1056, -10000000.0, %v1050
    %vm1061 = vcmask 64512
    %v1062 = vsel %vm1061, %v1057, -inf
    %1063 = vmax.xlane.f32.xlu0 %v1062
    %v1064 = vpop.xlane.xlu0 %1063
    %v1065 = vsel %vm1061, %v1058, -inf
    %1066 = vmax.xlane.f32.xlu0 %v1065
    %v1067 = vpop.xlane.xlu0 %1066
    %v1068 = vsel %vm1061, %v1059, -inf
    %1069 = vmax.xlane.f32.xlu0 %v1068
    %v1070 = vpop.xlane.xlu0 %1069
    %v1071 = vsel %vm1061, %v1060, -inf
    %1072 = vmax.xlane.f32.xlu0 %v1071
    %v1073 = vpop.xlane.xlu0 %1072
    %v1074 = vsub.f32 %v1057, %v1064
    %v1075 = vsub.f32 %v1058, %v1067
    %v1076 = vsub.f32 %v1059, %v1070
    %v1077 = vsub.f32 %v1060, %v1073
    %v1078 = vmul.f32 %v1074, 1.442695
    %v1079 = vpow.pop %v1078
    %v1080 = vmul.f32 %v1075, 1.442695
    %v1081 = vpow.pop %v1080
    %v1082 = vmul.f32 %v1076, 1.442695
    %v1083 = vpow.pop %v1082
    %v1084 = vmul.f32 %v1077, 1.442695
    %v1085 = vpow.pop %v1084
    %v1086 = vsel %vm1061, %v1079, 0.0
    %1087 = vadd.xlane.f32.xlu0 %v1086
    %v1088 = vpop.xlane.xlu0 %1087
    %v1089 = vsel %vm1061, %v1081, 0.0
    %1090 = vadd.xlane.f32.xlu0 %v1089
    %v1091 = vpop.xlane.xlu0 %1090
    %v1092 = vsel %vm1061, %v1083, 0.0
    %1093 = vadd.xlane.f32.xlu0 %v1092
    %v1094 = vpop.xlane.xlu0 %1093
    %v1095 = vsel %vm1061, %v1085, 0.0
    %1096 = vadd.xlane.f32.xlu0 %v1095
    %v1097 = vpop.xlane.xlu0 %1096
    %v1098 = vrcp.pop %v1088
    %v1099 = vrcp.pop %v1091
    %v1100 = vrcp.pop %v1094
    %v1101 = vrcp.pop %v1097
    %v1102 = vmul.f32 %v1079, %v1098
    %v1103 = vmul.f32 %v1081, %v1099
    %v1104 = vmul.f32 %v1083, %v1100
    %v1105 = vmul.f32 %v1085, %v1101
    %v1106 = vpack.c.bf16 %v1102, %v1102
    %v1107 = vpack.c.bf16 %v1103, %v1103
    %v1108 = vpack.c.bf16 %v1104, %v1104
    %v1109 = vpack.c.bf16 %v1105, %v1105
    %v1111 = vsel %vm1061, %v1106, 0
    %vm1113 = vcmask 1043456
    %v1115 = vsel %vm1113, %v966, 0
    %1117 = vmatpush.bf16.msra.mxu0 0
    %1118 = vmatpush.bf16.msra.mxu0 0
    %1119 = vmatpush.bf16.msra.mxu0 0
    %1120 = vmatpush.bf16.msra.mxu0 0
    %1121 = vmatpush.bf16.msra.mxu0 0
    %1122 = vmatpush.bf16.msra.mxu0 0
    %1123 = vmatpush.bf16.msra.mxu0 0
    %1124 = vmatpush.bf16.msra.mxu0 %v1115
    %1125 = vmatmul.bf16.gmra.mxu0 %v1111
    %v1126 = vpop.f32.mrf.mxu0
    %v1127 = vadd.f32 0.0, %v1126
    %v1128 = vpop.f32.mrf.mxu0
    %1129 = vdwg.mxu0
    %v1131 = vsel %vm1061, %v1107, 0
    %v1134 = vsel %vm1113, %v969, 0
    %1136 = vmatpush.bf16.msra.mxu0 0
    %1137 = vmatpush.bf16.msra.mxu0 0
    %1138 = vmatpush.bf16.msra.mxu0 0
    %1139 = vmatpush.bf16.msra.mxu0 0
    %1140 = vmatpush.bf16.msra.mxu0 0
    %1141 = vmatpush.bf16.msra.mxu0 0
    %1142 = vmatpush.bf16.msra.mxu0 0
    %1143 = vmatpush.bf16.msra.mxu0 %v1134
    %1144 = vmatmul.bf16.gmra.mxu0 %v1131
    %v1145 = vpop.f32.mrf.mxu0
    %v1146 = vadd.f32 0.0, %v1145
    %v1147 = vpop.f32.mrf.mxu0
    %1148 = vdwg.mxu0
    %v1150 = vsel %vm1061, %v1108, 0
    %v1153 = vsel %vm1113, %v972, 0
    %1155 = vmatpush.bf16.msra.mxu0 0
    %1156 = vmatpush.bf16.msra.mxu0 0
    %1157 = vmatpush.bf16.msra.mxu0 0
    %1158 = vmatpush.bf16.msra.mxu0 0
    %1159 = vmatpush.bf16.msra.mxu0 0
    %1160 = vmatpush.bf16.msra.mxu0 0
    %1161 = vmatpush.bf16.msra.mxu0 0
    %1162 = vmatpush.bf16.msra.mxu0 %v1153
    %1163 = vmatmul.bf16.gmra.mxu0 %v1150
    %v1164 = vpop.f32.mrf.mxu0
    %v1165 = vadd.f32 0.0, %v1164
    %v1166 = vpop.f32.mrf.mxu0
    %1167 = vdwg.mxu0
    %v1169 = vsel %vm1061, %v1109, 0
    %v1172 = vsel %vm1113, %v975, 0
    %1174 = vmatpush.bf16.msra.mxu0 0
    %1175 = vmatpush.bf16.msra.mxu0 0
    %1176 = vmatpush.bf16.msra.mxu0 0
    %1177 = vmatpush.bf16.msra.mxu0 0
    %1178 = vmatpush.bf16.msra.mxu0 0
    %1179 = vmatpush.bf16.msra.mxu0 0
    %1180 = vmatpush.bf16.msra.mxu0 0
    %1181 = vmatpush.bf16.msra.mxu0 %v1172
    %1182 = vmatmul.bf16.gmra.mxu0 %v1169
    %v1183 = vpop.f32.mrf.mxu0
    %v1184 = vadd.f32 0.0, %v1183
    %v1185 = vpop.f32.mrf.mxu0
    %1186 = vdwg.mxu0
    %v1187 = vrot.slane %v1127, 4
    %v1188 = vsel %vm347, 0.0, %v1187
    %v1190 = vunpack.c.l.s4 1983009808
    %v1191 = vunpack.c.0.s8 %v1190
    %v1192 = vperm.slane %v1127, %v1191
    %v1194 = vunpack.c.l.s4 1983009808
    %v1195 = vunpack.c.0.s8 %v1194
    %v1196 = vperm.slane %v1188, %v1195
    %v1197 = vrot.slane %v1146, 4
    %v1198 = vsel %vm347, 0.0, %v1197
    %v1200 = vunpack.c.l.s4 1983009808
    %v1201 = vunpack.c.0.s8 %v1200
    %v1202 = vperm.slane %v1146, %v1201
    %v1204 = vunpack.c.l.s4 1983009808
    %v1205 = vunpack.c.0.s8 %v1204
    %v1206 = vperm.slane %v1198, %v1205
    %v1207 = vrot.slane %v1202, 4
    %v1208 = vsel %vm347, %v1207, %v1192
    %v1209 = vrot.slane %v1192, 4
    %v1210 = vsel %vm347, %v1202, %v1209
    %v1212 = vunpack.c.l.s4 1934713408
    %v1213 = vunpack.c.0.s8 %v1212
    %v1214 = vperm.slane %v1208, %v1213
    %v1216 = vunpack.c.l.s4 1934713408
    %v1217 = vunpack.c.0.s8 %v1216
    %v1218 = vperm.slane %v1210, %v1217
    %v1219 = vrot.slane %v1206, 4
    %v1220 = vsel %vm347, %v1219, %v1196
    %v1221 = vrot.slane %v1196, 4
    %v1222 = vsel %vm347, %v1206, %v1221
    %v1224 = vunpack.c.l.s4 1934713408
    %v1225 = vunpack.c.0.s8 %v1224
    %v1226 = vperm.slane %v1220, %v1225
    %v1228 = vunpack.c.l.s4 1934713408
    %v1229 = vunpack.c.0.s8 %v1228
    %v1230 = vperm.slane %v1222, %v1229
    %v1231 = vrot.slane %v1214, 4
    %v1232 = vsel %vm347, 0.0, %v1231
    %v1233 = vrot.slane %v1218, 4
    %v1234 = vsel %vm347, 0.0, %v1233
    %v1235 = vrot.slane %v1226, 4
    %v1236 = vsel %vm347, 0.0, %v1235
    %v1237 = vrot.slane %v1230, 4
    %v1238 = vsel %vm347, 0.0, %v1237
    %v1239 = vrot.slane %v1165, 4
    %v1240 = vsel %vm347, 0.0, %v1239
    %v1242 = vunpack.c.l.s4 1983009808
    %v1243 = vunpack.c.0.s8 %v1242
    %v1244 = vperm.slane %v1165, %v1243
    %v1246 = vunpack.c.l.s4 1983009808
    %v1247 = vunpack.c.0.s8 %v1246
    %v1248 = vperm.slane %v1240, %v1247
    %v1249 = vrot.slane %v1184, 4
    %v1250 = vsel %vm347, 0.0, %v1249
    %v1252 = vunpack.c.l.s4 1983009808
    %v1253 = vunpack.c.0.s8 %v1252
    %v1254 = vperm.slane %v1184, %v1253
    %v1256 = vunpack.c.l.s4 1983009808
    %v1257 = vunpack.c.0.s8 %v1256
    %v1258 = vperm.slane %v1250, %v1257
    %v1259 = vrot.slane %v1254, 4
    %v1260 = vsel %vm347, %v1259, %v1244
    %v1261 = vrot.slane %v1244, 4
    %v1262 = vsel %vm347, %v1254, %v1261
    %v1264 = vunpack.c.l.s4 1934713408
    %v1265 = vunpack.c.0.s8 %v1264
    %v1266 = vperm.slane %v1260, %v1265
    %v1268 = vunpack.c.l.s4 1934713408
    %v1269 = vunpack.c.0.s8 %v1268
    %v1270 = vperm.slane %v1262, %v1269
    %v1271 = vrot.slane %v1258, 4
    %v1272 = vsel %vm347, %v1271, %v1248
    %v1273 = vrot.slane %v1248, 4
    %v1274 = vsel %vm347, %v1258, %v1273
    %v1276 = vunpack.c.l.s4 1934713408
    %v1277 = vunpack.c.0.s8 %v1276
    %v1278 = vperm.slane %v1272, %v1277
    %v1280 = vunpack.c.l.s4 1934713408
    %v1281 = vunpack.c.0.s8 %v1280
    %v1282 = vperm.slane %v1274, %v1281
    %v1283 = vrot.slane %v1266, 4
    %v1284 = vsel %vm347, 0.0, %v1283
    %v1285 = vrot.slane %v1270, 4
    %v1286 = vsel %vm347, 0.0, %v1285
    %v1287 = vrot.slane %v1278, 4
    %v1288 = vsel %vm347, 0.0, %v1287
    %v1289 = vrot.slane %v1282, 4
    %v1290 = vsel %vm347, 0.0, %v1289
    %v1291 = vsel %vm347, %v1233, %v1214
    %v1293 = vunpack.c.l.s4 1983009808
    %v1294 = vunpack.c.0.s8 %v1293
    %v1295 = vperm.slane %v1291, %v1294
    %v1296 = vrot.slane %v1234, 4
    %v1297 = vsel %vm347, %v1296, %v1232
    %v1299 = vunpack.c.l.s4 1983009808
    %v1300 = vunpack.c.0.s8 %v1299
    %v1301 = vperm.slane %v1297, %v1300
    %v1302 = vsel %vm347, %v1237, %v1226
    %v1304 = vunpack.c.l.s4 1983009808
    %v1305 = vunpack.c.0.s8 %v1304
    %v1306 = vperm.slane %v1302, %v1305
    %v1307 = vrot.slane %v1238, 4
    %v1308 = vsel %vm347, %v1307, %v1236
    %v1310 = vunpack.c.l.s4 1983009808
    %v1311 = vunpack.c.0.s8 %v1310
    %v1312 = vperm.slane %v1308, %v1311
    %v1313 = vrot.slane %v1301, 4
    %v1314 = vsel %vm347, %v1313, %v1295
    %v1316 = vunpack.c.l.s4 1934713408
    %v1317 = vunpack.c.0.s8 %v1316
    %v1318 = vperm.slane %v1314, %v1317
    %v1319 = vrot.slane %v1312, 4
    %v1320 = vsel %vm347, %v1319, %v1306
    %v1322 = vunpack.c.l.s4 1934713408
    %v1323 = vunpack.c.0.s8 %v1322
    %v1324 = vperm.slane %v1320, %v1323
    %v1325 = vrot.slane %v1324, 4
    %v1326 = vsel %vm347, %v1325, %v1318
    %v1327 = vrot.slane %v1318, 4
    %v1328 = vsel %vm347, %v1324, %v1327
    %v1329 = vsel %vm347, %v1285, %v1266
    %v1331 = vunpack.c.l.s4 1983009808
    %v1332 = vunpack.c.0.s8 %v1331
    %v1333 = vperm.slane %v1329, %v1332
    %v1334 = vrot.slane %v1286, 4
    %v1335 = vsel %vm347, %v1334, %v1284
    %v1337 = vunpack.c.l.s4 1983009808
    %v1338 = vunpack.c.0.s8 %v1337
    %v1339 = vperm.slane %v1335, %v1338
    %v1340 = vsel %vm347, %v1289, %v1278
    %v1342 = vunpack.c.l.s4 1983009808
    %v1343 = vunpack.c.0.s8 %v1342
    %v1344 = vperm.slane %v1340, %v1343
    %v1345 = vrot.slane %v1290, 4
    %v1346 = vsel %vm347, %v1345, %v1288
    %v1348 = vunpack.c.l.s4 1983009808
    %v1349 = vunpack.c.0.s8 %v1348
    %v1350 = vperm.slane %v1346, %v1349
    %v1351 = vrot.slane %v1339, 4
    %v1352 = vsel %vm347, %v1351, %v1333
    %v1354 = vunpack.c.l.s4 1934713408
    %v1355 = vunpack.c.0.s8 %v1354
    %v1356 = vperm.slane %v1352, %v1355
    %v1357 = vrot.slane %v1350, 4
    %v1358 = vsel %vm347, %v1357, %v1344
    %v1360 = vunpack.c.l.s4 1934713408
    %v1361 = vunpack.c.0.s8 %v1360
    %v1362 = vperm.slane %v1358, %v1361
    %v1363 = vrot.slane %v1362, 4
    %v1364 = vsel %vm347, %v1363, %v1356
    %v1365 = vrot.slane %v1356, 4
    %v1366 = vsel %vm347, %v1362, %v1365
    %1369 = vrot.lane.b32.xlu0 %v1328, 64
    %v1370 = vpop.permute.xlu0 %1369
    %1371 = vrot.lane.b32.xlu0 %v1366, 64
    %v1372 = vpop.permute.xlu0 %1371
    %v1375 = vsel %vm976, %v1326, %v1370
    %v1376 = vsel %vm976, %v1364, %v1372
    %v1377 = vpack.c.bf16 %v1376, %v1375
    %v1378 = vld [vmem:[#allocation8] sm:$0xf]
    %v1379 = vld [vmem:[#allocation8 + $0x4] sm:$0xf]
    %v1380 = vld [vmem:[#allocation8 + $0x8] sm:$0xf]
    %v1381 = vld [vmem:[#allocation8 + $0xc] sm:$0xf]
    %v1382 = vld [vmem:[#allocation8 + $0x10] sm:$0xf]
    %v1383 = vld [vmem:[#allocation8 + $0x14] sm:$0xf]
    %v1384 = vld [vmem:[#allocation8 + $0x18] sm:$0xf]
    %v1385 = vld [vmem:[#allocation8 + $0x1c] sm:$0xf]
    %v1386 = vld [vmem:[#allocation8 + $0x20] sm:$0xf]
    %v1387 = vld [vmem:[#allocation8 + $0x24] sm:$0xf]
    %v1388 = vld [vmem:[#allocation8 + $0x28] sm:$0xf]
    %v1389 = vld [vmem:[#allocation8 + $0x2c] sm:$0xf]
    %v1390 = vld [vmem:[#allocation8 + $0x30] sm:$0xf]
    %v1391 = vld [vmem:[#allocation8 + $0x34] sm:$0xf]
    %v1392 = vld [vmem:[#allocation8 + $0x38] sm:$0xf]
    %v1393 = vld [vmem:[#allocation8 + $0x3c] sm:$0xf]
    %v1410 = vunpack.c.l.b16 %v1378
    %v1411 = vunpack.c.l.b16 %v1379
    %v1412 = vunpack.c.l.b16 %v1380
    %v1413 = vunpack.c.l.b16 %v1381
    %v1414 = vunpack.c.l.b16 %v1382
    %v1415 = vunpack.c.l.b16 %v1383
    %v1416 = vunpack.c.l.b16 %v1384
    %v1417 = vunpack.c.l.b16 %v1385
    %v1418 = vunpack.c.l.b16 %v1386
    %v1419 = vunpack.c.l.b16 %v1387
    %v1420 = vunpack.c.l.b16 %v1388
    %v1421 = vunpack.c.l.b16 %v1389
    %v1422 = vunpack.c.l.b16 %v1390
    %v1423 = vunpack.c.l.b16 %v1391
    %v1424 = vunpack.c.l.b16 %v1392
    %v1425 = vunpack.c.l.b16 %v1393
    %v1426 = vpack.c.b16 %v1411, %v1410
    %v1427 = vpack.c.b16 %v1413, %v1412
    %v1428 = vpack.c.b16 %v1415, %v1414
    %v1429 = vpack.c.b16 %v1417, %v1416
    %v1430 = vpack.c.b16 %v1419, %v1418
    %v1431 = vpack.c.b16 %v1421, %v1420
    %v1432 = vpack.c.b16 %v1423, %v1422
    %v1433 = vpack.c.b16 %v1425, %v1424
    %1442 = vmatpush.bf16.msra.mxu0 %v1433
    %1443 = vmatpush.bf16.msra.mxu0 %v1432
    %1444 = vmatpush.bf16.msra.mxu0 %v1431
    %1445 = vmatpush.bf16.msra.mxu0 %v1430
    %1446 = vmatpush.bf16.msra.mxu0 %v1429
    %1447 = vmatpush.bf16.msra.mxu0 %v1428
    %1448 = vmatpush.bf16.msra.mxu0 %v1427
    %1449 = vmatpush.bf16.msra.mxu0 %v1426
    %1450 = vmatmul.bf16.gmra.mxu0 %v1377
    %v1451 = vpop.f32.mrf.mxu0
    %v1452 = vadd.f32 %v131, %v1451
    %v1453 = vpop.f32.mrf.mxu0
    %v1454 = vadd.f32 %v132, %v1453
    %1455 = vdwg.mxu0
    %v1456 = vld [vmem:[%s4] sm:$0x1]
    %v1457 = vld [vmem:[%s5] sm:$0x1]
    %1458 = vadd.xlane.f32.xlu0 %v1452
    %v1459 = vpop.xlane.xlu0 %1458
    %1460 = vadd.xlane.f32.xlu0 %v1454
    %v1461 = vpop.xlane.xlu0 %1460
    %v1462 = vrcp.pop 128.0
    %v1463 = vmul.f32 128.0, %v1462
    %v1464 = vsub.f32 1.0, %v1463
    %v1465 = vmul.f32 %v1462, %v1464
    %v1466 = vadd.f32 %v1462, %v1465
    %vm1467 = vweird.f32 %v1462
    %v1468 = vsel %vm1467, %v1462, %v1466
    %v1469 = vmul.f32 %v1459, %v1468
    %v1470 = vmul.f32 %v1461, %v1468
    %v1471 = vsub.f32 %v1452, %v1469
    %v1472 = vsub.f32 %v1454, %v1470
    %v1473 = vmul.f32 %v1471, %v1471
    %v1474 = vmul.f32 %v1472, %v1472
    %1475 = vadd.xlane.f32.xlu0 %v1473
    %v1476 = vpop.xlane.xlu0 %1475
    %1477 = vadd.xlane.f32.xlu0 %v1474
    %v1478 = vpop.xlane.xlu0 %1477
    %v1479 = vmul.f32 %v1476, %v1468
    %v1480 = vmul.f32 %v1478, %v1468
    %v1481 = vadd.f32 %v1479, 1e-05
    %v1482 = vadd.f32 %v1480, 1e-05
    %v1483 = vrsqrt.pop %v1481
    %v1484 = vmul.f32 %v1483, %v1481
    %v1485 = vmul.f32 %v1484, %v1483
    %v1486 = vmul.f32 0.5, %v1485
    %v1487 = vsub.f32 1.5, %v1486
    %v1488 = vmul.f32 %v1483, %v1487
    %vm1489 = vweird.f32 %v1481
    %vm1490 = vweird.f32 %v1483
    %vm1491 = vmor %vm1489, %vm1490
    %v1492 = vsel %vm1491, %v1483, %v1488
    %v1493 = vrsqrt.pop %v1482
    %v1494 = vmul.f32 %v1493, %v1482
    %v1495 = vmul.f32 %v1494, %v1493
    %v1496 = vmul.f32 0.5, %v1495
    %v1497 = vsub.f32 1.5, %v1496
    %v1498 = vmul.f32 %v1493, %v1497
    %vm1499 = vweird.f32 %v1482
    %vm1500 = vweird.f32 %v1493
    %vm1501 = vmor %vm1499, %vm1500
    %v1502 = vsel %vm1501, %v1493, %v1498
    %v1503 = vmul.f32 %v1471, %v1492
    %v1504 = vmul.f32 %v1472, %v1502
    %v1506 = vperm.slane %v1456, 0
    %v1508 = vmul.f32 %v1503, %v1506
    %v1509 = vmul.f32 %v1504, %v1506
    %v1511 = vperm.slane %v1457, 0
    %v1513 = vadd.f32 %v1508, %v1511
    %v1514 = vadd.f32 %v1509, %v1511
    %v1515 = vpack.c.bf16 %v1514, %v1513
    %v1516 = vld [vmem:[#allocation10] sm:$0xff]
    %v1517 = vld [vmem:[#allocation10 + $0x8] sm:$0xff]
    %v1518 = vld [vmem:[#allocation10 + $0x10] sm:$0xff]
    %v1519 = vld [vmem:[#allocation10 + $0x18] sm:$0xff]
    %v1520 = vld [vmem:[#allocation10 + $0x20] sm:$0xff]
    %v1521 = vld [vmem:[#allocation10 + $0x28] sm:$0xff]
    %v1522 = vld [vmem:[#allocation10 + $0x30] sm:$0xff]
    %v1523 = vld [vmem:[#allocation10 + $0x38] sm:$0xff]
    %v1524 = vld [vmem:[#allocation10 + $0x40] sm:$0xff]
    %v1525 = vld [vmem:[#allocation10 + $0x48] sm:$0xff]
    %v1526 = vld [vmem:[#allocation10 + $0x50] sm:$0xff]
    %v1527 = vld [vmem:[#allocation10 + $0x58] sm:$0xff]
    %v1528 = vld [vmem:[#allocation10 + $0x60] sm:$0xff]
    %v1529 = vld [vmem:[#allocation10 + $0x68] sm:$0xff]
    %v1530 = vld [vmem:[#allocation10 + $0x70] sm:$0xff]
    %v1531 = vld [vmem:[#allocation10 + $0x78] sm:$0xff]
    %v1532 = vld [vmem:[#allocation10 + $0x80] sm:$0xff]
    %v1533 = vld [vmem:[#allocation10 + $0x88] sm:$0xff]
    %v1534 = vld [vmem:[#allocation10 + $0x90] sm:$0xff]
    %v1535 = vld [vmem:[#allocation10 + $0x98] sm:$0xff]
    %v1536 = vld [vmem:[#allocation10 + $0xa0] sm:$0xff]
    %v1537 = vld [vmem:[#allocation10 + $0xa8] sm:$0xff]
    %v1538 = vld [vmem:[#allocation10 + $0xb0] sm:$0xff]
    %v1539 = vld [vmem:[#allocation10 + $0xb8] sm:$0xff]
    %v1540 = vld [vmem:[#allocation10 + $0xc0] sm:$0xff]
    %v1541 = vld [vmem:[#allocation10 + $0xc8] sm:$0xff]
    %v1542 = vld [vmem:[#allocation10 + $0xd0] sm:$0xff]
    %v1543 = vld [vmem:[#allocation10 + $0xd8] sm:$0xff]
    %v1544 = vld [vmem:[#allocation10 + $0xe0] sm:$0xff]
    %v1545 = vld [vmem:[#allocation10 + $0xe8] sm:$0xff]
    %v1546 = vld [vmem:[#allocation10 + $0xf0] sm:$0xff]
    %v1547 = vld [vmem:[#allocation10 + $0xf8] sm:$0xff]
    %v1548 = vld [vmem:[#allocation10 + $0x100] sm:$0xff]
    %v1549 = vld [vmem:[#allocation10 + $0x108] sm:$0xff]
    %v1550 = vld [vmem:[#allocation10 + $0x110] sm:$0xff]
    %v1551 = vld [vmem:[#allocation10 + $0x118] sm:$0xff]
    %v1552 = vld [vmem:[#allocation10 + $0x120] sm:$0xff]
    %v1553 = vld [vmem:[#allocation10 + $0x128] sm:$0xff]
    %v1554 = vld [vmem:[#allocation10 + $0x130] sm:$0xff]
    %v1555 = vld [vmem:[#allocation10 + $0x138] sm:$0xff]
    %v1556 = vld [vmem:[#allocation10 + $0x140] sm:$0xff]
    %v1557 = vld [vmem:[#allocation10 + $0x148] sm:$0xff]
    %v1558 = vld [vmem:[#allocation10 + $0x150] sm:$0xff]
    %v1559 = vld [vmem:[#allocation10 + $0x158] sm:$0xff]
    %v1560 = vld [vmem:[#allocation10 + $0x160] sm:$0xff]
    %v1561 = vld [vmem:[#allocation10 + $0x168] sm:$0xff]
    %v1562 = vld [vmem:[#allocation10 + $0x170] sm:$0xff]
    %v1563 = vld [vmem:[#allocation10 + $0x178] sm:$0xff]
    %v1564 = vld [vmem:[#allocation10 + $0x180] sm:$0xff]
    %v1565 = vld [vmem:[#allocation10 + $0x188] sm:$0xff]
    %v1566 = vld [vmem:[#allocation10 + $0x190] sm:$0xff]
    %v1567 = vld [vmem:[#allocation10 + $0x198] sm:$0xff]
    %v1568 = vld [vmem:[#allocation10 + $0x1a0] sm:$0xff]
    %v1569 = vld [vmem:[#allocation10 + $0x1a8] sm:$0xff]
    %v1570 = vld [vmem:[#allocation10 + $0x1b0] sm:$0xff]
    %v1571 = vld [vmem:[#allocation10 + $0x1b8] sm:$0xff]
    %v1572 = vld [vmem:[#allocation10 + $0x1c0] sm:$0xff]
    %v1573 = vld [vmem:[#allocation10 + $0x1c8] sm:$0xff]
    %v1574 = vld [vmem:[#allocation10 + $0x1d0] sm:$0xff]
    %v1575 = vld [vmem:[#allocation10 + $0x1d8] sm:$0xff]
    %v1576 = vld [vmem:[#allocation10 + $0x1e0] sm:$0xff]
    %v1577 = vld [vmem:[#allocation10 + $0x1e8] sm:$0xff]
    %v1578 = vld [vmem:[#allocation10 + $0x1f0] sm:$0xff]
    %v1579 = vld [vmem:[#allocation10 + $0x1f8] sm:$0xff]
    %v1580 = vld [vmem:[#allocation10 + $0x200] sm:$0xff]
    %v1581 = vld [vmem:[#allocation10 + $0x208] sm:$0xff]
    %v1582 = vld [vmem:[#allocation10 + $0x210] sm:$0xff]
    %v1583 = vld [vmem:[#allocation10 + $0x218] sm:$0xff]
    %v1584 = vld [vmem:[#allocation10 + $0x220] sm:$0xff]
    %v1585 = vld [vmem:[#allocation10 + $0x228] sm:$0xff]
    %v1586 = vld [vmem:[#allocation10 + $0x230] sm:$0xff]
    %v1587 = vld [vmem:[#allocation10 + $0x238] sm:$0xff]
    %v1588 = vld [vmem:[#allocation10 + $0x240] sm:$0xff]
    %v1589 = vld [vmem:[#allocation10 + $0x248] sm:$0xff]
    %v1590 = vld [vmem:[#allocation10 + $0x250] sm:$0xff]
    %v1591 = vld [vmem:[#allocation10 + $0x258] sm:$0xff]
    %v1592 = vld [vmem:[#allocation10 + $0x260] sm:$0xff]
    %v1593 = vld [vmem:[#allocation10 + $0x268] sm:$0xff]
    %v1594 = vld [vmem:[#allocation10 + $0x270] sm:$0xff]
    %v1595 = vld [vmem:[#allocation10 + $0x278] sm:$0xff]
    %v1596 = vld [vmem:[#allocation10 + $0x280] sm:$0xff]
    %v1597 = vld [vmem:[#allocation10 + $0x288] sm:$0xff]
    %v1598 = vld [vmem:[#allocation10 + $0x290] sm:$0xff]
    %v1599 = vld [vmem:[#allocation10 + $0x298] sm:$0xff]
    %v1600 = vld [vmem:[#allocation10 + $0x2a0] sm:$0xff]
    %v1601 = vld [vmem:[#allocation10 + $0x2a8] sm:$0xff]
    %v1602 = vld [vmem:[#allocation10 + $0x2b0] sm:$0xff]
    %v1603 = vld [vmem:[#allocation10 + $0x2b8] sm:$0xff]
    %v1604 = vld [vmem:[#allocation10 + $0x2c0] sm:$0xff]
    %v1605 = vld [vmem:[#allocation10 + $0x2c8] sm:$0xff]
    %v1606 = vld [vmem:[#allocation10 + $0x2d0] sm:$0xff]
    %v1607 = vld [vmem:[#allocation10 + $0x2d8] sm:$0xff]
    %v1608 = vld [vmem:[#allocation10 + $0x2e0] sm:$0xff]
    %v1609 = vld [vmem:[#allocation10 + $0x2e8] sm:$0xff]
    %v1610 = vld [vmem:[#allocation10 + $0x2f0] sm:$0xff]
    %v1611 = vld [vmem:[#allocation10 + $0x2f8] sm:$0xff]
    %v1612 = vld [vmem:[#allocation10 + $0x300] sm:$0xff]
    %v1613 = vld [vmem:[#allocation10 + $0x308] sm:$0xff]
    %v1614 = vld [vmem:[#allocation10 + $0x310] sm:$0xff]
    %v1615 = vld [vmem:[#allocation10 + $0x318] sm:$0xff]
    %v1616 = vld [vmem:[#allocation10 + $0x320] sm:$0xff]
    %v1617 = vld [vmem:[#allocation10 + $0x328] sm:$0xff]
    %v1618 = vld [vmem:[#allocation10 + $0x330] sm:$0xff]
    %v1619 = vld [vmem:[#allocation10 + $0x338] sm:$0xff]
    %v1620 = vld [vmem:[#allocation10 + $0x340] sm:$0xff]
    %v1621 = vld [vmem:[#allocation10 + $0x348] sm:$0xff]
    %v1622 = vld [vmem:[#allocation10 + $0x350] sm:$0xff]
    %v1623 = vld [vmem:[#allocation10 + $0x358] sm:$0xff]
    %v1624 = vld [vmem:[#allocation10 + $0x360] sm:$0xff]
    %v1625 = vld [vmem:[#allocation10 + $0x368] sm:$0xff]
    %v1626 = vld [vmem:[#allocation10 + $0x370] sm:$0xff]
    %v1627 = vld [vmem:[#allocation10 + $0x378] sm:$0xff]
    %v1628 = vld [vmem:[#allocation10 + $0x380] sm:$0xff]
    %v1629 = vld [vmem:[#allocation10 + $0x388] sm:$0xff]
    %v1630 = vld [vmem:[#allocation10 + $0x390] sm:$0xff]
    %v1631 = vld [vmem:[#allocation10 + $0x398] sm:$0xff]
    %v1632 = vld [vmem:[#allocation10 + $0x3a0] sm:$0xff]
    %v1633 = vld [vmem:[#allocation10 + $0x3a8] sm:$0xff]
    %v1634 = vld [vmem:[#allocation10 + $0x3b0] sm:$0xff]
    %v1635 = vld [vmem:[#allocation10 + $0x3b8] sm:$0xff]
    %v1636 = vld [vmem:[#allocation10 + $0x3c0] sm:$0xff]
    %v1637 = vld [vmem:[#allocation10 + $0x3c8] sm:$0xff]
    %v1638 = vld [vmem:[#allocation10 + $0x3d0] sm:$0xff]
    %v1639 = vld [vmem:[#allocation10 + $0x3d8] sm:$0xff]
    %v1640 = vld [vmem:[#allocation10 + $0x3e0] sm:$0xff]
    %v1641 = vld [vmem:[#allocation10 + $0x3e8] sm:$0xff]
    %v1642 = vld [vmem:[#allocation10 + $0x3f0] sm:$0xff]
    %v1643 = vld [vmem:[#allocation10 + $0x3f8] sm:$0xff]
    %v1772 = vunpack.c.l.b16 %v1516
    %v1773 = vunpack.c.h.b16 %v1516
    %v1774 = vunpack.c.l.b16 %v1517
    %v1775 = vunpack.c.h.b16 %v1517
    %v1776 = vunpack.c.l.b16 %v1518
    %v1777 = vunpack.c.h.b16 %v1518
    %v1778 = vunpack.c.l.b16 %v1519
    %v1779 = vunpack.c.h.b16 %v1519
    %v1780 = vunpack.c.l.b16 %v1520
    %v1781 = vunpack.c.h.b16 %v1520
    %v1782 = vunpack.c.l.b16 %v1521
    %v1783 = vunpack.c.h.b16 %v1521
    %v1784 = vunpack.c.l.b16 %v1522
    %v1785 = vunpack.c.h.b16 %v1522
    %v1786 = vunpack.c.l.b16 %v1523
    %v1787 = vunpack.c.h.b16 %v1523
    %v1788 = vunpack.c.l.b16 %v1524
    %v1789 = vunpack.c.h.b16 %v1524
    %v1790 = vunpack.c.l.b16 %v1525
    %v1791 = vunpack.c.h.b16 %v1525
    %v1792 = vunpack.c.l.b16 %v1526
    %v1793 = vunpack.c.h.b16 %v1526
    %v1794 = vunpack.c.l.b16 %v1527
    %v1795 = vunpack.c.h.b16 %v1527
    %v1796 = vunpack.c.l.b16 %v1528
    %v1797 = vunpack.c.h.b16 %v1528
    %v1798 = vunpack.c.l.b16 %v1529
    %v1799 = vunpack.c.h.b16 %v1529
    %v1800 = vunpack.c.l.b16 %v1530
    %v1801 = vunpack.c.h.b16 %v1530
    %v1802 = vunpack.c.l.b16 %v1531
    %v1803 = vunpack.c.h.b16 %v1531
    %v1804 = vunpack.c.l.b16 %v1532
    %v1805 = vunpack.c.h.b16 %v1532
    %v1806 = vunpack.c.l.b16 %v1533
    %v1807 = vunpack.c.h.b16 %v1533
    %v1808 = vunpack.c.l.b16 %v1534
    %v1809 = vunpack.c.h.b16 %v1534
    %v1810 = vunpack.c.l.b16 %v1535
    %v1811 = vunpack.c.h.b16 %v1535
    %v1812 = vunpack.c.l.b16 %v1536
    %v1813 = vunpack.c.h.b16 %v1536
    %v1814 = vunpack.c.l.b16 %v1537
    %v1815 = vunpack.c.h.b16 %v1537
    %v1816 = vunpack.c.l.b16 %v1538
    %v1817 = vunpack.c.h.b16 %v1538
    %v1818 = vunpack.c.l.b16 %v1539
    %v1819 = vunpack.c.h.b16 %v1539
    %v1820 = vunpack.c.l.b16 %v1540
    %v1821 = vunpack.c.h.b16 %v1540
    %v1822 = vunpack.c.l.b16 %v1541
    %v1823 = vunpack.c.h.b16 %v1541
    %v1824 = vunpack.c.l.b16 %v1542
    %v1825 = vunpack.c.h.b16 %v1542
    %v1826 = vunpack.c.l.b16 %v1543
    %v1827 = vunpack.c.h.b16 %v1543
    %v1828 = vunpack.c.l.b16 %v1544
    %v1829 = vunpack.c.h.b16 %v1544
    %v1830 = vunpack.c.l.b16 %v1545
    %v1831 = vunpack.c.h.b16 %v1545
    %v1832 = vunpack.c.l.b16 %v1546
    %v1833 = vunpack.c.h.b16 %v1546
    %v1834 = vunpack.c.l.b16 %v1547
    %v1835 = vunpack.c.h.b16 %v1547
    %v1836 = vunpack.c.l.b16 %v1548
    %v1837 = vunpack.c.h.b16 %v1548
    %v1838 = vunpack.c.l.b16 %v1549
    %v1839 = vunpack.c.h.b16 %v1549
    %v1840 = vunpack.c.l.b16 %v1550
    %v1841 = vunpack.c.h.b16 %v1550
    %v1842 = vunpack.c.l.b16 %v1551
    %v1843 = vunpack.c.h.b16 %v1551
    %v1844 = vunpack.c.l.b16 %v1552
    %v1845 = vunpack.c.h.b16 %v1552
    %v1846 = vunpack.c.l.b16 %v1553
    %v1847 = vunpack.c.h.b16 %v1553
    %v1848 = vunpack.c.l.b16 %v1554
    %v1849 = vunpack.c.h.b16 %v1554
    %v1850 = vunpack.c.l.b16 %v1555
    %v1851 = vunpack.c.h.b16 %v1555
    %v1852 = vunpack.c.l.b16 %v1556
    %v1853 = vunpack.c.h.b16 %v1556
    %v1854 = vunpack.c.l.b16 %v1557
    %v1855 = vunpack.c.h.b16 %v1557
    %v1856 = vunpack.c.l.b16 %v1558
    %v1857 = vunpack.c.h.b16 %v1558
    %v1858 = vunpack.c.l.b16 %v1559
    %v1859 = vunpack.c.h.b16 %v1559
    %v1860 = vunpack.c.l.b16 %v1560
    %v1861 = vunpack.c.h.b16 %v1560
    %v1862 = vunpack.c.l.b16 %v1561
    %v1863 = vunpack.c.h.b16 %v1561
    %v1864 = vunpack.c.l.b16 %v1562
    %v1865 = vunpack.c.h.b16 %v1562
    %v1866 = vunpack.c.l.b16 %v1563
    %v1867 = vunpack.c.h.b16 %v1563
    %v1868 = vunpack.c.l.b16 %v1564
    %v1869 = vunpack.c.h.b16 %v1564
    %v1870 = vunpack.c.l.b16 %v1565
    %v1871 = vunpack.c.h.b16 %v1565
    %v1872 = vunpack.c.l.b16 %v1566
    %v1873 = vunpack.c.h.b16 %v1566
    %v1874 = vunpack.c.l.b16 %v1567
    %v1875 = vunpack.c.h.b16 %v1567
    %v1876 = vunpack.c.l.b16 %v1568
    %v1877 = vunpack.c.h.b16 %v1568
    %v1878 = vunpack.c.l.b16 %v1569
    %v1879 = vunpack.c.h.b16 %v1569
    %v1880 = vunpack.c.l.b16 %v1570
    %v1881 = vunpack.c.h.b16 %v1570
    %v1882 = vunpack.c.l.b16 %v1571
    %v1883 = vunpack.c.h.b16 %v1571
    %v1884 = vunpack.c.l.b16 %v1572
    %v1885 = vunpack.c.h.b16 %v1572
    %v1886 = vunpack.c.l.b16 %v1573
    %v1887 = vunpack.c.h.b16 %v1573
    %v1888 = vunpack.c.l.b16 %v1574
    %v1889 = vunpack.c.h.b16 %v1574
    %v1890 = vunpack.c.l.b16 %v1575
    %v1891 = vunpack.c.h.b16 %v1575
    %v1892 = vunpack.c.l.b16 %v1576
    %v1893 = vunpack.c.h.b16 %v1576
    %v1894 = vunpack.c.l.b16 %v1577
    %v1895 = vunpack.c.h.b16 %v1577
    %v1896 = vunpack.c.l.b16 %v1578
    %v1897 = vunpack.c.h.b16 %v1578
    %v1898 = vunpack.c.l.b16 %v1579
    %v1899 = vunpack.c.h.b16 %v1579
    %v1900 = vunpack.c.l.b16 %v1580
    %v1901 = vunpack.c.h.b16 %v1580
    %v1902 = vunpack.c.l.b16 %v1581
    %v1903 = vunpack.c.h.b16 %v1581
    %v1904 = vunpack.c.l.b16 %v1582
    %v1905 = vunpack.c.h.b16 %v1582
    %v1906 = vunpack.c.l.b16 %v1583
    %v1907 = vunpack.c.h.b16 %v1583
    %v1908 = vunpack.c.l.b16 %v1584
    %v1909 = vunpack.c.h.b16 %v1584
    %v1910 = vunpack.c.l.b16 %v1585
    %v1911 = vunpack.c.h.b16 %v1585
    %v1912 = vunpack.c.l.b16 %v1586
    %v1913 = vunpack.c.h.b16 %v1586
    %v1914 = vunpack.c.l.b16 %v1587
    %v1915 = vunpack.c.h.b16 %v1587
    %v1916 = vunpack.c.l.b16 %v1588
    %v1917 = vunpack.c.h.b16 %v1588
    %v1918 = vunpack.c.l.b16 %v1589
    %v1919 = vunpack.c.h.b16 %v1589
    %v1920 = vunpack.c.l.b16 %v1590
    %v1921 = vunpack.c.h.b16 %v1590
    %v1922 = vunpack.c.l.b16 %v1591
    %v1923 = vunpack.c.h.b16 %v1591
    %v1924 = vunpack.c.l.b16 %v1592
    %v1925 = vunpack.c.h.b16 %v1592
    %v1926 = vunpack.c.l.b16 %v1593
    %v1927 = vunpack.c.h.b16 %v1593
    %v1928 = vunpack.c.l.b16 %v1594
    %v1929 = vunpack.c.h.b16 %v1594
    %v1930 = vunpack.c.l.b16 %v1595
    %v1931 = vunpack.c.h.b16 %v1595
    %v1932 = vunpack.c.l.b16 %v1596
    %v1933 = vunpack.c.h.b16 %v1596
    %v1934 = vunpack.c.l.b16 %v1597
    %v1935 = vunpack.c.h.b16 %v1597
    %v1936 = vunpack.c.l.b16 %v1598
    %v1937 = vunpack.c.h.b16 %v1598
    %v1938 = vunpack.c.l.b16 %v1599
    %v1939 = vunpack.c.h.b16 %v1599
    %v1940 = vunpack.c.l.b16 %v1600
    %v1941 = vunpack.c.h.b16 %v1600
    %v1942 = vunpack.c.l.b16 %v1601
    %v1943 = vunpack.c.h.b16 %v1601
    %v1944 = vunpack.c.l.b16 %v1602
    %v1945 = vunpack.c.h.b16 %v1602
    %v1946 = vunpack.c.l.b16 %v1603
    %v1947 = vunpack.c.h.b16 %v1603
    %v1948 = vunpack.c.l.b16 %v1604
    %v1949 = vunpack.c.h.b16 %v1604
    %v1950 = vunpack.c.l.b16 %v1605
    %v1951 = vunpack.c.h.b16 %v1605
    %v1952 = vunpack.c.l.b16 %v1606
    %v1953 = vunpack.c.h.b16 %v1606
    %v1954 = vunpack.c.l.b16 %v1607
    %v1955 = vunpack.c.h.b16 %v1607
    %v1956 = vunpack.c.l.b16 %v1608
    %v1957 = vunpack.c.h.b16 %v1608
    %v1958 = vunpack.c.l.b16 %v1609
    %v1959 = vunpack.c.h.b16 %v1609
    %v1960 = vunpack.c.l.b16 %v1610
    %v1961 = vunpack.c.h.b16 %v1610
    %v1962 = vunpack.c.l.b16 %v1611
    %v1963 = vunpack.c.h.b16 %v1611
    %v1964 = vunpack.c.l.b16 %v1612
    %v1965 = vunpack.c.h.b16 %v1612
    %v1966 = vunpack.c.l.b16 %v1613
    %v1967 = vunpack.c.h.b16 %v1613
    %v1968 = vunpack.c.l.b16 %v1614
    %v1969 = vunpack.c.h.b16 %v1614
    %v1970 = vunpack.c.l.b16 %v1615
    %v1971 = vunpack.c.h.b16 %v1615
    %v1972 = vunpack.c.l.b16 %v1616
    %v1973 = vunpack.c.h.b16 %v1616
    %v1974 = vunpack.c.l.b16 %v1617
    %v1975 = vunpack.c.h.b16 %v1617
    %v1976 = vunpack.c.l.b16 %v1618
    %v1977 = vunpack.c.h.b16 %v1618
    %v1978 = vunpack.c.l.b16 %v1619
    %v1979 = vunpack.c.h.b16 %v1619
    %v1980 = vunpack.c.l.b16 %v1620
    %v1981 = vunpack.c.h.b16 %v1620
    %v1982 = vunpack.c.l.b16 %v1621
    %v1983 = vunpack.c.h.b16 %v1621
    %v1984 = vunpack.c.l.b16 %v1622
    %v1985 = vunpack.c.h.b16 %v1622
    %v1986 = vunpack.c.l.b16 %v1623
    %v1987 = vunpack.c.h.b16 %v1623
    %v1988 = vunpack.c.l.b16 %v1624
    %v1989 = vunpack.c.h.b16 %v1624
    %v1990 = vunpack.c.l.b16 %v1625
    %v1991 = vunpack.c.h.b16 %v1625
    %v1992 = vunpack.c.l.b16 %v1626
    %v1993 = vunpack.c.h.b16 %v1626
    %v1994 = vunpack.c.l.b16 %v1627
    %v1995 = vunpack.c.h.b16 %v1627
    %v1996 = vunpack.c.l.b16 %v1628
    %v1997 = vunpack.c.h.b16 %v1628
    %v1998 = vunpack.c.l.b16 %v1629
    %v1999 = vunpack.c.h.b16 %v1629
    %v2000 = vunpack.c.l.b16 %v1630
    %v2001 = vunpack.c.h.b16 %v1630
    %v2002 = vunpack.c.l.b16 %v1631
    %v2003 = vunpack.c.h.b16 %v1631
    %v2004 = vunpack.c.l.b16 %v1632
    %v2005 = vunpack.c.h.b16 %v1632
    %v2006 = vunpack.c.l.b16 %v1633
    %v2007 = vunpack.c.h.b16 %v1633
    %v2008 = vunpack.c.l.b16 %v1634
    %v2009 = vunpack.c.h.b16 %v1634
    %v2010 = vunpack.c.l.b16 %v1635
    %v2011 = vunpack.c.h.b16 %v1635
    %v2012 = vunpack.c.l.b16 %v1636
    %v2013 = vunpack.c.h.b16 %v1636
    %v2014 = vunpack.c.l.b16 %v1637
    %v2015 = vunpack.c.h.b16 %v1637
    %v2016 = vunpack.c.l.b16 %v1638
    %v2017 = vunpack.c.h.b16 %v1638
    %v2018 = vunpack.c.l.b16 %v1639
    %v2019 = vunpack.c.h.b16 %v1639
    %v2020 = vunpack.c.l.b16 %v1640
    %v2021 = vunpack.c.h.b16 %v1640
    %v2022 = vunpack.c.l.b16 %v1641
    %v2023 = vunpack.c.h.b16 %v1641
    %v2024 = vunpack.c.l.b16 %v1642
    %v2025 = vunpack.c.h.b16 %v1642
    %v2026 = vunpack.c.l.b16 %v1643
    %v2027 = vunpack.c.h.b16 %v1643
    %v2028 = vpack.c.b16 %v1788, %v1772
    %v2029 = vpack.c.b16 %v1789, %v1773
    %v2030 = vpack.c.b16 %v1790, %v1774
    %v2031 = vpack.c.b16 %v1791, %v1775
    %v2032 = vpack.c.b16 %v1792, %v1776
    %v2033 = vpack.c.b16 %v1793, %v1777
    %v2034 = vpack.c.b16 %v1794, %v1778
    %v2035 = vpack.c.b16 %v1795, %v1779
    %v2036 = vpack.c.b16 %v1796, %v1780
    %v2037 = vpack.c.b16 %v1797, %v1781
    %v2038 = vpack.c.b16 %v1798, %v1782
    %v2039 = vpack.c.b16 %v1799, %v1783
    %v2040 = vpack.c.b16 %v1800, %v1784
    %v2041 = vpack.c.b16 %v1801, %v1785
    %v2042 = vpack.c.b16 %v1802, %v1786
    %v2043 = vpack.c.b16 %v1803, %v1787
    %v2044 = vpack.c.b16 %v1820, %v1804
    %v2045 = vpack.c.b16 %v1821, %v1805
    %v2046 = vpack.c.b16 %v1822, %v1806
    %v2047 = vpack.c.b16 %v1823, %v1807
    %v2048 = vpack.c.b16 %v1824, %v1808
    %v2049 = vpack.c.b16 %v1825, %v1809
    %v2050 = vpack.c.b16 %v1826, %v1810
    %v2051 = vpack.c.b16 %v1827, %v1811
    %v2052 = vpack.c.b16 %v1828, %v1812
    %v2053 = vpack.c.b16 %v1829, %v1813
    %v2054 = vpack.c.b16 %v1830, %v1814
    %v2055 = vpack.c.b16 %v1831, %v1815
    %v2056 = vpack.c.b16 %v1832, %v1816
    %v2057 = vpack.c.b16 %v1833, %v1817
    %v2058 = vpack.c.b16 %v1834, %v1818
    %v2059 = vpack.c.b16 %v1835, %v1819
    %v2060 = vpack.c.b16 %v1852, %v1836
    %v2061 = vpack.c.b16 %v1853, %v1837
    %v2062 = vpack.c.b16 %v1854, %v1838
    %v2063 = vpack.c.b16 %v1855, %v1839
    %v2064 = vpack.c.b16 %v1856, %v1840
    %v2065 = vpack.c.b16 %v1857, %v1841
    %v2066 = vpack.c.b16 %v1858, %v1842
    %v2067 = vpack.c.b16 %v1859, %v1843
    %v2068 = vpack.c.b16 %v1860, %v1844
    %v2069 = vpack.c.b16 %v1861, %v1845
    %v2070 = vpack.c.b16 %v1862, %v1846
    %v2071 = vpack.c.b16 %v1863, %v1847
    %v2072 = vpack.c.b16 %v1864, %v1848
    %v2073 = vpack.c.b16 %v1865, %v1849
    %v2074 = vpack.c.b16 %v1866, %v1850
    %v2075 = vpack.c.b16 %v1867, %v1851
    %v2076 = vpack.c.b16 %v1884, %v1868
    %v2077 = vpack.c.b16 %v1885, %v1869
    %v2078 = vpack.c.b16 %v1886, %v1870
    %v2079 = vpack.c.b16 %v1887, %v1871
    %v2080 = vpack.c.b16 %v1888, %v1872
    %v2081 = vpack.c.b16 %v1889, %v1873
    %v2082 = vpack.c.b16 %v1890, %v1874
    %v2083 = vpack.c.b16 %v1891, %v1875
    %v2084 = vpack.c.b16 %v1892, %v1876
    %v2085 = vpack.c.b16 %v1893, %v1877
    %v2086 = vpack.c.b16 %v1894, %v1878
    %v2087 = vpack.c.b16 %v1895, %v1879
    %v2088 = vpack.c.b16 %v1896, %v1880
    %v2089 = vpack.c.b16 %v1897, %v1881
    %v2090 = vpack.c.b16 %v1898, %v1882
    %v2091 = vpack.c.b16 %v1899, %v1883
    %v2092 = vpack.c.b16 %v1916, %v1900
    %v2093 = vpack.c.b16 %v1917, %v1901
    %v2094 = vpack.c.b16 %v1918, %v1902
    %v2095 = vpack.c.b16 %v1919, %v1903
    %v2096 = vpack.c.b16 %v1920, %v1904
    %v2097 = vpack.c.b16 %v1921, %v1905
    %v2098 = vpack.c.b16 %v1922, %v1906
    %v2099 = vpack.c.b16 %v1923, %v1907
    %v2100 = vpack.c.b16 %v1924, %v1908
    %v2101 = vpack.c.b16 %v1925, %v1909
    %v2102 = vpack.c.b16 %v1926, %v1910
    %v2103 = vpack.c.b16 %v1927, %v1911
    %v2104 = vpack.c.b16 %v1928, %v1912
    %v2105 = vpack.c.b16 %v1929, %v1913
    %v2106 = vpack.c.b16 %v1930, %v1914
    %v2107 = vpack.c.b16 %v1931, %v1915
    %v2108 = vpack.c.b16 %v1948, %v1932
    %v2109 = vpack.c.b16 %v1949, %v1933
    %v2110 = vpack.c.b16 %v1950, %v1934
    %v2111 = vpack.c.b16 %v1951, %v1935
    %v2112 = vpack.c.b16 %v1952, %v1936
    %v2113 = vpack.c.b16 %v1953, %v1937
    %v2114 = vpack.c.b16 %v1954, %v1938
    %v2115 = vpack.c.b16 %v1955, %v1939
    %v2116 = vpack.c.b16 %v1956, %v1940
    %v2117 = vpack.c.b16 %v1957, %v1941
    %v2118 = vpack.c.b16 %v1958, %v1942
    %v2119 = vpack.c.b16 %v1959, %v1943
    %v2120 = vpack.c.b16 %v1960, %v1944
    %v2121 = vpack.c.b16 %v1961, %v1945
    %v2122 = vpack.c.b16 %v1962, %v1946
    %v2123 = vpack.c.b16 %v1963, %v1947
    %v2124 = vpack.c.b16 %v1980, %v1964
    %v2125 = vpack.c.b16 %v1981, %v1965
    %v2126 = vpack.c.b16 %v1982, %v1966
    %v2127 = vpack.c.b16 %v1983, %v1967
    %v2128 = vpack.c.b16 %v1984, %v1968
    %v2129 = vpack.c.b16 %v1985, %v1969
    %v2130 = vpack.c.b16 %v1986, %v1970
    %v2131 = vpack.c.b16 %v1987, %v1971
    %v2132 = vpack.c.b16 %v1988, %v1972
    %v2133 = vpack.c.b16 %v1989, %v1973
    %v2134 = vpack.c.b16 %v1990, %v1974
    %v2135 = vpack.c.b16 %v1991, %v1975
    %v2136 = vpack.c.b16 %v1992, %v1976
    %v2137 = vpack.c.b16 %v1993, %v1977
    %v2138 = vpack.c.b16 %v1994, %v1978
    %v2139 = vpack.c.b16 %v1995, %v1979
    %v2140 = vpack.c.b16 %v2012, %v1996
    %v2141 = vpack.c.b16 %v2013, %v1997
    %v2142 = vpack.c.b16 %v2014, %v1998
    %v2143 = vpack.c.b16 %v2015, %v1999
    %v2144 = vpack.c.b16 %v2016, %v2000
    %v2145 = vpack.c.b16 %v2017, %v2001
    %v2146 = vpack.c.b16 %v2018, %v2002
    %v2147 = vpack.c.b16 %v2019, %v2003
    %v2148 = vpack.c.b16 %v2020, %v2004
    %v2149 = vpack.c.b16 %v2021, %v2005
    %v2150 = vpack.c.b16 %v2022, %v2006
    %v2151 = vpack.c.b16 %v2023, %v2007
    %v2152 = vpack.c.b16 %v2024, %v2008
    %v2153 = vpack.c.b16 %v2025, %v2009
    %v2154 = vpack.c.b16 %v2026, %v2010
    %v2155 = vpack.c.b16 %v2027, %v2011
    %2284 = vmatpush.bf16.msra.mxu0 %v2140
    %2285 = vmatpush.bf16.msra.mxu0 %v2124
    %2286 = vmatpush.bf16.msra.mxu0 %v2108
    %2287 = vmatpush.bf16.msra.mxu0 %v2092
    %2288 = vmatpush.bf16.msra.mxu0 %v2076
    %2289 = vmatpush.bf16.msra.mxu0 %v2060
    %2290 = vmatpush.bf16.msra.mxu0 %v2044
    %2291 = vmatpush.bf16.msra.mxu0 %v2028
    %2292 = vmatmul.bf16.gmra.mxu0 %v1515
    %v2293 = vpop.f32.mrf.mxu0
    %v2294 = vadd.f32 0.0, %v2293
    %v2295 = vpop.f32.mrf.mxu0
    %v2296 = vadd.f32 0.0, %v2295
    %2297 = vdwg.mxu0
    %2298 = vmatpush.bf16.msra.mxu0 %v2141
    %2299 = vmatpush.bf16.msra.mxu0 %v2125
    %2300 = vmatpush.bf16.msra.mxu0 %v2109
    %2301 = vmatpush.bf16.msra.mxu0 %v2093
    %2302 = vmatpush.bf16.msra.mxu0 %v2077
    %2303 = vmatpush.bf16.msra.mxu0 %v2061
    %2304 = vmatpush.bf16.msra.mxu0 %v2045
    %2305 = vmatpush.bf16.msra.mxu0 %v2029
    %2306 = vmatmul.bf16.gmra.mxu0 %v1515
    %v2307 = vpop.f32.mrf.mxu0
    %v2308 = vadd.f32 0.0, %v2307
    %v2309 = vpop.f32.mrf.mxu0
    %v2310 = vadd.f32 0.0, %v2309
    %2311 = vdwg.mxu0
    %2312 = vmatpush.bf16.msra.mxu0 %v2142
    %2313 = vmatpush.bf16.msra.mxu0 %v2126
    %2314 = vmatpush.bf16.msra.mxu0 %v2110
    %2315 = vmatpush.bf16.msra.mxu0 %v2094
    %2316 = vmatpush.bf16.msra.mxu0 %v2078
    %2317 = vmatpush.bf16.msra.mxu0 %v2062
    %2318 = vmatpush.bf16.msra.mxu0 %v2046
    %2319 = vmatpush.bf16.msra.mxu0 %v2030
    %2320 = vmatmul.bf16.gmra.mxu0 %v1515
    %v2321 = vpop.f32.mrf.mxu0
    %v2322 = vadd.f32 0.0, %v2321
    %v2323 = vpop.f32.mrf.mxu0
    %v2324 = vadd.f32 0.0, %v2323
    %2325 = vdwg.mxu0
    %2326 = vmatpush.bf16.msra.mxu0 %v2143
    %2327 = vmatpush.bf16.msra.mxu0 %v2127
    %2328 = vmatpush.bf16.msra.mxu0 %v2111
    %2329 = vmatpush.bf16.msra.mxu0 %v2095
    %2330 = vmatpush.bf16.msra.mxu0 %v2079
    %2331 = vmatpush.bf16.msra.mxu0 %v2063
    %2332 = vmatpush.bf16.msra.mxu0 %v2047
    %2333 = vmatpush.bf16.msra.mxu0 %v2031
    %2334 = vmatmul.bf16.gmra.mxu0 %v1515
    %v2335 = vpop.f32.mrf.mxu0
    %v2336 = vadd.f32 0.0, %v2335
    %v2337 = vpop.f32.mrf.mxu0
    %v2338 = vadd.f32 0.0, %v2337
    %2339 = vdwg.mxu0
    %2340 = vmatpush.bf16.msra.mxu0 %v2144
    %2341 = vmatpush.bf16.msra.mxu0 %v2128
    %2342 = vmatpush.bf16.msra.mxu0 %v2112
    %2343 = vmatpush.bf16.msra.mxu0 %v2096
    %2344 = vmatpush.bf16.msra.mxu0 %v2080
    %2345 = vmatpush.bf16.msra.mxu0 %v2064
    %2346 = vmatpush.bf16.msra.mxu0 %v2048
    %2347 = vmatpush.bf16.msra.mxu0 %v2032
    %2348 = vmatmul.bf16.gmra.mxu0 %v1515
    %v2349 = vpop.f32.mrf.mxu0
    %v2350 = vadd.f32 0.0, %v2349
    %v2351 = vpop.f32.mrf.mxu0
    %v2352 = vadd.f32 0.0, %v2351
    %2353 = vdwg.mxu0
    %2354 = vmatpush.bf16.msra.mxu0 %v2145
    %2355 = vmatpush.bf16.msra.mxu0 %v2129
    %2356 = vmatpush.bf16.msra.mxu0 %v2113
    %2357 = vmatpush.bf16.msra.mxu0 %v2097
    %2358 = vmatpush.bf16.msra.mxu0 %v2081
    %2359 = vmatpush.bf16.msra.mxu0 %v2065
    %2360 = vmatpush.bf16.msra.mxu0 %v2049
    %2361 = vmatpush.bf16.msra.mxu0 %v2033
    %2362 = vmatmul.bf16.gmra.mxu0 %v1515
    %v2363 = vpop.f32.mrf.mxu0
    %v2364 = vadd.f32 0.0, %v2363
    %v2365 = vpop.f32.mrf.mxu0
    %v2366 = vadd.f32 0.0, %v2365
    %2367 = vdwg.mxu0
    %2368 = vmatpush.bf16.msra.mxu0 %v2146
    %2369 = vmatpush.bf16.msra.mxu0 %v2130
    %2370 = vmatpush.bf16.msra.mxu0 %v2114
    %2371 = vmatpush.bf16.msra.mxu0 %v2098
    %2372 = vmatpush.bf16.msra.mxu0 %v2082
    %2373 = vmatpush.bf16.msra.mxu0 %v2066
    %2374 = vmatpush.bf16.msra.mxu0 %v2050
    %2375 = vmatpush.bf16.msra.mxu0 %v2034
    %2376 = vmatmul.bf16.gmra.mxu0 %v1515
    %v2377 = vpop.f32.mrf.mxu0
    %v2378 = vadd.f32 0.0, %v2377
    %v2379 = vpop.f32.mrf.mxu0
    %v2380 = vadd.f32 0.0, %v2379
    %2381 = vdwg.mxu0
    %2382 = vmatpush.bf16.msra.mxu0 %v2147
    %2383 = vmatpush.bf16.msra.mxu0 %v2131
    %2384 = vmatpush.bf16.msra.mxu0 %v2115
    %2385 = vmatpush.bf16.msra.mxu0 %v2099
    %2386 = vmatpush.bf16.msra.mxu0 %v2083
    %2387 = vmatpush.bf16.msra.mxu0 %v2067
    %2388 = vmatpush.bf16.msra.mxu0 %v2051
    %2389 = vmatpush.bf16.msra.mxu0 %v2035
    %2390 = vmatmul.bf16.gmra.mxu0 %v1515
    %v2391 = vpop.f32.mrf.mxu0
    %v2392 = vadd.f32 0.0, %v2391
    %v2393 = vpop.f32.mrf.mxu0
    %v2394 = vadd.f32 0.0, %v2393
    %2395 = vdwg.mxu0
    %2396 = vmatpush.bf16.msra.mxu0 %v2148
    %2397 = vmatpush.bf16.msra.mxu0 %v2132
    %2398 = vmatpush.bf16.msra.mxu0 %v2116
    %2399 = vmatpush.bf16.msra.mxu0 %v2100
    %2400 = vmatpush.bf16.msra.mxu0 %v2084
    %2401 = vmatpush.bf16.msra.mxu0 %v2068
    %2402 = vmatpush.bf16.msra.mxu0 %v2052
    %2403 = vmatpush.bf16.msra.mxu0 %v2036
    %2404 = vmatmul.bf16.gmra.mxu0 %v1515
    %v2405 = vpop.f32.mrf.mxu0
    %v2406 = vadd.f32 0.0, %v2405
    %v2407 = vpop.f32.mrf.mxu0
    %v2408 = vadd.f32 0.0, %v2407
    %2409 = vdwg.mxu0
    %2410 = vmatpush.bf16.msra.mxu0 %v2149
    %2411 = vmatpush.bf16.msra.mxu0 %v2133
    %2412 = vmatpush.bf16.msra.mxu0 %v2117
    %2413 = vmatpush.bf16.msra.mxu0 %v2101
    %2414 = vmatpush.bf16.msra.mxu0 %v2085
    %2415 = vmatpush.bf16.msra.mxu0 %v2069
    %2416 = vmatpush.bf16.msra.mxu0 %v2053
    %2417 = vmatpush.bf16.msra.mxu0 %v2037
    %2418 = vmatmul.bf16.gmra.mxu0 %v1515
    %v2419 = vpop.f32.mrf.mxu0
    %v2420 = vadd.f32 0.0, %v2419
    %v2421 = vpop.f32.mrf.mxu0
    %v2422 = vadd.f32 0.0, %v2421
    %2423 = vdwg.mxu0
    %2424 = vmatpush.bf16.msra.mxu0 %v2150
    %2425 = vmatpush.bf16.msra.mxu0 %v2134
    %2426 = vmatpush.bf16.msra.mxu0 %v2118
    %2427 = vmatpush.bf16.msra.mxu0 %v2102
    %2428 = vmatpush.bf16.msra.mxu0 %v2086
    %2429 = vmatpush.bf16.msra.mxu0 %v2070
    %2430 = vmatpush.bf16.msra.mxu0 %v2054
    %2431 = vmatpush.bf16.msra.mxu0 %v2038
    %2432 = vmatmul.bf16.gmra.mxu0 %v1515
    %v2433 = vpop.f32.mrf.mxu0
    %v2434 = vadd.f32 0.0, %v2433
    %v2435 = vpop.f32.mrf.mxu0
    %v2436 = vadd.f32 0.0, %v2435
    %2437 = vdwg.mxu0
    %2438 = vmatpush.bf16.msra.mxu0 %v2151
    %2439 = vmatpush.bf16.msra.mxu0 %v2135
    %2440 = vmatpush.bf16.msra.mxu0 %v2119
    %2441 = vmatpush.bf16.msra.mxu0 %v2103
    %2442 = vmatpush.bf16.msra.mxu0 %v2087
    %2443 = vmatpush.bf16.msra.mxu0 %v2071
    %2444 = vmatpush.bf16.msra.mxu0 %v2055
    %2445 = vmatpush.bf16.msra.mxu0 %v2039
    %2446 = vmatmul.bf16.gmra.mxu0 %v1515
    %v2447 = vpop.f32.mrf.mxu0
    %v2448 = vadd.f32 0.0, %v2447
    %v2449 = vpop.f32.mrf.mxu0
    %v2450 = vadd.f32 0.0, %v2449
    %2451 = vdwg.mxu0
    %2452 = vmatpush.bf16.msra.mxu0 %v2152
    %2453 = vmatpush.bf16.msra.mxu0 %v2136
    %2454 = vmatpush.bf16.msra.mxu0 %v2120
    %2455 = vmatpush.bf16.msra.mxu0 %v2104
    %2456 = vmatpush.bf16.msra.mxu0 %v2088
    %2457 = vmatpush.bf16.msra.mxu0 %v2072
    %2458 = vmatpush.bf16.msra.mxu0 %v2056
    %2459 = vmatpush.bf16.msra.mxu0 %v2040
    %2460 = vmatmul.bf16.gmra.mxu0 %v1515
    %v2461 = vpop.f32.mrf.mxu0
    %v2462 = vadd.f32 0.0, %v2461
    %v2463 = vpop.f32.mrf.mxu0
    %v2464 = vadd.f32 0.0, %v2463
    %2465 = vdwg.mxu0
    %2466 = vmatpush.bf16.msra.mxu0 %v2153
    %2467 = vmatpush.bf16.msra.mxu0 %v2137
    %2468 = vmatpush.bf16.msra.mxu0 %v2121
    %2469 = vmatpush.bf16.msra.mxu0 %v2105
    %2470 = vmatpush.bf16.msra.mxu0 %v2089
    %2471 = vmatpush.bf16.msra.mxu0 %v2073
    %2472 = vmatpush.bf16.msra.mxu0 %v2057
    %2473 = vmatpush.bf16.msra.mxu0 %v2041
    %2474 = vmatmul.bf16.gmra.mxu0 %v1515
    %v2475 = vpop.f32.mrf.mxu0
    %v2476 = vadd.f32 0.0, %v2475
    %v2477 = vpop.f32.mrf.mxu0
    %v2478 = vadd.f32 0.0, %v2477
    %2479 = vdwg.mxu0
    %2480 = vmatpush.bf16.msra.mxu0 %v2154
    %2481 = vmatpush.bf16.msra.mxu0 %v2138
    %2482 = vmatpush.bf16.msra.mxu0 %v2122
    %2483 = vmatpush.bf16.msra.mxu0 %v2106
    %2484 = vmatpush.bf16.msra.mxu0 %v2090
    %2485 = vmatpush.bf16.msra.mxu0 %v2074
    %2486 = vmatpush.bf16.msra.mxu0 %v2058
    %2487 = vmatpush.bf16.msra.mxu0 %v2042
    %2488 = vmatmul.bf16.gmra.mxu0 %v1515
    %v2489 = vpop.f32.mrf.mxu0
    %v2490 = vadd.f32 0.0, %v2489
    %v2491 = vpop.f32.mrf.mxu0
    %v2492 = vadd.f32 0.0, %v2491
    %2493 = vdwg.mxu0
    %2494 = vmatpush.bf16.msra.mxu0 %v2155
    %2495 = vmatpush.bf16.msra.mxu0 %v2139
    %2496 = vmatpush.bf16.msra.mxu0 %v2123
    %2497 = vmatpush.bf16.msra.mxu0 %v2107
    %2498 = vmatpush.bf16.msra.mxu0 %v2091
    %2499 = vmatpush.bf16.msra.mxu0 %v2075
    %2500 = vmatpush.bf16.msra.mxu0 %v2059
    %2501 = vmatpush.bf16.msra.mxu0 %v2043
    %2502 = vmatmul.bf16.gmra.mxu0 %v1515
    %v2503 = vpop.f32.mrf.mxu0
    %v2504 = vadd.f32 0.0, %v2503
    %v2505 = vpop.f32.mrf.mxu0
    %v2506 = vadd.f32 0.0, %v2505
    %2507 = vdwg.mxu0
    %v2508 = vmax.f32 %v2294, 0.0
    %v2509 = vmax.f32 %v2308, 0.0
    %v2510 = vmax.f32 %v2322, 0.0
    %v2511 = vmax.f32 %v2336, 0.0
    %v2512 = vmax.f32 %v2350, 0.0
    %v2513 = vmax.f32 %v2364, 0.0
    %v2514 = vmax.f32 %v2378, 0.0
    %v2515 = vmax.f32 %v2392, 0.0
    %v2516 = vmax.f32 %v2406, 0.0
    %v2517 = vmax.f32 %v2420, 0.0
    %v2518 = vmax.f32 %v2434, 0.0
    %v2519 = vmax.f32 %v2448, 0.0
    %v2520 = vmax.f32 %v2462, 0.0
    %v2521 = vmax.f32 %v2476, 0.0
    %v2522 = vmax.f32 %v2490, 0.0
    %v2523 = vmax.f32 %v2504, 0.0
    %v2524 = vmax.f32 %v2296, 0.0
    %v2525 = vmax.f32 %v2310, 0.0
    %v2526 = vmax.f32 %v2324, 0.0
    %v2527 = vmax.f32 %v2338, 0.0
    %v2528 = vmax.f32 %v2352, 0.0
    %v2529 = vmax.f32 %v2366, 0.0
    %v2530 = vmax.f32 %v2380, 0.0
    %v2531 = vmax.f32 %v2394, 0.0
    %v2532 = vmax.f32 %v2408, 0.0
    %v2533 = vmax.f32 %v2422, 0.0
    %v2534 = vmax.f32 %v2436, 0.0
    %v2535 = vmax.f32 %v2450, 0.0
    %v2536 = vmax.f32 %v2464, 0.0
    %v2537 = vmax.f32 %v2478, 0.0
    %v2538 = vmax.f32 %v2492, 0.0
    %v2539 = vmax.f32 %v2506, 0.0
    %v2540 = vpack.c.bf16 %v2524, %v2508
    %v2541 = vpack.c.bf16 %v2525, %v2509
    %v2542 = vpack.c.bf16 %v2526, %v2510
    %v2543 = vpack.c.bf16 %v2527, %v2511
    %v2544 = vpack.c.bf16 %v2528, %v2512
    %v2545 = vpack.c.bf16 %v2529, %v2513
    %v2546 = vpack.c.bf16 %v2530, %v2514
    %v2547 = vpack.c.bf16 %v2531, %v2515
    %v2548 = vpack.c.bf16 %v2532, %v2516
    %v2549 = vpack.c.bf16 %v2533, %v2517
    %v2550 = vpack.c.bf16 %v2534, %v2518
    %v2551 = vpack.c.bf16 %v2535, %v2519
    %v2552 = vpack.c.bf16 %v2536, %v2520
    %v2553 = vpack.c.bf16 %v2537, %v2521
    %v2554 = vpack.c.bf16 %v2538, %v2522
    %v2555 = vpack.c.bf16 %v2539, %v2523
    %v2556 = vld [vmem:[#allocation11] sm:$0xf]
    %v2557 = vld [vmem:[#allocation11 + $0x4] sm:$0xf]
    %v2558 = vld [vmem:[#allocation11 + $0x8] sm:$0xf]
    %v2559 = vld [vmem:[#allocation11 + $0xc] sm:$0xf]
    %v2560 = vld [vmem:[#allocation11 + $0x10] sm:$0xf]
    %v2561 = vld [vmem:[#allocation11 + $0x14] sm:$0xf]
    %v2562 = vld [vmem:[#allocation11 + $0x18] sm:$0xf]
    %v2563 = vld [vmem:[#allocation11 + $0x1c] sm:$0xf]
    %v2564 = vld [vmem:[#allocation11 + $0x20] sm:$0xf]
    %v2565 = vld [vmem:[#allocation11 + $0x24] sm:$0xf]
    %v2566 = vld [vmem:[#allocation11 + $0x28] sm:$0xf]
    %v2567 = vld [vmem:[#allocation11 + $0x2c] sm:$0xf]
    %v2568 = vld [vmem:[#allocation11 + $0x30] sm:$0xf]
    %v2569 = vld [vmem:[#allocation11 + $0x34] sm:$0xf]
    %v2570 = vld [vmem:[#allocation11 + $0x38] sm:$0xf]
    %v2571 = vld [vmem:[#allocation11 + $0x3c] sm:$0xf]
    %v2572 = vld [vmem:[#allocation11 + $0x40] sm:$0xf]
    %v2573 = vld [vmem:[#allocation11 + $0x44] sm:$0xf]
    %v2574 = vld [vmem:[#allocation11 + $0x48] sm:$0xf]
    %v2575 = vld [vmem:[#allocation11 + $0x4c] sm:$0xf]
    %v2576 = vld [vmem:[#allocation11 + $0x50] sm:$0xf]
    %v2577 = vld [vmem:[#allocation11 + $0x54] sm:$0xf]
    %v2578 = vld [vmem:[#allocation11 + $0x58] sm:$0xf]
    %v2579 = vld [vmem:[#allocation11 + $0x5c] sm:$0xf]
    %v2580 = vld [vmem:[#allocation11 + $0x60] sm:$0xf]
    %v2581 = vld [vmem:[#allocation11 + $0x64] sm:$0xf]
    %v2582 = vld [vmem:[#allocation11 + $0x68] sm:$0xf]
    %v2583 = vld [vmem:[#allocation11 + $0x6c] sm:$0xf]
    %v2584 = vld [vmem:[#allocation11 + $0x70] sm:$0xf]
    %v2585 = vld [vmem:[#allocation11 + $0x74] sm:$0xf]
    %v2586 = vld [vmem:[#allocation11 + $0x78] sm:$0xf]
    %v2587 = vld [vmem:[#allocation11 + $0x7c] sm:$0xf]
    %v2588 = vld [vmem:[#allocation11 + $0x80] sm:$0xf]
    %v2589 = vld [vmem:[#allocation11 + $0x84] sm:$0xf]
    %v2590 = vld [vmem:[#allocation11 + $0x88] sm:$0xf]
    %v2591 = vld [vmem:[#allocation11 + $0x8c] sm:$0xf]
    %v2592 = vld [vmem:[#allocation11 + $0x90] sm:$0xf]
    %v2593 = vld [vmem:[#allocation11 + $0x94] sm:$0xf]
    %v2594 = vld [vmem:[#allocation11 + $0x98] sm:$0xf]
    %v2595 = vld [vmem:[#allocation11 + $0x9c] sm:$0xf]
    %v2596 = vld [vmem:[#allocation11 + $0xa0] sm:$0xf]
    %v2597 = vld [vmem:[#allocation11 + $0xa4] sm:$0xf]
    %v2598 = vld [vmem:[#allocation11 + $0xa8] sm:$0xf]
    %v2599 = vld [vmem:[#allocation11 + $0xac] sm:$0xf]
    %v2600 = vld [vmem:[#allocation11 + $0xb0] sm:$0xf]
    %v2601 = vld [vmem:[#allocation11 + $0xb4] sm:$0xf]
    %v2602 = vld [vmem:[#allocation11 + $0xb8] sm:$0xf]
    %v2603 = vld [vmem:[#allocation11 + $0xbc] sm:$0xf]
    %v2604 = vld [vmem:[#allocation11 + $0xc0] sm:$0xf]
    %v2605 = vld [vmem:[#allocation11 + $0xc4] sm:$0xf]
    %v2606 = vld [vmem:[#allocation11 + $0xc8] sm:$0xf]
    %v2607 = vld [vmem:[#allocation11 + $0xcc] sm:$0xf]
    %v2608 = vld [vmem:[#allocation11 + $0xd0] sm:$0xf]
    %v2609 = vld [vmem:[#allocation11 + $0xd4] sm:$0xf]
    %v2610 = vld [vmem:[#allocation11 + $0xd8] sm:$0xf]
    %v2611 = vld [vmem:[#allocation11 + $0xdc] sm:$0xf]
    %v2612 = vld [vmem:[#allocation11 + $0xe0] sm:$0xf]
    %v2613 = vld [vmem:[#allocation11 + $0xe4] sm:$0xf]
    %v2614 = vld [vmem:[#allocation11 + $0xe8] sm:$0xf]
    %v2615 = vld [vmem:[#allocation11 + $0xec] sm:$0xf]
    %v2616 = vld [vmem:[#allocation11 + $0xf0] sm:$0xf]
    %v2617 = vld [vmem:[#allocation11 + $0xf4] sm:$0xf]
    %v2618 = vld [vmem:[#allocation11 + $0xf8] sm:$0xf]
    %v2619 = vld [vmem:[#allocation11 + $0xfc] sm:$0xf]
    %v2620 = vld [vmem:[#allocation11 + $0x100] sm:$0xf]
    %v2621 = vld [vmem:[#allocation11 + $0x104] sm:$0xf]
    %v2622 = vld [vmem:[#allocation11 + $0x108] sm:$0xf]
    %v2623 = vld [vmem:[#allocation11 + $0x10c] sm:$0xf]
    %v2624 = vld [vmem:[#allocation11 + $0x110] sm:$0xf]
    %v2625 = vld [vmem:[#allocation11 + $0x114] sm:$0xf]
    %v2626 = vld [vmem:[#allocation11 + $0x118] sm:$0xf]
    %v2627 = vld [vmem:[#allocation11 + $0x11c] sm:$0xf]
    %v2628 = vld [vmem:[#allocation11 + $0x120] sm:$0xf]
    %v2629 = vld [vmem:[#allocation11 + $0x124] sm:$0xf]
    %v2630 = vld [vmem:[#allocation11 + $0x128] sm:$0xf]
    %v2631 = vld [vmem:[#allocation11 + $0x12c] sm:$0xf]
    %v2632 = vld [vmem:[#allocation11 + $0x130] sm:$0xf]
    %v2633 = vld [vmem:[#allocation11 + $0x134] sm:$0xf]
    %v2634 = vld [vmem:[#allocation11 + $0x138] sm:$0xf]
    %v2635 = vld [vmem:[#allocation11 + $0x13c] sm:$0xf]
    %v2636 = vld [vmem:[#allocation11 + $0x140] sm:$0xf]
    %v2637 = vld [vmem:[#allocation11 + $0x144] sm:$0xf]
    %v2638 = vld [vmem:[#allocation11 + $0x148] sm:$0xf]
    %v2639 = vld [vmem:[#allocation11 + $0x14c] sm:$0xf]
    %v2640 = vld [vmem:[#allocation11 + $0x150] sm:$0xf]
    %v2641 = vld [vmem:[#allocation11 + $0x154] sm:$0xf]
    %v2642 = vld [vmem:[#allocation11 + $0x158] sm:$0xf]
    %v2643 = vld [vmem:[#allocation11 + $0x15c] sm:$0xf]
    %v2644 = vld [vmem:[#allocation11 + $0x160] sm:$0xf]
    %v2645 = vld [vmem:[#allocation11 + $0x164] sm:$0xf]
    %v2646 = vld [vmem:[#allocation11 + $0x168] sm:$0xf]
    %v2647 = vld [vmem:[#allocation11 + $0x16c] sm:$0xf]
    %v2648 = vld [vmem:[#allocation11 + $0x170] sm:$0xf]
    %v2649 = vld [vmem:[#allocation11 + $0x174] sm:$0xf]
    %v2650 = vld [vmem:[#allocation11 + $0x178] sm:$0xf]
    %v2651 = vld [vmem:[#allocation11 + $0x17c] sm:$0xf]
    %v2652 = vld [vmem:[#allocation11 + $0x180] sm:$0xf]
    %v2653 = vld [vmem:[#allocation11 + $0x184] sm:$0xf]
    %v2654 = vld [vmem:[#allocation11 + $0x188] sm:$0xf]
    %v2655 = vld [vmem:[#allocation11 + $0x18c] sm:$0xf]
    %v2656 = vld [vmem:[#allocation11 + $0x190] sm:$0xf]
    %v2657 = vld [vmem:[#allocation11 + $0x194] sm:$0xf]
    %v2658 = vld [vmem:[#allocation11 + $0x198] sm:$0xf]
    %v2659 = vld [vmem:[#allocation11 + $0x19c] sm:$0xf]
    %v2660 = vld [vmem:[#allocation11 + $0x1a0] sm:$0xf]
    %v2661 = vld [vmem:[#allocation11 + $0x1a4] sm:$0xf]
    %v2662 = vld [vmem:[#allocation11 + $0x1a8] sm:$0xf]
    %v2663 = vld [vmem:[#allocation11 + $0x1ac] sm:$0xf]
    %v2664 = vld [vmem:[#allocation11 + $0x1b0] sm:$0xf]
    %v2665 = vld [vmem:[#allocation11 + $0x1b4] sm:$0xf]
    %v2666 = vld [vmem:[#allocation11 + $0x1b8] sm:$0xf]
    %v2667 = vld [vmem:[#allocation11 + $0x1bc] sm:$0xf]
    %v2668 = vld [vmem:[#allocation11 + $0x1c0] sm:$0xf]
    %v2669 = vld [vmem:[#allocation11 + $0x1c4] sm:$0xf]
    %v2670 = vld [vmem:[#allocation11 + $0x1c8] sm:$0xf]
    %v2671 = vld [vmem:[#allocation11 + $0x1cc] sm:$0xf]
    %v2672 = vld [vmem:[#allocation11 + $0x1d0] sm:$0xf]
    %v2673 = vld [vmem:[#allocation11 + $0x1d4] sm:$0xf]
    %v2674 = vld [vmem:[#allocation11 + $0x1d8] sm:$0xf]
    %v2675 = vld [vmem:[#allocation11 + $0x1dc] sm:$0xf]
    %v2676 = vld [vmem:[#allocation11 + $0x1e0] sm:$0xf]
    %v2677 = vld [vmem:[#allocation11 + $0x1e4] sm:$0xf]
    %v2678 = vld [vmem:[#allocation11 + $0x1e8] sm:$0xf]
    %v2679 = vld [vmem:[#allocation11 + $0x1ec] sm:$0xf]
    %v2680 = vld [vmem:[#allocation11 + $0x1f0] sm:$0xf]
    %v2681 = vld [vmem:[#allocation11 + $0x1f4] sm:$0xf]
    %v2682 = vld [vmem:[#allocation11 + $0x1f8] sm:$0xf]
    %v2683 = vld [vmem:[#allocation11 + $0x1fc] sm:$0xf]
    %v2684 = vld [vmem:[#allocation11 + $0x200] sm:$0xf]
    %v2685 = vld [vmem:[#allocation11 + $0x204] sm:$0xf]
    %v2686 = vld [vmem:[#allocation11 + $0x208] sm:$0xf]
    %v2687 = vld [vmem:[#allocation11 + $0x20c] sm:$0xf]
    %v2688 = vld [vmem:[#allocation11 + $0x210] sm:$0xf]
    %v2689 = vld [vmem:[#allocation11 + $0x214] sm:$0xf]
    %v2690 = vld [vmem:[#allocation11 + $0x218] sm:$0xf]
    %v2691 = vld [vmem:[#allocation11 + $0x21c] sm:$0xf]
    %v2692 = vld [vmem:[#allocation11 + $0x220] sm:$0xf]
    %v2693 = vld [vmem:[#allocation11 + $0x224] sm:$0xf]
    %v2694 = vld [vmem:[#allocation11 + $0x228] sm:$0xf]
    %v2695 = vld [vmem:[#allocation11 + $0x22c] sm:$0xf]
    %v2696 = vld [vmem:[#allocation11 + $0x230] sm:$0xf]
    %v2697 = vld [vmem:[#allocation11 + $0x234] sm:$0xf]
    %v2698 = vld [vmem:[#allocation11 + $0x238] sm:$0xf]
    %v2699 = vld [vmem:[#allocation11 + $0x23c] sm:$0xf]
    %v2700 = vld [vmem:[#allocation11 + $0x240] sm:$0xf]
    %v2701 = vld [vmem:[#allocation11 + $0x244] sm:$0xf]
    %v2702 = vld [vmem:[#allocation11 + $0x248] sm:$0xf]
    %v2703 = vld [vmem:[#allocation11 + $0x24c] sm:$0xf]
    %v2704 = vld [vmem:[#allocation11 + $0x250] sm:$0xf]
    %v2705 = vld [vmem:[#allocation11 + $0x254] sm:$0xf]
    %v2706 = vld [vmem:[#allocation11 + $0x258] sm:$0xf]
    %v2707 = vld [vmem:[#allocation11 + $0x25c] sm:$0xf]
    %v2708 = vld [vmem:[#allocation11 + $0x260] sm:$0xf]
    %v2709 = vld [vmem:[#allocation11 + $0x264] sm:$0xf]
    %v2710 = vld [vmem:[#allocation11 + $0x268] sm:$0xf]
    %v2711 = vld [vmem:[#allocation11 + $0x26c] sm:$0xf]
    %v2712 = vld [vmem:[#allocation11 + $0x270] sm:$0xf]
    %v2713 = vld [vmem:[#allocation11 + $0x274] sm:$0xf]
    %v2714 = vld [vmem:[#allocation11 + $0x278] sm:$0xf]
    %v2715 = vld [vmem:[#allocation11 + $0x27c] sm:$0xf]
    %v2716 = vld [vmem:[#allocation11 + $0x280] sm:$0xf]
    %v2717 = vld [vmem:[#allocation11 + $0x284] sm:$0xf]
    %v2718 = vld [vmem:[#allocation11 + $0x288] sm:$0xf]
    %v2719 = vld [vmem:[#allocation11 + $0x28c] sm:$0xf]
    %v2720 = vld [vmem:[#allocation11 + $0x290] sm:$0xf]
    %v2721 = vld [vmem:[#allocation11 + $0x294] sm:$0xf]
    %v2722 = vld [vmem:[#allocation11 + $0x298] sm:$0xf]
    %v2723 = vld [vmem:[#allocation11 + $0x29c] sm:$0xf]
    %v2724 = vld [vmem:[#allocation11 + $0x2a0] sm:$0xf]
    %v2725 = vld [vmem:[#allocation11 + $0x2a4] sm:$0xf]
    %v2726 = vld [vmem:[#allocation11 + $0x2a8] sm:$0xf]
    %v2727 = vld [vmem:[#allocation11 + $0x2ac] sm:$0xf]
    %v2728 = vld [vmem:[#allocation11 + $0x2b0] sm:$0xf]
    %v2729 = vld [vmem:[#allocation11 + $0x2b4] sm:$0xf]
    %v2730 = vld [vmem:[#allocation11 + $0x2b8] sm:$0xf]
    %v2731 = vld [vmem:[#allocation11 + $0x2bc] sm:$0xf]
    %v2732 = vld [vmem:[#allocation11 + $0x2c0] sm:$0xf]
    %v2733 = vld [vmem:[#allocation11 + $0x2c4] sm:$0xf]
    %v2734 = vld [vmem:[#allocation11 + $0x2c8] sm:$0xf]
    %v2735 = vld [vmem:[#allocation11 + $0x2cc] sm:$0xf]
    %v2736 = vld [vmem:[#allocation11 + $0x2d0] sm:$0xf]
    %v2737 = vld [vmem:[#allocation11 + $0x2d4] sm:$0xf]
    %v2738 = vld [vmem:[#allocation11 + $0x2d8] sm:$0xf]
    %v2739 = vld [vmem:[#allocation11 + $0x2dc] sm:$0xf]
    %v2740 = vld [vmem:[#allocation11 + $0x2e0] sm:$0xf]
    %v2741 = vld [vmem:[#allocation11 + $0x2e4] sm:$0xf]
    %v2742 = vld [vmem:[#allocation11 + $0x2e8] sm:$0xf]
    %v2743 = vld [vmem:[#allocation11 + $0x2ec] sm:$0xf]
    %v2744 = vld [vmem:[#allocation11 + $0x2f0] sm:$0xf]
    %v2745 = vld [vmem:[#allocation11 + $0x2f4] sm:$0xf]
    %v2746 = vld [vmem:[#allocation11 + $0x2f8] sm:$0xf]
    %v2747 = vld [vmem:[#allocation11 + $0x2fc] sm:$0xf]
    %v2748 = vld [vmem:[#allocation11 + $0x300] sm:$0xf]
    %v2749 = vld [vmem:[#allocation11 + $0x304] sm:$0xf]
    %v2750 = vld [vmem:[#allocation11 + $0x308] sm:$0xf]
    %v2751 = vld [vmem:[#allocation11 + $0x30c] sm:$0xf]
    %v2752 = vld [vmem:[#allocation11 + $0x310] sm:$0xf]
    %v2753 = vld [vmem:[#allocation11 + $0x314] sm:$0xf]
    %v2754 = vld [vmem:[#allocation11 + $0x318] sm:$0xf]
    %v2755 = vld [vmem:[#allocation11 + $0x31c] sm:$0xf]
    %v2756 = vld [vmem:[#allocation11 + $0x320] sm:$0xf]
    %v2757 = vld [vmem:[#allocation11 + $0x324] sm:$0xf]
    %v2758 = vld [vmem:[#allocation11 + $0x328] sm:$0xf]
    %v2759 = vld [vmem:[#allocation11 + $0x32c] sm:$0xf]
    %v2760 = vld [vmem:[#allocation11 + $0x330] sm:$0xf]
    %v2761 = vld [vmem:[#allocation11 + $0x334] sm:$0xf]
    %v2762 = vld [vmem:[#allocation11 + $0x338] sm:$0xf]
    %v2763 = vld [vmem:[#allocation11 + $0x33c] sm:$0xf]
    %v2764 = vld [vmem:[#allocation11 + $0x340] sm:$0xf]
    %v2765 = vld [vmem:[#allocation11 + $0x344] sm:$0xf]
    %v2766 = vld [vmem:[#allocation11 + $0x348] sm:$0xf]
    %v2767 = vld [vmem:[#allocation11 + $0x34c] sm:$0xf]
    %v2768 = vld [vmem:[#allocation11 + $0x350] sm:$0xf]
    %v2769 = vld [vmem:[#allocation11 + $0x354] sm:$0xf]
    %v2770 = vld [vmem:[#allocation11 + $0x358] sm:$0xf]
    %v2771 = vld [vmem:[#allocation11 + $0x35c] sm:$0xf]
    %v2772 = vld [vmem:[#allocation11 + $0x360] sm:$0xf]
    %v2773 = vld [vmem:[#allocation11 + $0x364] sm:$0xf]
    %v2774 = vld [vmem:[#allocation11 + $0x368] sm:$0xf]
    %v2775 = vld [vmem:[#allocation11 + $0x36c] sm:$0xf]
    %v2776 = vld [vmem:[#allocation11 + $0x370] sm:$0xf]
    %v2777 = vld [vmem:[#allocation11 + $0x374] sm:$0xf]
    %v2778 = vld [vmem:[#allocation11 + $0x378] sm:$0xf]
    %v2779 = vld [vmem:[#allocation11 + $0x37c] sm:$0xf]
    %v2780 = vld [vmem:[#allocation11 + $0x380] sm:$0xf]
    %v2781 = vld [vmem:[#allocation11 + $0x384] sm:$0xf]
    %v2782 = vld [vmem:[#allocation11 + $0x388] sm:$0xf]
    %v2783 = vld [vmem:[#allocation11 + $0x38c] sm:$0xf]
    %v2784 = vld [vmem:[#allocation11 + $0x390] sm:$0xf]
    %v2785 = vld [vmem:[#allocation11 + $0x394] sm:$0xf]
    %v2786 = vld [vmem:[#allocation11 + $0x398] sm:$0xf]
    %v2787 = vld [vmem:[#allocation11 + $0x39c] sm:$0xf]
    %v2788 = vld [vmem:[#allocation11 + $0x3a0] sm:$0xf]
    %v2789 = vld [vmem:[#allocation11 + $0x3a4] sm:$0xf]
    %v2790 = vld [vmem:[#allocation11 + $0x3a8] sm:$0xf]
    %v2791 = vld [vmem:[#allocation11 + $0x3ac] sm:$0xf]
    %v2792 = vld [vmem:[#allocation11 + $0x3b0] sm:$0xf]
    %v2793 = vld [vmem:[#allocation11 + $0x3b4] sm:$0xf]
    %v2794 = vld [vmem:[#allocation11 + $0x3b8] sm:$0xf]
    %v2795 = vld [vmem:[#allocation11 + $0x3bc] sm:$0xf]
    %v2796 = vld [vmem:[#allocation11 + $0x3c0] sm:$0xf]
    %v2797 = vld [vmem:[#allocation11 + $0x3c4] sm:$0xf]
    %v2798 = vld [vmem:[#allocation11 + $0x3c8] sm:$0xf]
    %v2799 = vld [vmem:[#allocation11 + $0x3cc] sm:$0xf]
    %v2800 = vld [vmem:[#allocation11 + $0x3d0] sm:$0xf]
    %v2801 = vld [vmem:[#allocation11 + $0x3d4] sm:$0xf]
    %v2802 = vld [vmem:[#allocation11 + $0x3d8] sm:$0xf]
    %v2803 = vld [vmem:[#allocation11 + $0x3dc] sm:$0xf]
    %v2804 = vld [vmem:[#allocation11 + $0x3e0] sm:$0xf]
    %v2805 = vld [vmem:[#allocation11 + $0x3e4] sm:$0xf]
    %v2806 = vld [vmem:[#allocation11 + $0x3e8] sm:$0xf]
    %v2807 = vld [vmem:[#allocation11 + $0x3ec] sm:$0xf]
    %v2808 = vld [vmem:[#allocation11 + $0x3f0] sm:$0xf]
    %v2809 = vld [vmem:[#allocation11 + $0x3f4] sm:$0xf]
    %v2810 = vld [vmem:[#allocation11 + $0x3f8] sm:$0xf]
    %v2811 = vld [vmem:[#allocation11 + $0x3fc] sm:$0xf]
    %v3068 = vunpack.c.l.b16 %v2556
    %v3069 = vunpack.c.l.b16 %v2557
    %v3070 = vunpack.c.l.b16 %v2558
    %v3071 = vunpack.c.l.b16 %v2559
    %v3072 = vunpack.c.l.b16 %v2560
    %v3073 = vunpack.c.l.b16 %v2561
    %v3074 = vunpack.c.l.b16 %v2562
    %v3075 = vunpack.c.l.b16 %v2563
    %v3076 = vunpack.c.l.b16 %v2564
    %v3077 = vunpack.c.l.b16 %v2565
    %v3078 = vunpack.c.l.b16 %v2566
    %v3079 = vunpack.c.l.b16 %v2567
    %v3080 = vunpack.c.l.b16 %v2568
    %v3081 = vunpack.c.l.b16 %v2569
    %v3082 = vunpack.c.l.b16 %v2570
    %v3083 = vunpack.c.l.b16 %v2571
    %v3084 = vunpack.c.l.b16 %v2572
    %v3085 = vunpack.c.l.b16 %v2573
    %v3086 = vunpack.c.l.b16 %v2574
    %v3087 = vunpack.c.l.b16 %v2575
    %v3088 = vunpack.c.l.b16 %v2576
    %v3089 = vunpack.c.l.b16 %v2577
    %v3090 = vunpack.c.l.b16 %v2578
    %v3091 = vunpack.c.l.b16 %v2579
    %v3092 = vunpack.c.l.b16 %v2580
    %v3093 = vunpack.c.l.b16 %v2581
    %v3094 = vunpack.c.l.b16 %v2582
    %v3095 = vunpack.c.l.b16 %v2583
    %v3096 = vunpack.c.l.b16 %v2584
    %v3097 = vunpack.c.l.b16 %v2585
    %v3098 = vunpack.c.l.b16 %v2586
    %v3099 = vunpack.c.l.b16 %v2587
    %v3100 = vunpack.c.l.b16 %v2588
    %v3101 = vunpack.c.l.b16 %v2589
    %v3102 = vunpack.c.l.b16 %v2590
    %v3103 = vunpack.c.l.b16 %v2591
    %v3104 = vunpack.c.l.b16 %v2592
    %v3105 = vunpack.c.l.b16 %v2593
    %v3106 = vunpack.c.l.b16 %v2594
    %v3107 = vunpack.c.l.b16 %v2595
    %v3108 = vunpack.c.l.b16 %v2596
    %v3109 = vunpack.c.l.b16 %v2597
    %v3110 = vunpack.c.l.b16 %v2598
    %v3111 = vunpack.c.l.b16 %v2599
    %v3112 = vunpack.c.l.b16 %v2600
    %v3113 = vunpack.c.l.b16 %v2601
    %v3114 = vunpack.c.l.b16 %v2602
    %v3115 = vunpack.c.l.b16 %v2603
    %v3116 = vunpack.c.l.b16 %v2604
    %v3117 = vunpack.c.l.b16 %v2605
    %v3118 = vunpack.c.l.b16 %v2606
    %v3119 = vunpack.c.l.b16 %v2607
    %v3120 = vunpack.c.l.b16 %v2608
    %v3121 = vunpack.c.l.b16 %v2609
    %v3122 = vunpack.c.l.b16 %v2610
    %v3123 = vunpack.c.l.b16 %v2611
    %v3124 = vunpack.c.l.b16 %v2612
    %v3125 = vunpack.c.l.b16 %v2613
    %v3126 = vunpack.c.l.b16 %v2614
    %v3127 = vunpack.c.l.b16 %v2615
    %v3128 = vunpack.c.l.b16 %v2616
    %v3129 = vunpack.c.l.b16 %v2617
    %v3130 = vunpack.c.l.b16 %v2618
    %v3131 = vunpack.c.l.b16 %v2619
    %v3132 = vunpack.c.l.b16 %v2620
    %v3133 = vunpack.c.l.b16 %v2621
    %v3134 = vunpack.c.l.b16 %v2622
    %v3135 = vunpack.c.l.b16 %v2623
    %v3136 = vunpack.c.l.b16 %v2624
    %v3137 = vunpack.c.l.b16 %v2625
    %v3138 = vunpack.c.l.b16 %v2626
    %v3139 = vunpack.c.l.b16 %v2627
    %v3140 = vunpack.c.l.b16 %v2628
    %v3141 = vunpack.c.l.b16 %v2629
    %v3142 = vunpack.c.l.b16 %v2630
    %v3143 = vunpack.c.l.b16 %v2631
    %v3144 = vunpack.c.l.b16 %v2632
    %v3145 = vunpack.c.l.b16 %v2633
    %v3146 = vunpack.c.l.b16 %v2634
    %v3147 = vunpack.c.l.b16 %v2635
    %v3148 = vunpack.c.l.b16 %v2636
    %v3149 = vunpack.c.l.b16 %v2637
    %v3150 = vunpack.c.l.b16 %v2638
    %v3151 = vunpack.c.l.b16 %v2639
    %v3152 = vunpack.c.l.b16 %v2640
    %v3153 = vunpack.c.l.b16 %v2641
    %v3154 = vunpack.c.l.b16 %v2642
    %v3155 = vunpack.c.l.b16 %v2643
    %v3156 = vunpack.c.l.b16 %v2644
    %v3157 = vunpack.c.l.b16 %v2645
    %v3158 = vunpack.c.l.b16 %v2646
    %v3159 = vunpack.c.l.b16 %v2647
    %v3160 = vunpack.c.l.b16 %v2648
    %v3161 = vunpack.c.l.b16 %v2649
    %v3162 = vunpack.c.l.b16 %v2650
    %v3163 = vunpack.c.l.b16 %v2651
    %v3164 = vunpack.c.l.b16 %v2652
    %v3165 = vunpack.c.l.b16 %v2653
    %v3166 = vunpack.c.l.b16 %v2654
    %v3167 = vunpack.c.l.b16 %v2655
    %v3168 = vunpack.c.l.b16 %v2656
    %v3169 = vunpack.c.l.b16 %v2657
    %v3170 = vunpack.c.l.b16 %v2658
    %v3171 = vunpack.c.l.b16 %v2659
    %v3172 = vunpack.c.l.b16 %v2660
    %v3173 = vunpack.c.l.b16 %v2661
    %v3174 = vunpack.c.l.b16 %v2662
    %v3175 = vunpack.c.l.b16 %v2663
    %v3176 = vunpack.c.l.b16 %v2664
    %v3177 = vunpack.c.l.b16 %v2665
    %v3178 = vunpack.c.l.b16 %v2666
    %v3179 = vunpack.c.l.b16 %v2667
    %v3180 = vunpack.c.l.b16 %v2668
    %v3181 = vunpack.c.l.b16 %v2669
    %v3182 = vunpack.c.l.b16 %v2670
    %v3183 = vunpack.c.l.b16 %v2671
    %v3184 = vunpack.c.l.b16 %v2672
    %v3185 = vunpack.c.l.b16 %v2673
    %v3186 = vunpack.c.l.b16 %v2674
    %v3187 = vunpack.c.l.b16 %v2675
    %v3188 = vunpack.c.l.b16 %v2676
    %v3189 = vunpack.c.l.b16 %v2677
    %v3190 = vunpack.c.l.b16 %v2678
    %v3191 = vunpack.c.l.b16 %v2679
    %v3192 = vunpack.c.l.b16 %v2680
    %v3193 = vunpack.c.l.b16 %v2681
    %v3194 = vunpack.c.l.b16 %v2682
    %v3195 = vunpack.c.l.b16 %v2683
    %v3196 = vunpack.c.l.b16 %v2684
    %v3197 = vunpack.c.l.b16 %v2685
    %v3198 = vunpack.c.l.b16 %v2686
    %v3199 = vunpack.c.l.b16 %v2687
    %v3200 = vunpack.c.l.b16 %v2688
    %v3201 = vunpack.c.l.b16 %v2689
    %v3202 = vunpack.c.l.b16 %v2690
    %v3203 = vunpack.c.l.b16 %v2691
    %v3204 = vunpack.c.l.b16 %v2692
    %v3205 = vunpack.c.l.b16 %v2693
    %v3206 = vunpack.c.l.b16 %v2694
    %v3207 = vunpack.c.l.b16 %v2695
    %v3208 = vunpack.c.l.b16 %v2696
    %v3209 = vunpack.c.l.b16 %v2697
    %v3210 = vunpack.c.l.b16 %v2698
    %v3211 = vunpack.c.l.b16 %v2699
    %v3212 = vunpack.c.l.b16 %v2700
    %v3213 = vunpack.c.l.b16 %v2701
    %v3214 = vunpack.c.l.b16 %v2702
    %v3215 = vunpack.c.l.b16 %v2703
    %v3216 = vunpack.c.l.b16 %v2704
    %v3217 = vunpack.c.l.b16 %v2705
    %v3218 = vunpack.c.l.b16 %v2706
    %v3219 = vunpack.c.l.b16 %v2707
    %v3220 = vunpack.c.l.b16 %v2708
    %v3221 = vunpack.c.l.b16 %v2709
    %v3222 = vunpack.c.l.b16 %v2710
    %v3223 = vunpack.c.l.b16 %v2711
    %v3224 = vunpack.c.l.b16 %v2712
    %v3225 = vunpack.c.l.b16 %v2713
    %v3226 = vunpack.c.l.b16 %v2714
    %v3227 = vunpack.c.l.b16 %v2715
    %v3228 = vunpack.c.l.b16 %v2716
    %v3229 = vunpack.c.l.b16 %v2717
    %v3230 = vunpack.c.l.b16 %v2718
    %v3231 = vunpack.c.l.b16 %v2719
    %v3232 = vunpack.c.l.b16 %v2720
    %v3233 = vunpack.c.l.b16 %v2721
    %v3234 = vunpack.c.l.b16 %v2722
    %v3235 = vunpack.c.l.b16 %v2723
    %v3236 = vunpack.c.l.b16 %v2724
    %v3237 = vunpack.c.l.b16 %v2725
    %v3238 = vunpack.c.l.b16 %v2726
    %v3239 = vunpack.c.l.b16 %v2727
    %v3240 = vunpack.c.l.b16 %v2728
    %v3241 = vunpack.c.l.b16 %v2729
    %v3242 = vunpack.c.l.b16 %v2730
    %v3243 = vunpack.c.l.b16 %v2731
    %v3244 = vunpack.c.l.b16 %v2732
    %v3245 = vunpack.c.l.b16 %v2733
    %v3246 = vunpack.c.l.b16 %v2734
    %v3247 = vunpack.c.l.b16 %v2735
    %v3248 = vunpack.c.l.b16 %v2736
    %v3249 = vunpack.c.l.b16 %v2737
    %v3250 = vunpack.c.l.b16 %v2738
    %v3251 = vunpack.c.l.b16 %v2739
    %v3252 = vunpack.c.l.b16 %v2740
    %v3253 = vunpack.c.l.b16 %v2741
    %v3254 = vunpack.c.l.b16 %v2742
    %v3255 = vunpack.c.l.b16 %v2743
    %v3256 = vunpack.c.l.b16 %v2744
    %v3257 = vunpack.c.l.b16 %v2745
    %v3258 = vunpack.c.l.b16 %v2746
    %v3259 = vunpack.c.l.b16 %v2747
    %v3260 = vunpack.c.l.b16 %v2748
    %v3261 = vunpack.c.l.b16 %v2749
    %v3262 = vunpack.c.l.b16 %v2750
    %v3263 = vunpack.c.l.b16 %v2751
    %v3264 = vunpack.c.l.b16 %v2752
    %v3265 = vunpack.c.l.b16 %v2753
    %v3266 = vunpack.c.l.b16 %v2754
    %v3267 = vunpack.c.l.b16 %v2755
    %v3268 = vunpack.c.l.b16 %v2756
    %v3269 = vunpack.c.l.b16 %v2757
    %v3270 = vunpack.c.l.b16 %v2758
    %v3271 = vunpack.c.l.b16 %v2759
    %v3272 = vunpack.c.l.b16 %v2760
    %v3273 = vunpack.c.l.b16 %v2761
    %v3274 = vunpack.c.l.b16 %v2762
    %v3275 = vunpack.c.l.b16 %v2763
    %v3276 = vunpack.c.l.b16 %v2764
    %v3277 = vunpack.c.l.b16 %v2765
    %v3278 = vunpack.c.l.b16 %v2766
    %v3279 = vunpack.c.l.b16 %v2767
    %v3280 = vunpack.c.l.b16 %v2768
    %v3281 = vunpack.c.l.b16 %v2769
    %v3282 = vunpack.c.l.b16 %v2770
    %v3283 = vunpack.c.l.b16 %v2771
    %v3284 = vunpack.c.l.b16 %v2772
    %v3285 = vunpack.c.l.b16 %v2773
    %v3286 = vunpack.c.l.b16 %v2774
    %v3287 = vunpack.c.l.b16 %v2775
    %v3288 = vunpack.c.l.b16 %v2776
    %v3289 = vunpack.c.l.b16 %v2777
    %v3290 = vunpack.c.l.b16 %v2778
    %v3291 = vunpack.c.l.b16 %v2779
    %v3292 = vunpack.c.l.b16 %v2780
    %v3293 = vunpack.c.l.b16 %v2781
    %v3294 = vunpack.c.l.b16 %v2782
    %v3295 = vunpack.c.l.b16 %v2783
    %v3296 = vunpack.c.l.b16 %v2784
    %v3297 = vunpack.c.l.b16 %v2785
    %v3298 = vunpack.c.l.b16 %v2786
    %v3299 = vunpack.c.l.b16 %v2787
    %v3300 = vunpack.c.l.b16 %v2788
    %v3301 = vunpack.c.l.b16 %v2789
    %v3302 = vunpack.c.l.b16 %v2790
    %v3303 = vunpack.c.l.b16 %v2791
    %v3304 = vunpack.c.l.b16 %v2792
    %v3305 = vunpack.c.l.b16 %v2793
    %v3306 = vunpack.c.l.b16 %v2794
    %v3307 = vunpack.c.l.b16 %v2795
    %v3308 = vunpack.c.l.b16 %v2796
    %v3309 = vunpack.c.l.b16 %v2797
    %v3310 = vunpack.c.l.b16 %v2798
    %v3311 = vunpack.c.l.b16 %v2799
    %v3312 = vunpack.c.l.b16 %v2800
    %v3313 = vunpack.c.l.b16 %v2801
    %v3314 = vunpack.c.l.b16 %v2802
    %v3315 = vunpack.c.l.b16 %v2803
    %v3316 = vunpack.c.l.b16 %v2804
    %v3317 = vunpack.c.l.b16 %v2805
    %v3318 = vunpack.c.l.b16 %v2806
    %v3319 = vunpack.c.l.b16 %v2807
    %v3320 = vunpack.c.l.b16 %v2808
    %v3321 = vunpack.c.l.b16 %v2809
    %v3322 = vunpack.c.l.b16 %v2810
    %v3323 = vunpack.c.l.b16 %v2811
    %v3324 = vpack.c.b16 %v3069, %v3068
    %v3325 = vpack.c.b16 %v3071, %v3070
    %v3326 = vpack.c.b16 %v3073, %v3072
    %v3327 = vpack.c.b16 %v3075, %v3074
    %v3328 = vpack.c.b16 %v3077, %v3076
    %v3329 = vpack.c.b16 %v3079, %v3078
    %v3330 = vpack.c.b16 %v3081, %v3080
    %v3331 = vpack.c.b16 %v3083, %v3082
    %v3332 = vpack.c.b16 %v3085, %v3084
    %v3333 = vpack.c.b16 %v3087, %v3086
    %v3334 = vpack.c.b16 %v3089, %v3088
    %v3335 = vpack.c.b16 %v3091, %v3090
    %v3336 = vpack.c.b16 %v3093, %v3092
    %v3337 = vpack.c.b16 %v3095, %v3094
    %v3338 = vpack.c.b16 %v3097, %v3096
    %v3339 = vpack.c.b16 %v3099, %v3098
    %v3340 = vpack.c.b16 %v3101, %v3100
    %v3341 = vpack.c.b16 %v3103, %v3102
    %v3342 = vpack.c.b16 %v3105, %v3104
    %v3343 = vpack.c.b16 %v3107, %v3106
    %v3344 = vpack.c.b16 %v3109, %v3108
    %v3345 = vpack.c.b16 %v3111, %v3110
    %v3346 = vpack.c.b16 %v3113, %v3112
    %v3347 = vpack.c.b16 %v3115, %v3114
    %v3348 = vpack.c.b16 %v3117, %v3116
    %v3349 = vpack.c.b16 %v3119, %v3118
    %v3350 = vpack.c.b16 %v3121, %v3120
    %v3351 = vpack.c.b16 %v3123, %v3122
    %v3352 = vpack.c.b16 %v3125, %v3124
    %v3353 = vpack.c.b16 %v3127, %v3126
    %v3354 = vpack.c.b16 %v3129, %v3128
    %v3355 = vpack.c.b16 %v3131, %v3130
    %v3356 = vpack.c.b16 %v3133, %v3132
    %v3357 = vpack.c.b16 %v3135, %v3134
    %v3358 = vpack.c.b16 %v3137, %v3136
    %v3359 = vpack.c.b16 %v3139, %v3138
    %v3360 = vpack.c.b16 %v3141, %v3140
    %v3361 = vpack.c.b16 %v3143, %v3142
    %v3362 = vpack.c.b16 %v3145, %v3144
    %v3363 = vpack.c.b16 %v3147, %v3146
    %v3364 = vpack.c.b16 %v3149, %v3148
    %v3365 = vpack.c.b16 %v3151, %v3150
    %v3366 = vpack.c.b16 %v3153, %v3152
    %v3367 = vpack.c.b16 %v3155, %v3154
    %v3368 = vpack.c.b16 %v3157, %v3156
    %v3369 = vpack.c.b16 %v3159, %v3158
    %v3370 = vpack.c.b16 %v3161, %v3160
    %v3371 = vpack.c.b16 %v3163, %v3162
    %v3372 = vpack.c.b16 %v3165, %v3164
    %v3373 = vpack.c.b16 %v3167, %v3166
    %v3374 = vpack.c.b16 %v3169, %v3168
    %v3375 = vpack.c.b16 %v3171, %v3170
    %v3376 = vpack.c.b16 %v3173, %v3172
    %v3377 = vpack.c.b16 %v3175, %v3174
    %v3378 = vpack.c.b16 %v3177, %v3176
    %v3379 = vpack.c.b16 %v3179, %v3178
    %v3380 = vpack.c.b16 %v3181, %v3180
    %v3381 = vpack.c.b16 %v3183, %v3182
    %v3382 = vpack.c.b16 %v3185, %v3184
    %v3383 = vpack.c.b16 %v3187, %v3186
    %v3384 = vpack.c.b16 %v3189, %v3188
    %v3385 = vpack.c.b16 %v3191, %v3190
    %v3386 = vpack.c.b16 %v3193, %v3192
    %v3387 = vpack.c.b16 %v3195, %v3194
    %v3388 = vpack.c.b16 %v3197, %v3196
    %v3389 = vpack.c.b16 %v3199, %v3198
    %v3390 = vpack.c.b16 %v3201, %v3200
    %v3391 = vpack.c.b16 %v3203, %v3202
    %v3392 = vpack.c.b16 %v3205, %v3204
    %v3393 = vpack.c.b16 %v3207, %v3206
    %v3394 = vpack.c.b16 %v3209, %v3208
    %v3395 = vpack.c.b16 %v3211, %v3210
    %v3396 = vpack.c.b16 %v3213, %v3212
    %v3397 = vpack.c.b16 %v3215, %v3214
    %v3398 = vpack.c.b16 %v3217, %v3216
    %v3399 = vpack.c.b16 %v3219, %v3218
    %v3400 = vpack.c.b16 %v3221, %v3220
    %v3401 = vpack.c.b16 %v3223, %v3222
    %v3402 = vpack.c.b16 %v3225, %v3224
    %v3403 = vpack.c.b16 %v3227, %v3226
    %v3404 = vpack.c.b16 %v3229, %v3228
    %v3405 = vpack.c.b16 %v3231, %v3230
    %v3406 = vpack.c.b16 %v3233, %v3232
    %v3407 = vpack.c.b16 %v3235, %v3234
    %v3408 = vpack.c.b16 %v3237, %v3236
    %v3409 = vpack.c.b16 %v3239, %v3238
    %v3410 = vpack.c.b16 %v3241, %v3240
    %v3411 = vpack.c.b16 %v3243, %v3242
    %v3412 = vpack.c.b16 %v3245, %v3244
    %v3413 = vpack.c.b16 %v3247, %v3246
    %v3414 = vpack.c.b16 %v3249, %v3248
    %v3415 = vpack.c.b16 %v3251, %v3250
    %v3416 = vpack.c.b16 %v3253, %v3252
    %v3417 = vpack.c.b16 %v3255, %v3254
    %v3418 = vpack.c.b16 %v3257, %v3256
    %v3419 = vpack.c.b16 %v3259, %v3258
    %v3420 = vpack.c.b16 %v3261, %v3260
    %v3421 = vpack.c.b16 %v3263, %v3262
    %v3422 = vpack.c.b16 %v3265, %v3264
    %v3423 = vpack.c.b16 %v3267, %v3266
    %v3424 = vpack.c.b16 %v3269, %v3268
    %v3425 = vpack.c.b16 %v3271, %v3270
    %v3426 = vpack.c.b16 %v3273, %v3272
    %v3427 = vpack.c.b16 %v3275, %v3274
    %v3428 = vpack.c.b16 %v3277, %v3276
    %v3429 = vpack.c.b16 %v3279, %v3278
    %v3430 = vpack.c.b16 %v3281, %v3280
    %v3431 = vpack.c.b16 %v3283, %v3282
    %v3432 = vpack.c.b16 %v3285, %v3284
    %v3433 = vpack.c.b16 %v3287, %v3286
    %v3434 = vpack.c.b16 %v3289, %v3288
    %v3435 = vpack.c.b16 %v3291, %v3290
    %v3436 = vpack.c.b16 %v3293, %v3292
    %v3437 = vpack.c.b16 %v3295, %v3294
    %v3438 = vpack.c.b16 %v3297, %v3296
    %v3439 = vpack.c.b16 %v3299, %v3298
    %v3440 = vpack.c.b16 %v3301, %v3300
    %v3441 = vpack.c.b16 %v3303, %v3302
    %v3442 = vpack.c.b16 %v3305, %v3304
    %v3443 = vpack.c.b16 %v3307, %v3306
    %v3444 = vpack.c.b16 %v3309, %v3308
    %v3445 = vpack.c.b16 %v3311, %v3310
    %v3446 = vpack.c.b16 %v3313, %v3312
    %v3447 = vpack.c.b16 %v3315, %v3314
    %v3448 = vpack.c.b16 %v3317, %v3316
    %v3449 = vpack.c.b16 %v3319, %v3318
    %v3450 = vpack.c.b16 %v3321, %v3320
    %v3451 = vpack.c.b16 %v3323, %v3322
    %3580 = vmatpush.bf16.msra.mxu0 %v3331
    %3581 = vmatpush.bf16.msra.mxu0 %v3330
    %3582 = vmatpush.bf16.msra.mxu0 %v3329
    %3583 = vmatpush.bf16.msra.mxu0 %v3328
    %3584 = vmatpush.bf16.msra.mxu0 %v3327
    %3585 = vmatpush.bf16.msra.mxu0 %v3326
    %3586 = vmatpush.bf16.msra.mxu0 %v3325
    %3587 = vmatpush.bf16.msra.mxu0 %v3324
    %3588 = vmatmul.bf16.gmra.mxu0 %v2540
    %v3589 = vpop.f32.mrf.mxu0
    %v3590 = vadd.f32 %v1513, %v3589
    %v3591 = vpop.f32.mrf.mxu0
    %v3592 = vadd.f32 %v1514, %v3591
    %3593 = vdwg.mxu0
    %3594 = vmatpush.bf16.msra.mxu0 %v3339
    %3595 = vmatpush.bf16.msra.mxu0 %v3338
    %3596 = vmatpush.bf16.msra.mxu0 %v3337
    %3597 = vmatpush.bf16.msra.mxu0 %v3336
    %3598 = vmatpush.bf16.msra.mxu0 %v3335
    %3599 = vmatpush.bf16.msra.mxu0 %v3334
    %3600 = vmatpush.bf16.msra.mxu0 %v3333
    %3601 = vmatpush.bf16.msra.mxu0 %v3332
    %3602 = vmatmul.bf16.gmra.mxu0 %v2541
    %v3603 = vpop.f32.mrf.mxu0
    %v3604 = vadd.f32 %v3590, %v3603
    %v3605 = vpop.f32.mrf.mxu0
    %v3606 = vadd.f32 %v3592, %v3605
    %3607 = vdwg.mxu0
    %3608 = vmatpush.bf16.msra.mxu0 %v3347
    %3609 = vmatpush.bf16.msra.mxu0 %v3346
    %3610 = vmatpush.bf16.msra.mxu0 %v3345
    %3611 = vmatpush.bf16.msra.mxu0 %v3344
    %3612 = vmatpush.bf16.msra.mxu0 %v3343
    %3613 = vmatpush.bf16.msra.mxu0 %v3342
    %3614 = vmatpush.bf16.msra.mxu0 %v3341
    %3615 = vmatpush.bf16.msra.mxu0 %v3340
    %3616 = vmatmul.bf16.gmra.mxu0 %v2542
    %v3617 = vpop.f32.mrf.mxu0
    %v3618 = vadd.f32 %v3604, %v3617
    %v3619 = vpop.f32.mrf.mxu0
    %v3620 = vadd.f32 %v3606, %v3619
    %3621 = vdwg.mxu0
    %3622 = vmatpush.bf16.msra.mxu0 %v3355
    %3623 = vmatpush.bf16.msra.mxu0 %v3354
    %3624 = vmatpush.bf16.msra.mxu0 %v3353
    %3625 = vmatpush.bf16.msra.mxu0 %v3352
    %3626 = vmatpush.bf16.msra.mxu0 %v3351
    %3627 = vmatpush.bf16.msra.mxu0 %v3350
    %3628 = vmatpush.bf16.msra.mxu0 %v3349
    %3629 = vmatpush.bf16.msra.mxu0 %v3348
    %3630 = vmatmul.bf16.gmra.mxu0 %v2543
    %v3631 = vpop.f32.mrf.mxu0
    %v3632 = vadd.f32 %v3618, %v3631
    %v3633 = vpop.f32.mrf.mxu0
    %v3634 = vadd.f32 %v3620, %v3633
    %3635 = vdwg.mxu0
    %3636 = vmatpush.bf16.msra.mxu0 %v3363
    %3637 = vmatpush.bf16.msra.mxu0 %v3362
    %3638 = vmatpush.bf16.msra.mxu0 %v3361
    %3639 = vmatpush.bf16.msra.mxu0 %v3360
    %3640 = vmatpush.bf16.msra.mxu0 %v3359
    %3641 = vmatpush.bf16.msra.mxu0 %v3358
    %3642 = vmatpush.bf16.msra.mxu0 %v3357
    %3643 = vmatpush.bf16.msra.mxu0 %v3356
    %3644 = vmatmul.bf16.gmra.mxu0 %v2544
    %v3645 = vpop.f32.mrf.mxu0
    %v3646 = vadd.f32 %v3632, %v3645
    %v3647 = vpop.f32.mrf.mxu0
    %v3648 = vadd.f32 %v3634, %v3647
    %3649 = vdwg.mxu0
    %3650 = vmatpush.bf16.msra.mxu0 %v3371
    %3651 = vmatpush.bf16.msra.mxu0 %v3370
    %3652 = vmatpush.bf16.msra.mxu0 %v3369
    %3653 = vmatpush.bf16.msra.mxu0 %v3368
    %3654 = vmatpush.bf16.msra.mxu0 %v3367
    %3655 = vmatpush.bf16.msra.mxu0 %v3366
    %3656 = vmatpush.bf16.msra.mxu0 %v3365
    %3657 = vmatpush.bf16.msra.mxu0 %v3364
    %3658 = vmatmul.bf16.gmra.mxu0 %v2545
    %v3659 = vpop.f32.mrf.mxu0
    %v3660 = vadd.f32 %v3646, %v3659
    %v3661 = vpop.f32.mrf.mxu0
    %v3662 = vadd.f32 %v3648, %v3661
    %3663 = vdwg.mxu0
    %3664 = vmatpush.bf16.msra.mxu0 %v3379
    %3665 = vmatpush.bf16.msra.mxu0 %v3378
    %3666 = vmatpush.bf16.msra.mxu0 %v3377
    %3667 = vmatpush.bf16.msra.mxu0 %v3376
    %3668 = vmatpush.bf16.msra.mxu0 %v3375
    %3669 = vmatpush.bf16.msra.mxu0 %v3374
    %3670 = vmatpush.bf16.msra.mxu0 %v3373
    %3671 = vmatpush.bf16.msra.mxu0 %v3372
    %3672 = vmatmul.bf16.gmra.mxu0 %v2546
    %v3673 = vpop.f32.mrf.mxu0
    %v3674 = vadd.f32 %v3660, %v3673
    %v3675 = vpop.f32.mrf.mxu0
    %v3676 = vadd.f32 %v3662, %v3675
    %3677 = vdwg.mxu0
    %3678 = vmatpush.bf16.msra.mxu0 %v3387
    %3679 = vmatpush.bf16.msra.mxu0 %v3386
    %3680 = vmatpush.bf16.msra.mxu0 %v3385
    %3681 = vmatpush.bf16.msra.mxu0 %v3384
    %3682 = vmatpush.bf16.msra.mxu0 %v3383
    %3683 = vmatpush.bf16.msra.mxu0 %v3382
    %3684 = vmatpush.bf16.msra.mxu0 %v3381
    %3685 = vmatpush.bf16.msra.mxu0 %v3380
    %3686 = vmatmul.bf16.gmra.mxu0 %v2547
    %v3687 = vpop.f32.mrf.mxu0
    %v3688 = vadd.f32 %v3674, %v3687
    %v3689 = vpop.f32.mrf.mxu0
    %v3690 = vadd.f32 %v3676, %v3689
    %3691 = vdwg.mxu0
    %3692 = vmatpush.bf16.msra.mxu0 %v3395
    %3693 = vmatpush.bf16.msra.mxu0 %v3394
    %3694 = vmatpush.bf16.msra.mxu0 %v3393
    %3695 = vmatpush.bf16.msra.mxu0 %v3392
    %3696 = vmatpush.bf16.msra.mxu0 %v3391
    %3697 = vmatpush.bf16.msra.mxu0 %v3390
    %3698 = vmatpush.bf16.msra.mxu0 %v3389
    %3699 = vmatpush.bf16.msra.mxu0 %v3388
    %3700 = vmatmul.bf16.gmra.mxu0 %v2548
    %v3701 = vpop.f32.mrf.mxu0
    %v3702 = vadd.f32 %v3688, %v3701
    %v3703 = vpop.f32.mrf.mxu0
    %v3704 = vadd.f32 %v3690, %v3703
    %3705 = vdwg.mxu0
    %3706 = vmatpush.bf16.msra.mxu0 %v3403
    %3707 = vmatpush.bf16.msra.mxu0 %v3402
    %3708 = vmatpush.bf16.msra.mxu0 %v3401
    %3709 = vmatpush.bf16.msra.mxu0 %v3400
    %3710 = vmatpush.bf16.msra.mxu0 %v3399
    %3711 = vmatpush.bf16.msra.mxu0 %v3398
    %3712 = vmatpush.bf16.msra.mxu0 %v3397
    %3713 = vmatpush.bf16.msra.mxu0 %v3396
    %3714 = vmatmul.bf16.gmra.mxu0 %v2549
    %v3715 = vpop.f32.mrf.mxu0
    %v3716 = vadd.f32 %v3702, %v3715
    %v3717 = vpop.f32.mrf.mxu0
    %v3718 = vadd.f32 %v3704, %v3717
    %3719 = vdwg.mxu0
    %3720 = vmatpush.bf16.msra.mxu0 %v3411
    %3721 = vmatpush.bf16.msra.mxu0 %v3410
    %3722 = vmatpush.bf16.msra.mxu0 %v3409
    %3723 = vmatpush.bf16.msra.mxu0 %v3408
    %3724 = vmatpush.bf16.msra.mxu0 %v3407
    %3725 = vmatpush.bf16.msra.mxu0 %v3406
    %3726 = vmatpush.bf16.msra.mxu0 %v3405
    %3727 = vmatpush.bf16.msra.mxu0 %v3404
    %3728 = vmatmul.bf16.gmra.mxu0 %v2550
    %v3729 = vpop.f32.mrf.mxu0
    %v3730 = vadd.f32 %v3716, %v3729
    %v3731 = vpop.f32.mrf.mxu0
    %v3732 = vadd.f32 %v3718, %v3731
    %3733 = vdwg.mxu0
    %3734 = vmatpush.bf16.msra.mxu0 %v3419
    %3735 = vmatpush.bf16.msra.mxu0 %v3418
    %3736 = vmatpush.bf16.msra.mxu0 %v3417
    %3737 = vmatpush.bf16.msra.mxu0 %v3416
    %3738 = vmatpush.bf16.msra.mxu0 %v3415
    %3739 = vmatpush.bf16.msra.mxu0 %v3414
    %3740 = vmatpush.bf16.msra.mxu0 %v3413
    %3741 = vmatpush.bf16.msra.mxu0 %v3412
    %3742 = vmatmul.bf16.gmra.mxu0 %v2551
    %v3743 = vpop.f32.mrf.mxu0
    %v3744 = vadd.f32 %v3730, %v3743
    %v3745 = vpop.f32.mrf.mxu0
    %v3746 = vadd.f32 %v3732, %v3745
    %3747 = vdwg.mxu0
    %3748 = vmatpush.bf16.msra.mxu0 %v3427
    %3749 = vmatpush.bf16.msra.mxu0 %v3426
    %3750 = vmatpush.bf16.msra.mxu0 %v3425
    %3751 = vmatpush.bf16.msra.mxu0 %v3424
    %3752 = vmatpush.bf16.msra.mxu0 %v3423
    %3753 = vmatpush.bf16.msra.mxu0 %v3422
    %3754 = vmatpush.bf16.msra.mxu0 %v3421
    %3755 = vmatpush.bf16.msra.mxu0 %v3420
    %3756 = vmatmul.bf16.gmra.mxu0 %v2552
    %v3757 = vpop.f32.mrf.mxu0
    %v3758 = vadd.f32 %v3744, %v3757
    %v3759 = vpop.f32.mrf.mxu0
    %v3760 = vadd.f32 %v3746, %v3759
    %3761 = vdwg.mxu0
    %3762 = vmatpush.bf16.msra.mxu0 %v3435
    %3763 = vmatpush.bf16.msra.mxu0 %v3434
    %3764 = vmatpush.bf16.msra.mxu0 %v3433
    %3765 = vmatpush.bf16.msra.mxu0 %v3432
    %3766 = vmatpush.bf16.msra.mxu0 %v3431
    %3767 = vmatpush.bf16.msra.mxu0 %v3430
    %3768 = vmatpush.bf16.msra.mxu0 %v3429
    %3769 = vmatpush.bf16.msra.mxu0 %v3428
    %3770 = vmatmul.bf16.gmra.mxu0 %v2553
    %v3771 = vpop.f32.mrf.mxu0
    %v3772 = vadd.f32 %v3758, %v3771
    %v3773 = vpop.f32.mrf.mxu0
    %v3774 = vadd.f32 %v3760, %v3773
    %3775 = vdwg.mxu0
    %3776 = vmatpush.bf16.msra.mxu0 %v3443
    %3777 = vmatpush.bf16.msra.mxu0 %v3442
    %3778 = vmatpush.bf16.msra.mxu0 %v3441
    %3779 = vmatpush.bf16.msra.mxu0 %v3440
    %3780 = vmatpush.bf16.msra.mxu0 %v3439
    %3781 = vmatpush.bf16.msra.mxu0 %v3438
    %3782 = vmatpush.bf16.msra.mxu0 %v3437
    %3783 = vmatpush.bf16.msra.mxu0 %v3436
    %3784 = vmatmul.bf16.gmra.mxu0 %v2554
    %v3785 = vpop.f32.mrf.mxu0
    %v3786 = vadd.f32 %v3772, %v3785
    %v3787 = vpop.f32.mrf.mxu0
    %v3788 = vadd.f32 %v3774, %v3787
    %3789 = vdwg.mxu0
    %3790 = vmatpush.bf16.msra.mxu0 %v3451
    %3791 = vmatpush.bf16.msra.mxu0 %v3450
    %3792 = vmatpush.bf16.msra.mxu0 %v3449
    %3793 = vmatpush.bf16.msra.mxu0 %v3448
    %3794 = vmatpush.bf16.msra.mxu0 %v3447
    %3795 = vmatpush.bf16.msra.mxu0 %v3446
    %3796 = vmatpush.bf16.msra.mxu0 %v3445
    %3797 = vmatpush.bf16.msra.mxu0 %v3444
    %3798 = vmatmul.bf16.gmra.mxu0 %v2555
    %v3799 = vpop.f32.mrf.mxu0
    %v3800 = vadd.f32 %v3786, %v3799
    %v3801 = vpop.f32.mrf.mxu0
    %v3802 = vadd.f32 %v3788, %v3801
    %3803 = vdwg.mxu0
    %v3804 = vld [vmem:[%s8] sm:$0x1]
    %v3805 = vld [vmem:[%s9] sm:$0x1]
    %3806 = vadd.xlane.f32.xlu0 %v3800
    %v3807 = vpop.xlane.xlu0 %3806
    %3808 = vadd.xlane.f32.xlu0 %v3802
    %v3809 = vpop.xlane.xlu0 %3808
    %v3810 = vmul.f32 %v3807, %v1468
    %v3811 = vmul.f32 %v3809, %v1468
    %v3812 = vsub.f32 %v3800, %v3810
    %v3813 = vsub.f32 %v3802, %v3811
    %v3814 = vmul.f32 %v3812, %v3812
    %v3815 = vmul.f32 %v3813, %v3813
    %3816 = vadd.xlane.f32.xlu0 %v3814
    %v3817 = vpop.xlane.xlu0 %3816
    %3818 = vadd.xlane.f32.xlu0 %v3815
    %v3819 = vpop.xlane.xlu0 %3818
    %v3820 = vmul.f32 %v3817, %v1468
    %v3821 = vmul.f32 %v3819, %v1468
    %v3822 = vadd.f32 %v3820, 1e-05
    %v3823 = vadd.f32 %v3821, 1e-05
    %v3824 = vrsqrt.pop %v3822
    %v3825 = vmul.f32 %v3824, %v3822
    %v3826 = vmul.f32 %v3825, %v3824
    %v3827 = vmul.f32 0.5, %v3826
    %v3828 = vsub.f32 1.5, %v3827
    %v3829 = vmul.f32 %v3824, %v3828
    %vm3830 = vweird.f32 %v3822
    %vm3831 = vweird.f32 %v3824
    %vm3832 = vmor %vm3830, %vm3831
    %v3833 = vsel %vm3832, %v3824, %v3829
    %v3834 = vrsqrt.pop %v3823
    %v3835 = vmul.f32 %v3834, %v3823
    %v3836 = vmul.f32 %v3835, %v3834
    %v3837 = vmul.f32 0.5, %v3836
    %v3838 = vsub.f32 1.5, %v3837
    %v3839 = vmul.f32 %v3834, %v3838
    %vm3840 = vweird.f32 %v3823
    %vm3841 = vweird.f32 %v3834
    %vm3842 = vmor %vm3840, %vm3841
    %v3843 = vsel %vm3842, %v3834, %v3839
    %v3844 = vmul.f32 %v3812, %v3833
    %v3845 = vmul.f32 %v3813, %v3843
    %v3847 = vperm.slane %v3804, 0
    %v3849 = vmul.f32 %v3844, %v3847
    %v3850 = vmul.f32 %v3845, %v3847
    %v3852 = vperm.slane %v3805, 0
    %v3854 = vadd.f32 %v3849, %v3852
    %v3855 = vadd.f32 %v3850, %v3852
    %v3856 = vpack.c.bf16 %v3854, %v3854
    %v3857 = vpack.c.bf16 %v3855, %v3855
    %3858 = vst [vmem:[#allocation13] sm:$0xf] %v3856
    %3859 = vst [vmem:[#allocation13 + $0x4] sm:$0xf] %v3857
    // Predicated region
    $region66: #{tpu_custom_call.1} parent=1 // pred_check
      _
    $region67: #{tpu_custom_call.1} parent=1 // pred_check_branch
      %3861 = sbr.rel (0) target = $region69
    $region68: #{tpu_custom_call.1} parent=1 // pred_region
      %3863 = vsyncadd [#allocation4], 0
      %s3864 = sshll.u32 [#allocation13], 4
      %s3865 = int_to_ptr.vmem [resolvable:$true] %s3864
      %s3866 = sshll.u32 %s10, 4
      %s3867 = int_to_ptr.hbm [resolvable:$true] %s3866
      %3872 = dma.vmem_to_hbm [thread:$0]  %s3865, 128, %s3867, [#allocation4], 64, 64, 4
    $region69: #{tpu_custom_call.1} parent=1 // pred_fallthru
      _
    // Predicated region
    $region70: #{tpu_custom_call.1} parent=1 // pred_check
      _
    $region71: #{tpu_custom_call.1} parent=1 // pred_check_branch
      %3874 = sbr.rel (0) target = $region73
    $region72: #{tpu_custom_call.1} parent=1 // pred_region
      %3876 = dma.done [#allocation4], 128
    $region73: #{tpu_custom_call.1} parent=1 // pred_fallthru
      _
    %3877 = vsyncpa [#allocation3], 1
    %3878 = vsyncpa [#allocation6], 1
    %3879 = vsyncpa [#allocation9], 1
    %3880 = vsyncpa [#allocation12], 1
    %3881 = vsyncpa [#allocation4], 1

</llo_original>
